<compile_context>
chip_gen: v7x
topology: tpu7x:2x2x1
jax: 0.10.0
libtpu: 0.0.40
codegen_flags: <defaults>
</compile_context>

<pallas_src>
import jax
import jax.numpy as jnp
from jax.experimental import pallas as pl
from jax.experimental.pallas import tpu as pltpu

HIDDEN = 64          # self.hidden_size
INPUT = 22           # self.conv_size  (LSTM input feature size)
NUM_LAYERS = 2
NUM_CLASSES = 7
RULER = 27
EPS = 1e-5           # BatchNorm eps
OUT_PAD = 128        # lane-dense padded output width (7 diag + 2 dect + zeros)


def _full_spec(shape):
    # single-program grid, whole array resident in VMEM
    return pl.BlockSpec(shape, lambda i, _n=len(shape): (0,) * _n)


# ------------------------- fused LSTM + head kernel --------------------------
def lstm_fused_kernel(x_ref, h0_ref, c0_ref,
                      wih0_ref, whh0_ref, b0_ref,
                      wih1_ref, whh1_ref, b1_ref,
                      ruler_ref, w0h_ref, w0r_ref, b0l_ref,
                      w2_ref, b2_ref, wda_ref, bda_ref,
                      out_ref):
    H = HIDDEN
    B = out_ref.shape[0]
    T = x_ref.shape[0] // B

    def cell(z, c_prev):
        # PyTorch gate order: i, f, g, o
        i = jax.nn.sigmoid(z[:, 0 * H:1 * H])
        f = jax.nn.sigmoid(z[:, 1 * H:2 * H])
        g = jnp.tanh(z[:, 2 * H:3 * H])
        o = jax.nn.sigmoid(z[:, 3 * H:4 * H])
        c = f * c_prev + i * g
        h = o * jnp.tanh(c)
        return h, c

    # ---- layer 0: hoisted input projection (one big matmul, bias folded) ----
    z0_all = (jnp.dot(x_ref[...], wih0_ref[...], preferred_element_type=jnp.float32)
              + b0_ref[...])                                   # (T*B, 4H)
    whh0 = whh0_ref[...]
    h, c = h0_ref[0], c0_ref[0]
    h_hist = []
    for t in range(T):                                         # fully unrolled
        z = z0_all[t * B:(t + 1) * B, :] + jnp.dot(
            h, whh0, preferred_element_type=jnp.float32)
        h, c = cell(z, c)
        h_hist.append(h)

    # ---- layer 1: hoisted input projection over stacked layer-0 outputs -----
    hist = jnp.concatenate(h_hist, axis=0)                     # (T*B, H)
    z1_all = (jnp.dot(hist, wih1_ref[...], preferred_element_type=jnp.float32)
              + b1_ref[...])                                   # (T*B, 4H)
    whh1 = whh1_ref[...]
    h, c = h0_ref[1], c0_ref[1]
    for t in range(T):                                         # fully unrolled
        z = z1_all[t * B:(t + 1) * B, :] + jnp.dot(
            h, whh1, preferred_element_type=jnp.float32)
        h, c = cell(z, c)
    h_last = h                                                 # out[:, -1, :]

    # -------------------------------- head -----------------------------------
    # cat((h, ruler), 1) @ W0 == h @ W0[:64, :] + ruler @ W0[64:, :]
    x0 = (jnp.dot(h_last, w0h_ref[...], preferred_element_type=jnp.float32)
          + jnp.dot(ruler_ref[...], w0r_ref[...], preferred_element_type=jnp.float32)
          + b0l_ref[...])                                      # linear0 -> (B, 32)
    x2 = (jnp.dot(x0, w2_ref[...], preferred_element_type=jnp.float32)
          + b2_ref[...])                                       # linear2 -> (B, 16)

    # linearDiog and linearDect fused into one lane-dense padded matmul:
    # cols [0,7) = diag logits, cols [7,9) = dect logits, cols [9,128) = 0.
    comb = (jnp.dot(x2, wda_ref[...], preferred_element_type=jnp.float32)
            + bda_ref[...])                                    # (B, 128)

    # BatchNorm1d(1) applied to (B, 1, C) in training mode: single channel,
    # biased batch stats over all B*C elements, gamma=1, beta=0 — computed per
    # head with lane masks on the combined slab.
    col = jax.lax.broadcasted_iota(jnp.int32, comb.shape, 1)
    diag_m = col < NUM_CLASSES
    dect_m = jnp.logical_and(col >= NUM_CLASSES, col < NUM_CLASSES + 2)
    n_diag = float(B * NUM_CLASSES)
    n_dect = float(B * 2)
    zero = jnp.zeros_like(comb)

    dm = jnp.sum(jnp.where(diag_m, comb, zero)) / n_diag
    am = jnp.sum(jnp.where(dect_m, comb, zero)) / n_dect
    cen = comb - jnp.where(diag_m, dm, am)
    sq = cen * cen
    dv = jnp.sum(jnp.where(diag_m, sq, zero)) / n_diag
    av = jnp.sum(jnp.where(dect_m, sq, zero)) / n_dect
    inv = jnp.where(diag_m, jax.lax.rsqrt(dv + EPS), jax.lax.rsqrt(av + EPS))

    out_ref[...] = cen * inv                                   # (B, 128), lane-dense


def run_fused(x_flat, h0, c0, ruler, lstm_params, head_params):
    wih0, whh0, b0, wih1, whh1, b1 = lstm_params
    w0h, w0r, b0l, w2, b2, wda, bda = head_params
    args = (x_flat, h0, c0, wih0, whh0, b0, wih1, whh1, b1,
            ruler, w0h, w0r, b0l, w2, b2, wda, bda)
    B = h0.shape[1]
    return pl.pallas_call(
        lstm_fused_kernel,
        out_shape=jax.ShapeDtypeStruct((B, OUT_PAD), jnp.float32),
        grid=(1,),
        in_specs=[_full_spec(a.shape) for a in args],
        out_specs=_full_spec((B, OUT_PAD)),
        compiler_params=pltpu.CompilerParams(dimension_semantics=("arbitrary",)),
    )(*args)


# --------------------------- deterministic init ------------------------------
def init_params(key):
    ks = jax.random.split(key, 20)

    def u(k, shape, scale):
        return jax.random.uniform(k, shape, jnp.float32, -scale, scale)

    s_lstm = 1.0 / (HIDDEN ** 0.5)
    # weights stored transposed: (in, 4H)
    wih0 = u(ks[0], (INPUT, 4 * HIDDEN), s_lstm)
    whh0 = u(ks[1], (HIDDEN, 4 * HIDDEN), s_lstm)
    b0 = u(ks[2], (1, 4 * HIDDEN), s_lstm) + u(ks[3], (1, 4 * HIDDEN), s_lstm)  # b_ih + b_hh
    wih1 = u(ks[4], (HIDDEN, 4 * HIDDEN), s_lstm)
    whh1 = u(ks[5], (HIDDEN, 4 * HIDDEN), s_lstm)
    b1 = u(ks[6], (1, 4 * HIDDEN), s_lstm) + u(ks[7], (1, 4 * HIDDEN), s_lstm)
    lstm_params = (wih0, whh0, b0, wih1, whh1, b1)

    s0 = 1.0 / ((HIDDEN + RULER) ** 0.5)     # linear0: in=91, out=32
    w0h = u(ks[8], (HIDDEN, HIDDEN // 2), s0)
    w0r = u(ks[9], (RULER, HIDDEN // 2), s0)
    b0l = u(ks[10], (1, HIDDEN // 2), s0)
    s2 = 1.0 / ((HIDDEN // 2) ** 0.5)        # linear2: 32 -> 16
    w2 = u(ks[11], (HIDDEN // 2, HIDDEN // 4), s2)
    b2 = u(ks[12], (1, HIDDEN // 4), s2)
    sd = 1.0 / ((HIDDEN // 4) ** 0.5)
    wd = u(ks[13], (HIDDEN // 4, NUM_CLASSES), sd)   # linearDiog
    bd = u(ks[14], (1, NUM_CLASSES), sd)
    wa = u(ks[15], (HIDDEN // 4, 2), sd)             # linearDect
    ba = u(ks[16], (1, 2), sd)

    # Fuse the two output heads into one lane-dense padded weight (16, 128).
    pad = OUT_PAD - (NUM_CLASSES + 2)
    wda = jnp.concatenate(
        [wd, wa, jnp.zeros((HIDDEN // 4, pad), jnp.float32)], axis=1)
    bda = jnp.concatenate([bd, ba, jnp.zeros((1, pad), jnp.float32)], axis=1)

    head_params = (w0h, w0r, b0l, w2, b2, wda, bda)
    return lstm_params, head_params


# ------------------------------- forward ------------------------------------
@jax.jit
def lstm_forward(x_btf, ruler, h0, c0, lstm_params, head_params):
    B, T, F = x_btf.shape
    # (B,T,F) -> time-major (T,B,F) -> flat (T*B, F) for the hoisted ih matmul
    x_flat = jnp.transpose(x_btf, (1, 0, 2)).reshape(T * B, F)
    ruler2 = ruler.reshape(-1, RULER)                 # ruler.view(-1, 27)
    out_pad = run_fused(x_flat, h0, c0, ruler2, lstm_params, head_params)
    out_type = out_pad[:, :NUM_CLASSES]               # (B, 7)
    out_anomaly = out_pad[:, NUM_CLASSES:NUM_CLASSES + 2]  # (B, 2)
    return out_type, out_anomaly


if __name__ == "__main__":
    key = jax.random.PRNGKey(0)
    kx, kr, kh, kc, kp = jax.random.split(key, 5)
    B, T = 2, 8
    x = jax.random.normal(kx, (B, T, INPUT), jnp.float32)         # LSTM input (batch_first)
    ruler = jax.random.normal(kr, (B, RULER), jnp.float32)
    # forward() draws random initial states; reproduced deterministically here.
    h0 = jax.random.normal(kh, (NUM_LAYERS, B, HIDDEN), jnp.float32)
    c0 = jax.random.normal(kc, (NUM_LAYERS, B, HIDDEN), jnp.float32)

    lstm_params, head_params = init_params(kp)

    out_type, out_anomaly = lstm_forward(x, ruler, h0, c0, lstm_params, head_params)
    jax.block_until_ready((out_type, out_anomaly))

    assert out_type.shape == (B, NUM_CLASSES), out_type.shape
    assert out_anomaly.shape == (B, 2), out_anomaly.shape
    assert jnp.all(jnp.isfinite(out_type)) and jnp.all(jnp.isfinite(out_anomaly))
    # TODO(synk): self.conv and self.linear1 are constructed but never called in
    # forward(), so they are intentionally not implemented.
    print("KERNEL_OK")
</pallas_src>

<mosaic_0001>
module attributes {stable_mosaic.version = 11 : i64} {
  func.func @lstm_fused_kernel(%arg0: i32, %arg1: memref<16x22xf32, #tpu.memory_space<vmem>>, %arg2: memref<2x2x64xf32, #tpu.memory_space<vmem>>, %arg3: memref<2x2x64xf32, #tpu.memory_space<vmem>>, %arg4: memref<22x256xf32, #tpu.memory_space<vmem>>, %arg5: memref<64x256xf32, #tpu.memory_space<vmem>>, %arg6: memref<1x256xf32, #tpu.memory_space<vmem>>, %arg7: memref<64x256xf32, #tpu.memory_space<vmem>>, %arg8: memref<64x256xf32, #tpu.memory_space<vmem>>, %arg9: memref<1x256xf32, #tpu.memory_space<vmem>>, %arg10: memref<2x27xf32, #tpu.memory_space<vmem>>, %arg11: memref<64x32xf32, #tpu.memory_space<vmem>>, %arg12: memref<27x32xf32, #tpu.memory_space<vmem>>, %arg13: memref<1x32xf32, #tpu.memory_space<vmem>>, %arg14: memref<32x16xf32, #tpu.memory_space<vmem>>, %arg15: memref<1x16xf32, #tpu.memory_space<vmem>>, %arg16: memref<16x128xf32, #tpu.memory_space<vmem>>, %arg17: memref<1x128xf32, #tpu.memory_space<vmem>>, %arg18: memref<2x128xf32, #tpu.memory_space<vmem>>) attributes {dimension_semantics = [#tpu.dimension_semantics<arbitrary>], iteration_bounds = array<i64: 1>, scalar_prefetch = 0 : i64, scratch_operands = 0 : i64, tpu.core_type = #tpu.core_type<tc>, window_params = [{pipeline_mode = #tpu.pipeline_mode<synchronous>, transform_indices = @transform_0, window_bounds = array<i64: 16, 22>}, {pipeline_mode = #tpu.pipeline_mode<synchronous>, transform_indices = @transform_1, window_bounds = array<i64: 2, 2, 64>}, {pipeline_mode = #tpu.pipeline_mode<synchronous>, transform_indices = @transform_2, window_bounds = array<i64: 2, 2, 64>}, {pipeline_mode = #tpu.pipeline_mode<synchronous>, transform_indices = @transform_3, window_bounds = array<i64: 22, 256>}, {pipeline_mode = #tpu.pipeline_mode<synchronous>, transform_indices = @transform_4, window_bounds = array<i64: 64, 256>}, {pipeline_mode = #tpu.pipeline_mode<synchronous>, transform_indices = @transform_5, window_bounds = array<i64: 1, 256>}, {pipeline_mode = #tpu.pipeline_mode<synchronous>, transform_indices = @transform_6, window_bounds = array<i64: 64, 256>}, {pipeline_mode = #tpu.pipeline_mode<synchronous>, transform_indices = @transform_7, window_bounds = array<i64: 64, 256>}, {pipeline_mode = #tpu.pipeline_mode<synchronous>, transform_indices = @transform_8, window_bounds = array<i64: 1, 256>}, {pipeline_mode = #tpu.pipeline_mode<synchronous>, transform_indices = @transform_9, window_bounds = array<i64: 2, 27>}, {pipeline_mode = #tpu.pipeline_mode<synchronous>, transform_indices = @transform_10, window_bounds = array<i64: 64, 32>}, {pipeline_mode = #tpu.pipeline_mode<synchronous>, transform_indices = @transform_11, window_bounds = array<i64: 27, 32>}, {pipeline_mode = #tpu.pipeline_mode<synchronous>, transform_indices = @transform_12, window_bounds = array<i64: 1, 32>}, {pipeline_mode = #tpu.pipeline_mode<synchronous>, transform_indices = @transform_13, window_bounds = array<i64: 32, 16>}, {pipeline_mode = #tpu.pipeline_mode<synchronous>, transform_indices = @transform_14, window_bounds = array<i64: 1, 16>}, {pipeline_mode = #tpu.pipeline_mode<synchronous>, transform_indices = @transform_15, window_bounds = array<i64: 16, 128>}, {pipeline_mode = #tpu.pipeline_mode<synchronous>, transform_indices = @transform_16, window_bounds = array<i64: 1, 128>}, {pipeline_mode = #tpu.pipeline_mode<synchronous>, transform_indices = @transform_17, window_bounds = array<i64: 2, 128>}]} {
    %c0 = arith.constant 0 : index
    %c0_0 = arith.constant 0 : index
    %0 = vector.load %arg1[%c0, %c0_0] : memref<16x22xf32, #tpu.memory_space<vmem>>, vector<16x22xf32>
    %c0_1 = arith.constant 0 : index
    %c0_2 = arith.constant 0 : index
    %1 = vector.load %arg4[%c0_1, %c0_2] : memref<22x256xf32, #tpu.memory_space<vmem>>, vector<22x256xf32>
    %cst = arith.constant dense<0.000000e+00> : vector<16x256xf32>
    %2 = tpu.matmul %0, %1, %cst {dimension_numbers = #tpu.dot_dimension_numbers<[1], [0], [0], [1], [0, 0, 1, 1], [], []>} : vector<16x22xf32>, vector<22x256xf32>, vector<16x256xf32> -> vector<16x256xf32>
    %c0_3 = arith.constant 0 : index
    %c0_4 = arith.constant 0 : index
    %3 = vector.load %arg6[%c0_3, %c0_4] : memref<1x256xf32, #tpu.memory_space<vmem>>, vector<1x256xf32>
    %4 = vector.broadcast %3 : vector<1x256xf32> to vector<16x256xf32>
    %5 = arith.addf %2, %4 : vector<16x256xf32>
    %c0_5 = arith.constant 0 : index
    %c0_6 = arith.constant 0 : index
    %6 = vector.load %arg5[%c0_5, %c0_6] : memref<64x256xf32, #tpu.memory_space<vmem>>, vector<64x256xf32>
    %c0_7 = arith.constant 0 : index
    %c0_8 = arith.constant 0 : index
    %c0_9 = arith.constant 0 : index
    %7 = vector.load %arg2[%c0_7, %c0_8, %c0_9] : memref<2x2x64xf32, #tpu.memory_space<vmem>>, vector<1x2x64xf32>
    %8 = vector.shape_cast %7 : vector<1x2x64xf32> to vector<2x64xf32>
    %c0_10 = arith.constant 0 : index
    %c0_11 = arith.constant 0 : index
    %c0_12 = arith.constant 0 : index
    %9 = vector.load %arg3[%c0_10, %c0_11, %c0_12] : memref<2x2x64xf32, #tpu.memory_space<vmem>>, vector<1x2x64xf32>
    %10 = vector.shape_cast %9 : vector<1x2x64xf32> to vector<2x64xf32>
    %11 = vector.extract_strided_slice %5 {offsets = [0, 0], sizes = [2, 256], strides = [1, 1]} : vector<16x256xf32> to vector<2x256xf32>
    %cst_13 = arith.constant dense<0.000000e+00> : vector<2x256xf32>
    %12 = tpu.matmul %8, %6, %cst_13 {dimension_numbers = #tpu.dot_dimension_numbers<[1], [0], [0], [1], [0, 0, 1, 1], [], []>} : vector<2x64xf32>, vector<64x256xf32>, vector<2x256xf32> -> vector<2x256xf32>
    %13 = arith.addf %11, %12 : vector<2x256xf32>
    %14 = vector.extract_strided_slice %13 {offsets = [0, 0], sizes = [2, 64], strides = [1, 1]} : vector<2x256xf32> to vector<2x64xf32>
    %15 = arith.negf %14 : vector<2x64xf32>
    %16 = math.exp %15 : vector<2x64xf32>
    %cst_14 = arith.constant 1.000000e+00 : f32
    %17 = vector.broadcast %cst_14 : f32 to vector<2x64xf32>
    %18 = arith.addf %17, %16 : vector<2x64xf32>
    %19 = arith.divf %17, %18 : vector<2x64xf32>
    %20 = vector.extract_strided_slice %13 {offsets = [0, 64], sizes = [2, 64], strides = [1, 1]} : vector<2x256xf32> to vector<2x64xf32>
    %21 = arith.negf %20 : vector<2x64xf32>
    %22 = math.exp %21 : vector<2x64xf32>
    %cst_15 = arith.constant 1.000000e+00 : f32
    %23 = vector.broadcast %cst_15 : f32 to vector<2x64xf32>
    %24 = arith.addf %23, %22 : vector<2x64xf32>
    %25 = arith.divf %23, %24 : vector<2x64xf32>
    %26 = vector.extract_strided_slice %13 {offsets = [0, 128], sizes = [2, 64], strides = [1, 1]} : vector<2x256xf32> to vector<2x64xf32>
    %27 = math.tanh %26 : vector<2x64xf32>
    %28 = vector.extract_strided_slice %13 {offsets = [0, 192], sizes = [2, 64], strides = [1, 1]} : vector<2x256xf32> to vector<2x64xf32>
    %29 = arith.negf %28 : vector<2x64xf32>
    %30 = math.exp %29 : vector<2x64xf32>
    %cst_16 = arith.constant 1.000000e+00 : f32
    %31 = vector.broadcast %cst_16 : f32 to vector<2x64xf32>
    %32 = arith.addf %31, %30 : vector<2x64xf32>
    %33 = arith.divf %31, %32 : vector<2x64xf32>
    %34 = arith.mulf %25, %10 : vector<2x64xf32>
    %35 = arith.mulf %19, %27 : vector<2x64xf32>
    %36 = arith.addf %34, %35 : vector<2x64xf32>
    %37 = math.tanh %36 : vector<2x64xf32>
    %38 = arith.mulf %33, %37 : vector<2x64xf32>
    %39 = vector.extract_strided_slice %5 {offsets = [2, 0], sizes = [2, 256], strides = [1, 1]} : vector<16x256xf32> to vector<2x256xf32>
    %cst_17 = arith.constant dense<0.000000e+00> : vector<2x256xf32>
    %40 = tpu.matmul %38, %6, %cst_17 {dimension_numbers = #tpu.dot_dimension_numbers<[1], [0], [0], [1], [0, 0, 1, 1], [], []>} : vector<2x64xf32>, vector<64x256xf32>, vector<2x256xf32> -> vector<2x256xf32>
    %41 = arith.addf %39, %40 : vector<2x256xf32>
    %42 = vector.extract_strided_slice %41 {offsets = [0, 0], sizes = [2, 64], strides = [1, 1]} : vector<2x256xf32> to vector<2x64xf32>
    %43 = arith.negf %42 : vector<2x64xf32>
    %44 = math.exp %43 : vector<2x64xf32>
    %cst_18 = arith.constant 1.000000e+00 : f32
    %45 = vector.broadcast %cst_18 : f32 to vector<2x64xf32>
    %46 = arith.addf %45, %44 : vector<2x64xf32>
    %47 = arith.divf %45, %46 : vector<2x64xf32>
    %48 = vector.extract_strided_slice %41 {offsets = [0, 64], sizes = [2, 64], strides = [1, 1]} : vector<2x256xf32> to vector<2x64xf32>
    %49 = arith.negf %48 : vector<2x64xf32>
    %50 = math.exp %49 : vector<2x64xf32>
    %cst_19 = arith.constant 1.000000e+00 : f32
    %51 = vector.broadcast %cst_19 : f32 to vector<2x64xf32>
    %52 = arith.addf %51, %50 : vector<2x64xf32>
    %53 = arith.divf %51, %52 : vector<2x64xf32>
    %54 = vector.extract_strided_slice %41 {offsets = [0, 128], sizes = [2, 64], strides = [1, 1]} : vector<2x256xf32> to vector<2x64xf32>
    %55 = math.tanh %54 : vector<2x64xf32>
    %56 = vector.extract_strided_slice %41 {offsets = [0, 192], sizes = [2, 64], strides = [1, 1]} : vector<2x256xf32> to vector<2x64xf32>
    %57 = arith.negf %56 : vector<2x64xf32>
    %58 = math.exp %57 : vector<2x64xf32>
    %cst_20 = arith.constant 1.000000e+00 : f32
    %59 = vector.broadcast %cst_20 : f32 to vector<2x64xf32>
    %60 = arith.addf %59, %58 : vector<2x64xf32>
    %61 = arith.divf %59, %60 : vector<2x64xf32>
    %62 = arith.mulf %53, %36 : vector<2x64xf32>
    %63 = arith.mulf %47, %55 : vector<2x64xf32>
    %64 = arith.addf %62, %63 : vector<2x64xf32>
    %65 = math.tanh %64 : vector<2x64xf32>
    %66 = arith.mulf %61, %65 : vector<2x64xf32>
    %67 = vector.extract_strided_slice %5 {offsets = [4, 0], sizes = [2, 256], strides = [1, 1]} : vector<16x256xf32> to vector<2x256xf32>
    %cst_21 = arith.constant dense<0.000000e+00> : vector<2x256xf32>
    %68 = tpu.matmul %66, %6, %cst_21 {dimension_numbers = #tpu.dot_dimension_numbers<[1], [0], [0], [1], [0, 0, 1, 1], [], []>} : vector<2x64xf32>, vector<64x256xf32>, vector<2x256xf32> -> vector<2x256xf32>
    %69 = arith.addf %67, %68 : vector<2x256xf32>
    %70 = vector.extract_strided_slice %69 {offsets = [0, 0], sizes = [2, 64], strides = [1, 1]} : vector<2x256xf32> to vector<2x64xf32>
    %71 = arith.negf %70 : vector<2x64xf32>
    %72 = math.exp %71 : vector<2x64xf32>
    %cst_22 = arith.constant 1.000000e+00 : f32
    %73 = vector.broadcast %cst_22 : f32 to vector<2x64xf32>
    %74 = arith.addf %73, %72 : vector<2x64xf32>
    %75 = arith.divf %73, %74 : vector<2x64xf32>
    %76 = vector.extract_strided_slice %69 {offsets = [0, 64], sizes = [2, 64], strides = [1, 1]} : vector<2x256xf32> to vector<2x64xf32>
    %77 = arith.negf %76 : vector<2x64xf32>
    %78 = math.exp %77 : vector<2x64xf32>
    %cst_23 = arith.constant 1.000000e+00 : f32
    %79 = vector.broadcast %cst_23 : f32 to vector<2x64xf32>
    %80 = arith.addf %79, %78 : vector<2x64xf32>
    %81 = arith.divf %79, %80 : vector<2x64xf32>
    %82 = vector.extract_strided_slice %69 {offsets = [0, 128], sizes = [2, 64], strides = [1, 1]} : vector<2x256xf32> to vector<2x64xf32>
    %83 = math.tanh %82 : vector<2x64xf32>
    %84 = vector.extract_strided_slice %69 {offsets = [0, 192], sizes = [2, 64], strides = [1, 1]} : vector<2x256xf32> to vector<2x64xf32>
    %85 = arith.negf %84 : vector<2x64xf32>
    %86 = math.exp %85 : vector<2x64xf32>
    %cst_24 = arith.constant 1.000000e+00 : f32
    %87 = vector.broadcast %cst_24 : f32 to vector<2x64xf32>
    %88 = arith.addf %87, %86 : vector<2x64xf32>
    %89 = arith.divf %87, %88 : vector<2x64xf32>
    %90 = arith.mulf %81, %64 : vector<2x64xf32>
    %91 = arith.mulf %75, %83 : vector<2x64xf32>
    %92 = arith.addf %90, %91 : vector<2x64xf32>
    %93 = math.tanh %92 : vector<2x64xf32>
    %94 = arith.mulf %89, %93 : vector<2x64xf32>
    %95 = vector.extract_strided_slice %5 {offsets = [6, 0], sizes = [2, 256], strides = [1, 1]} : vector<16x256xf32> to vector<2x256xf32>
    %cst_25 = arith.constant dense<0.000000e+00> : vector<2x256xf32>
    %96 = tpu.matmul %94, %6, %cst_25 {dimension_numbers = #tpu.dot_dimension_numbers<[1], [0], [0], [1], [0, 0, 1, 1], [], []>} : vector<2x64xf32>, vector<64x256xf32>, vector<2x256xf32> -> vector<2x256xf32>
    %97 = arith.addf %95, %96 : vector<2x256xf32>
    %98 = vector.extract_strided_slice %97 {offsets = [0, 0], sizes = [2, 64], strides = [1, 1]} : vector<2x256xf32> to vector<2x64xf32>
    %99 = arith.negf %98 : vector<2x64xf32>
    %100 = math.exp %99 : vector<2x64xf32>
    %cst_26 = arith.constant 1.000000e+00 : f32
    %101 = vector.broadcast %cst_26 : f32 to vector<2x64xf32>
    %102 = arith.addf %101, %100 : vector<2x64xf32>
    %103 = arith.divf %101, %102 : vector<2x64xf32>
    %104 = vector.extract_strided_slice %97 {offsets = [0, 64], sizes = [2, 64], strides = [1, 1]} : vector<2x256xf32> to vector<2x64xf32>
    %105 = arith.negf %104 : vector<2x64xf32>
    %106 = math.exp %105 : vector<2x64xf32>
    %cst_27 = arith.constant 1.000000e+00 : f32
    %107 = vector.broadcast %cst_27 : f32 to vector<2x64xf32>
    %108 = arith.addf %107, %106 : vector<2x64xf32>
    %109 = arith.divf %107, %108 : vector<2x64xf32>
    %110 = vector.extract_strided_slice %97 {offsets = [0, 128], sizes = [2, 64], strides = [1, 1]} : vector<2x256xf32> to vector<2x64xf32>
    %111 = math.tanh %110 : vector<2x64xf32>
    %112 = vector.extract_strided_slice %97 {offsets = [0, 192], sizes = [2, 64], strides = [1, 1]} : vector<2x256xf32> to vector<2x64xf32>
    %113 = arith.negf %112 : vector<2x64xf32>
    %114 = math.exp %113 : vector<2x64xf32>
    %cst_28 = arith.constant 1.000000e+00 : f32
    %115 = vector.broadcast %cst_28 : f32 to vector<2x64xf32>
    %116 = arith.addf %115, %114 : vector<2x64xf32>
    %117 = arith.divf %115, %116 : vector<2x64xf32>
    %118 = arith.mulf %109, %92 : vector<2x64xf32>
    %119 = arith.mulf %103, %111 : vector<2x64xf32>
    %120 = arith.addf %118, %119 : vector<2x64xf32>
    %121 = math.tanh %120 : vector<2x64xf32>
    %122 = arith.mulf %117, %121 : vector<2x64xf32>
    %123 = vector.extract_strided_slice %5 {offsets = [8, 0], sizes = [2, 256], strides = [1, 1]} : vector<16x256xf32> to vector<2x256xf32>
    %cst_29 = arith.constant dense<0.000000e+00> : vector<2x256xf32>
    %124 = tpu.matmul %122, %6, %cst_29 {dimension_numbers = #tpu.dot_dimension_numbers<[1], [0], [0], [1], [0, 0, 1, 1], [], []>} : vector<2x64xf32>, vector<64x256xf32>, vector<2x256xf32> -> vector<2x256xf32>
    %125 = arith.addf %123, %124 : vector<2x256xf32>
    %126 = vector.extract_strided_slice %125 {offsets = [0, 0], sizes = [2, 64], strides = [1, 1]} : vector<2x256xf32> to vector<2x64xf32>
    %127 = arith.negf %126 : vector<2x64xf32>
    %128 = math.exp %127 : vector<2x64xf32>
    %cst_30 = arith.constant 1.000000e+00 : f32
    %129 = vector.broadcast %cst_30 : f32 to vector<2x64xf32>
    %130 = arith.addf %129, %128 : vector<2x64xf32>
    %131 = arith.divf %129, %130 : vector<2x64xf32>
    %132 = vector.extract_strided_slice %125 {offsets = [0, 64], sizes = [2, 64], strides = [1, 1]} : vector<2x256xf32> to vector<2x64xf32>
    %133 = arith.negf %132 : vector<2x64xf32>
    %134 = math.exp %133 : vector<2x64xf32>
    %cst_31 = arith.constant 1.000000e+00 : f32
    %135 = vector.broadcast %cst_31 : f32 to vector<2x64xf32>
    %136 = arith.addf %135, %134 : vector<2x64xf32>
    %137 = arith.divf %135, %136 : vector<2x64xf32>
    %138 = vector.extract_strided_slice %125 {offsets = [0, 128], sizes = [2, 64], strides = [1, 1]} : vector<2x256xf32> to vector<2x64xf32>
    %139 = math.tanh %138 : vector<2x64xf32>
    %140 = vector.extract_strided_slice %125 {offsets = [0, 192], sizes = [2, 64], strides = [1, 1]} : vector<2x256xf32> to vector<2x64xf32>
    %141 = arith.negf %140 : vector<2x64xf32>
    %142 = math.exp %141 : vector<2x64xf32>
    %cst_32 = arith.constant 1.000000e+00 : f32
    %143 = vector.broadcast %cst_32 : f32 to vector<2x64xf32>
    %144 = arith.addf %143, %142 : vector<2x64xf32>
    %145 = arith.divf %143, %144 : vector<2x64xf32>
    %146 = arith.mulf %137, %120 : vector<2x64xf32>
    %147 = arith.mulf %131, %139 : vector<2x64xf32>
    %148 = arith.addf %146, %147 : vector<2x64xf32>
    %149 = math.tanh %148 : vector<2x64xf32>
    %150 = arith.mulf %145, %149 : vector<2x64xf32>
    %151 = vector.extract_strided_slice %5 {offsets = [10, 0], sizes = [2, 256], strides = [1, 1]} : vector<16x256xf32> to vector<2x256xf32>
    %cst_33 = arith.constant dense<0.000000e+00> : vector<2x256xf32>
    %152 = tpu.matmul %150, %6, %cst_33 {dimension_numbers = #tpu.dot_dimension_numbers<[1], [0], [0], [1], [0, 0, 1, 1], [], []>} : vector<2x64xf32>, vector<64x256xf32>, vector<2x256xf32> -> vector<2x256xf32>
    %153 = arith.addf %151, %152 : vector<2x256xf32>
    %154 = vector.extract_strided_slice %153 {offsets = [0, 0], sizes = [2, 64], strides = [1, 1]} : vector<2x256xf32> to vector<2x64xf32>
    %155 = arith.negf %154 : vector<2x64xf32>
    %156 = math.exp %155 : vector<2x64xf32>
    %cst_34 = arith.constant 1.000000e+00 : f32
    %157 = vector.broadcast %cst_34 : f32 to vector<2x64xf32>
    %158 = arith.addf %157, %156 : vector<2x64xf32>
    %159 = arith.divf %157, %158 : vector<2x64xf32>
    %160 = vector.extract_strided_slice %153 {offsets = [0, 64], sizes = [2, 64], strides = [1, 1]} : vector<2x256xf32> to vector<2x64xf32>
    %161 = arith.negf %160 : vector<2x64xf32>
    %162 = math.exp %161 : vector<2x64xf32>
    %cst_35 = arith.constant 1.000000e+00 : f32
    %163 = vector.broadcast %cst_35 : f32 to vector<2x64xf32>
    %164 = arith.addf %163, %162 : vector<2x64xf32>
    %165 = arith.divf %163, %164 : vector<2x64xf32>
    %166 = vector.extract_strided_slice %153 {offsets = [0, 128], sizes = [2, 64], strides = [1, 1]} : vector<2x256xf32> to vector<2x64xf32>
    %167 = math.tanh %166 : vector<2x64xf32>
    %168 = vector.extract_strided_slice %153 {offsets = [0, 192], sizes = [2, 64], strides = [1, 1]} : vector<2x256xf32> to vector<2x64xf32>
    %169 = arith.negf %168 : vector<2x64xf32>
    %170 = math.exp %169 : vector<2x64xf32>
    %cst_36 = arith.constant 1.000000e+00 : f32
    %171 = vector.broadcast %cst_36 : f32 to vector<2x64xf32>
    %172 = arith.addf %171, %170 : vector<2x64xf32>
    %173 = arith.divf %171, %172 : vector<2x64xf32>
    %174 = arith.mulf %165, %148 : vector<2x64xf32>
    %175 = arith.mulf %159, %167 : vector<2x64xf32>
    %176 = arith.addf %174, %175 : vector<2x64xf32>
    %177 = math.tanh %176 : vector<2x64xf32>
    %178 = arith.mulf %173, %177 : vector<2x64xf32>
    %179 = vector.extract_strided_slice %5 {offsets = [12, 0], sizes = [2, 256], strides = [1, 1]} : vector<16x256xf32> to vector<2x256xf32>
    %cst_37 = arith.constant dense<0.000000e+00> : vector<2x256xf32>
    %180 = tpu.matmul %178, %6, %cst_37 {dimension_numbers = #tpu.dot_dimension_numbers<[1], [0], [0], [1], [0, 0, 1, 1], [], []>} : vector<2x64xf32>, vector<64x256xf32>, vector<2x256xf32> -> vector<2x256xf32>
    %181 = arith.addf %179, %180 : vector<2x256xf32>
    %182 = vector.extract_strided_slice %181 {offsets = [0, 0], sizes = [2, 64], strides = [1, 1]} : vector<2x256xf32> to vector<2x64xf32>
    %183 = arith.negf %182 : vector<2x64xf32>
    %184 = math.exp %183 : vector<2x64xf32>
    %cst_38 = arith.constant 1.000000e+00 : f32
    %185 = vector.broadcast %cst_38 : f32 to vector<2x64xf32>
    %186 = arith.addf %185, %184 : vector<2x64xf32>
    %187 = arith.divf %185, %186 : vector<2x64xf32>
    %188 = vector.extract_strided_slice %181 {offsets = [0, 64], sizes = [2, 64], strides = [1, 1]} : vector<2x256xf32> to vector<2x64xf32>
    %189 = arith.negf %188 : vector<2x64xf32>
    %190 = math.exp %189 : vector<2x64xf32>
    %cst_39 = arith.constant 1.000000e+00 : f32
    %191 = vector.broadcast %cst_39 : f32 to vector<2x64xf32>
    %192 = arith.addf %191, %190 : vector<2x64xf32>
    %193 = arith.divf %191, %192 : vector<2x64xf32>
    %194 = vector.extract_strided_slice %181 {offsets = [0, 128], sizes = [2, 64], strides = [1, 1]} : vector<2x256xf32> to vector<2x64xf32>
    %195 = math.tanh %194 : vector<2x64xf32>
    %196 = vector.extract_strided_slice %181 {offsets = [0, 192], sizes = [2, 64], strides = [1, 1]} : vector<2x256xf32> to vector<2x64xf32>
    %197 = arith.negf %196 : vector<2x64xf32>
    %198 = math.exp %197 : vector<2x64xf32>
    %cst_40 = arith.constant 1.000000e+00 : f32
    %199 = vector.broadcast %cst_40 : f32 to vector<2x64xf32>
    %200 = arith.addf %199, %198 : vector<2x64xf32>
    %201 = arith.divf %199, %200 : vector<2x64xf32>
    %202 = arith.mulf %193, %176 : vector<2x64xf32>
    %203 = arith.mulf %187, %195 : vector<2x64xf32>
    %204 = arith.addf %202, %203 : vector<2x64xf32>
    %205 = math.tanh %204 : vector<2x64xf32>
    %206 = arith.mulf %201, %205 : vector<2x64xf32>
    %207 = vector.extract_strided_slice %5 {offsets = [14, 0], sizes = [2, 256], strides = [1, 1]} : vector<16x256xf32> to vector<2x256xf32>
    %cst_41 = arith.constant dense<0.000000e+00> : vector<2x256xf32>
    %208 = tpu.matmul %206, %6, %cst_41 {dimension_numbers = #tpu.dot_dimension_numbers<[1], [0], [0], [1], [0, 0, 1, 1], [], []>} : vector<2x64xf32>, vector<64x256xf32>, vector<2x256xf32> -> vector<2x256xf32>
    %209 = arith.addf %207, %208 : vector<2x256xf32>
    %210 = vector.extract_strided_slice %209 {offsets = [0, 0], sizes = [2, 64], strides = [1, 1]} : vector<2x256xf32> to vector<2x64xf32>
    %211 = arith.negf %210 : vector<2x64xf32>
    %212 = math.exp %211 : vector<2x64xf32>
    %cst_42 = arith.constant 1.000000e+00 : f32
    %213 = vector.broadcast %cst_42 : f32 to vector<2x64xf32>
    %214 = arith.addf %213, %212 : vector<2x64xf32>
    %215 = arith.divf %213, %214 : vector<2x64xf32>
    %216 = vector.extract_strided_slice %209 {offsets = [0, 64], sizes = [2, 64], strides = [1, 1]} : vector<2x256xf32> to vector<2x64xf32>
    %217 = arith.negf %216 : vector<2x64xf32>
    %218 = math.exp %217 : vector<2x64xf32>
    %cst_43 = arith.constant 1.000000e+00 : f32
    %219 = vector.broadcast %cst_43 : f32 to vector<2x64xf32>
    %220 = arith.addf %219, %218 : vector<2x64xf32>
    %221 = arith.divf %219, %220 : vector<2x64xf32>
    %222 = vector.extract_strided_slice %209 {offsets = [0, 128], sizes = [2, 64], strides = [1, 1]} : vector<2x256xf32> to vector<2x64xf32>
    %223 = math.tanh %222 : vector<2x64xf32>
    %224 = vector.extract_strided_slice %209 {offsets = [0, 192], sizes = [2, 64], strides = [1, 1]} : vector<2x256xf32> to vector<2x64xf32>
    %225 = arith.negf %224 : vector<2x64xf32>
    %226 = math.exp %225 : vector<2x64xf32>
    %cst_44 = arith.constant 1.000000e+00 : f32
    %227 = vector.broadcast %cst_44 : f32 to vector<2x64xf32>
    %228 = arith.addf %227, %226 : vector<2x64xf32>
    %229 = arith.divf %227, %228 : vector<2x64xf32>
    %230 = arith.mulf %221, %204 : vector<2x64xf32>
    %231 = arith.mulf %215, %223 : vector<2x64xf32>
    %232 = arith.addf %230, %231 : vector<2x64xf32>
    %233 = math.tanh %232 : vector<2x64xf32>
    %234 = arith.mulf %229, %233 : vector<2x64xf32>
    %235 = tpu.concatenate %38, %66, %94, %122, %150, %178, %206, %234 in 0 : vector<2x64xf32>, vector<2x64xf32>, vector<2x64xf32>, vector<2x64xf32>, vector<2x64xf32>, vector<2x64xf32>, vector<2x64xf32>, vector<2x64xf32> -> vector<16x64xf32>
    %c0_45 = arith.constant 0 : index
    %c0_46 = arith.constant 0 : index
    %236 = vector.load %arg7[%c0_45, %c0_46] : memref<64x256xf32, #tpu.memory_space<vmem>>, vector<64x256xf32>
    %cst_47 = arith.constant dense<0.000000e+00> : vector<16x256xf32>
    %237 = tpu.matmul %235, %236, %cst_47 {dimension_numbers = #tpu.dot_dimension_numbers<[1], [0], [0], [1], [0, 0, 1, 1], [], []>} : vector<16x64xf32>, vector<64x256xf32>, vector<16x256xf32> -> vector<16x256xf32>
    %c0_48 = arith.constant 0 : index
    %c0_49 = arith.constant 0 : index
    %238 = vector.load %arg9[%c0_48, %c0_49] : memref<1x256xf32, #tpu.memory_space<vmem>>, vector<1x256xf32>
    %239 = vector.broadcast %238 : vector<1x256xf32> to vector<16x256xf32>
    %240 = arith.addf %237, %239 : vector<16x256xf32>
    %c0_50 = arith.constant 0 : index
    %c0_51 = arith.constant 0 : index
    %241 = vector.load %arg8[%c0_50, %c0_51] : memref<64x256xf32, #tpu.memory_space<vmem>>, vector<64x256xf32>
    %c1 = arith.constant 1 : index
    %c0_52 = arith.constant 0 : index
    %c0_53 = arith.constant 0 : index
    %242 = vector.load %arg2[%c1, %c0_52, %c0_53] : memref<2x2x64xf32, #tpu.memory_space<vmem>>, vector<1x2x64xf32>
    %243 = vector.shape_cast %242 : vector<1x2x64xf32> to vector<2x64xf32>
    %c1_54 = arith.constant 1 : index
    %c0_55 = arith.constant 0 : index
    %c0_56 = arith.constant 0 : index
    %244 = vector.load %arg3[%c1_54, %c0_55, %c0_56] : memref<2x2x64xf32, #tpu.memory_space<vmem>>, vector<1x2x64xf32>
    %245 = vector.shape_cast %244 : vector<1x2x64xf32> to vector<2x64xf32>
    %246 = vector.extract_strided_slice %240 {offsets = [0, 0], sizes = [2, 256], strides = [1, 1]} : vector<16x256xf32> to vector<2x256xf32>
    %cst_57 = arith.constant dense<0.000000e+00> : vector<2x256xf32>
    %247 = tpu.matmul %243, %241, %cst_57 {dimension_numbers = #tpu.dot_dimension_numbers<[1], [0], [0], [1], [0, 0, 1, 1], [], []>} : vector<2x64xf32>, vector<64x256xf32>, vector<2x256xf32> -> vector<2x256xf32>
    %248 = arith.addf %246, %247 : vector<2x256xf32>
    %249 = vector.extract_strided_slice %248 {offsets = [0, 0], sizes = [2, 64], strides = [1, 1]} : vector<2x256xf32> to vector<2x64xf32>
    %250 = arith.negf %249 : vector<2x64xf32>
    %251 = math.exp %250 : vector<2x64xf32>
    %cst_58 = arith.constant 1.000000e+00 : f32
    %252 = vector.broadcast %cst_58 : f32 to vector<2x64xf32>
    %253 = arith.addf %252, %251 : vector<2x64xf32>
    %254 = arith.divf %252, %253 : vector<2x64xf32>
    %255 = vector.extract_strided_slice %248 {offsets = [0, 64], sizes = [2, 64], strides = [1, 1]} : vector<2x256xf32> to vector<2x64xf32>
    %256 = arith.negf %255 : vector<2x64xf32>
    %257 = math.exp %256 : vector<2x64xf32>
    %cst_59 = arith.constant 1.000000e+00 : f32
    %258 = vector.broadcast %cst_59 : f32 to vector<2x64xf32>
    %259 = arith.addf %258, %257 : vector<2x64xf32>
    %260 = arith.divf %258, %259 : vector<2x64xf32>
    %261 = vector.extract_strided_slice %248 {offsets = [0, 128], sizes = [2, 64], strides = [1, 1]} : vector<2x256xf32> to vector<2x64xf32>
    %262 = math.tanh %261 : vector<2x64xf32>
    %263 = vector.extract_strided_slice %248 {offsets = [0, 192], sizes = [2, 64], strides = [1, 1]} : vector<2x256xf32> to vector<2x64xf32>
    %264 = arith.negf %263 : vector<2x64xf32>
    %265 = math.exp %264 : vector<2x64xf32>
    %cst_60 = arith.constant 1.000000e+00 : f32
    %266 = vector.broadcast %cst_60 : f32 to vector<2x64xf32>
    %267 = arith.addf %266, %265 : vector<2x64xf32>
    %268 = arith.divf %266, %267 : vector<2x64xf32>
    %269 = arith.mulf %260, %245 : vector<2x64xf32>
    %270 = arith.mulf %254, %262 : vector<2x64xf32>
    %271 = arith.addf %269, %270 : vector<2x64xf32>
    %272 = math.tanh %271 : vector<2x64xf32>
    %273 = arith.mulf %268, %272 : vector<2x64xf32>
    %274 = vector.extract_strided_slice %240 {offsets = [2, 0], sizes = [2, 256], strides = [1, 1]} : vector<16x256xf32> to vector<2x256xf32>
    %cst_61 = arith.constant dense<0.000000e+00> : vector<2x256xf32>
    %275 = tpu.matmul %273, %241, %cst_61 {dimension_numbers = #tpu.dot_dimension_numbers<[1], [0], [0], [1], [0, 0, 1, 1], [], []>} : vector<2x64xf32>, vector<64x256xf32>, vector<2x256xf32> -> vector<2x256xf32>
    %276 = arith.addf %274, %275 : vector<2x256xf32>
    %277 = vector.extract_strided_slice %276 {offsets = [0, 0], sizes = [2, 64], strides = [1, 1]} : vector<2x256xf32> to vector<2x64xf32>
    %278 = arith.negf %277 : vector<2x64xf32>
    %279 = math.exp %278 : vector<2x64xf32>
    %cst_62 = arith.constant 1.000000e+00 : f32
    %280 = vector.broadcast %cst_62 : f32 to vector<2x64xf32>
    %281 = arith.addf %280, %279 : vector<2x64xf32>
    %282 = arith.divf %280, %281 : vector<2x64xf32>
    %283 = vector.extract_strided_slice %276 {offsets = [0, 64], sizes = [2, 64], strides = [1, 1]} : vector<2x256xf32> to vector<2x64xf32>
    %284 = arith.negf %283 : vector<2x64xf32>
    %285 = math.exp %284 : vector<2x64xf32>
    %cst_63 = arith.constant 1.000000e+00 : f32
    %286 = vector.broadcast %cst_63 : f32 to vector<2x64xf32>
    %287 = arith.addf %286, %285 : vector<2x64xf32>
    %288 = arith.divf %286, %287 : vector<2x64xf32>
    %289 = vector.extract_strided_slice %276 {offsets = [0, 128], sizes = [2, 64], strides = [1, 1]} : vector<2x256xf32> to vector<2x64xf32>
    %290 = math.tanh %289 : vector<2x64xf32>
    %291 = vector.extract_strided_slice %276 {offsets = [0, 192], sizes = [2, 64], strides = [1, 1]} : vector<2x256xf32> to vector<2x64xf32>
    %292 = arith.negf %291 : vector<2x64xf32>
    %293 = math.exp %292 : vector<2x64xf32>
    %cst_64 = arith.constant 1.000000e+00 : f32
    %294 = vector.broadcast %cst_64 : f32 to vector<2x64xf32>
    %295 = arith.addf %294, %293 : vector<2x64xf32>
    %296 = arith.divf %294, %295 : vector<2x64xf32>
    %297 = arith.mulf %288, %271 : vector<2x64xf32>
    %298 = arith.mulf %282, %290 : vector<2x64xf32>
    %299 = arith.addf %297, %298 : vector<2x64xf32>
    %300 = math.tanh %299 : vector<2x64xf32>
    %301 = arith.mulf %296, %300 : vector<2x64xf32>
    %302 = vector.extract_strided_slice %240 {offsets = [4, 0], sizes = [2, 256], strides = [1, 1]} : vector<16x256xf32> to vector<2x256xf32>
    %cst_65 = arith.constant dense<0.000000e+00> : vector<2x256xf32>
    %303 = tpu.matmul %301, %241, %cst_65 {dimension_numbers = #tpu.dot_dimension_numbers<[1], [0], [0], [1], [0, 0, 1, 1], [], []>} : vector<2x64xf32>, vector<64x256xf32>, vector<2x256xf32> -> vector<2x256xf32>
    %304 = arith.addf %302, %303 : vector<2x256xf32>
    %305 = vector.extract_strided_slice %304 {offsets = [0, 0], sizes = [2, 64], strides = [1, 1]} : vector<2x256xf32> to vector<2x64xf32>
    %306 = arith.negf %305 : vector<2x64xf32>
    %307 = math.exp %306 : vector<2x64xf32>
    %cst_66 = arith.constant 1.000000e+00 : f32
    %308 = vector.broadcast %cst_66 : f32 to vector<2x64xf32>
    %309 = arith.addf %308, %307 : vector<2x64xf32>
    %310 = arith.divf %308, %309 : vector<2x64xf32>
    %311 = vector.extract_strided_slice %304 {offsets = [0, 64], sizes = [2, 64], strides = [1, 1]} : vector<2x256xf32> to vector<2x64xf32>
    %312 = arith.negf %311 : vector<2x64xf32>
    %313 = math.exp %312 : vector<2x64xf32>
    %cst_67 = arith.constant 1.000000e+00 : f32
    %314 = vector.broadcast %cst_67 : f32 to vector<2x64xf32>
    %315 = arith.addf %314, %313 : vector<2x64xf32>
    %316 = arith.divf %314, %315 : vector<2x64xf32>
    %317 = vector.extract_strided_slice %304 {offsets = [0, 128], sizes = [2, 64], strides = [1, 1]} : vector<2x256xf32> to vector<2x64xf32>
    %318 = math.tanh %317 : vector<2x64xf32>
    %319 = vector.extract_strided_slice %304 {offsets = [0, 192], sizes = [2, 64], strides = [1, 1]} : vector<2x256xf32> to vector<2x64xf32>
    %320 = arith.negf %319 : vector<2x64xf32>
    %321 = math.exp %320 : vector<2x64xf32>
    %cst_68 = arith.constant 1.000000e+00 : f32
    %322 = vector.broadcast %cst_68 : f32 to vector<2x64xf32>
    %323 = arith.addf %322, %321 : vector<2x64xf32>
    %324 = arith.divf %322, %323 : vector<2x64xf32>
    %325 = arith.mulf %316, %299 : vector<2x64xf32>
    %326 = arith.mulf %310, %318 : vector<2x64xf32>
    %327 = arith.addf %325, %326 : vector<2x64xf32>
    %328 = math.tanh %327 : vector<2x64xf32>
    %329 = arith.mulf %324, %328 : vector<2x64xf32>
    %330 = vector.extract_strided_slice %240 {offsets = [6, 0], sizes = [2, 256], strides = [1, 1]} : vector<16x256xf32> to vector<2x256xf32>
    %cst_69 = arith.constant dense<0.000000e+00> : vector<2x256xf32>
    %331 = tpu.matmul %329, %241, %cst_69 {dimension_numbers = #tpu.dot_dimension_numbers<[1], [0], [0], [1], [0, 0, 1, 1], [], []>} : vector<2x64xf32>, vector<64x256xf32>, vector<2x256xf32> -> vector<2x256xf32>
    %332 = arith.addf %330, %331 : vector<2x256xf32>
    %333 = vector.extract_strided_slice %332 {offsets = [0, 0], sizes = [2, 64], strides = [1, 1]} : vector<2x256xf32> to vector<2x64xf32>
    %334 = arith.negf %333 : vector<2x64xf32>
    %335 = math.exp %334 : vector<2x64xf32>
    %cst_70 = arith.constant 1.000000e+00 : f32
    %336 = vector.broadcast %cst_70 : f32 to vector<2x64xf32>
    %337 = arith.addf %336, %335 : vector<2x64xf32>
    %338 = arith.divf %336, %337 : vector<2x64xf32>
    %339 = vector.extract_strided_slice %332 {offsets = [0, 64], sizes = [2, 64], strides = [1, 1]} : vector<2x256xf32> to vector<2x64xf32>
    %340 = arith.negf %339 : vector<2x64xf32>
    %341 = math.exp %340 : vector<2x64xf32>
    %cst_71 = arith.constant 1.000000e+00 : f32
    %342 = vector.broadcast %cst_71 : f32 to vector<2x64xf32>
    %343 = arith.addf %342, %341 : vector<2x64xf32>
    %344 = arith.divf %342, %343 : vector<2x64xf32>
    %345 = vector.extract_strided_slice %332 {offsets = [0, 128], sizes = [2, 64], strides = [1, 1]} : vector<2x256xf32> to vector<2x64xf32>
    %346 = math.tanh %345 : vector<2x64xf32>
    %347 = vector.extract_strided_slice %332 {offsets = [0, 192], sizes = [2, 64], strides = [1, 1]} : vector<2x256xf32> to vector<2x64xf32>
    %348 = arith.negf %347 : vector<2x64xf32>
    %349 = math.exp %348 : vector<2x64xf32>
    %cst_72 = arith.constant 1.000000e+00 : f32
    %350 = vector.broadcast %cst_72 : f32 to vector<2x64xf32>
    %351 = arith.addf %350, %349 : vector<2x64xf32>
    %352 = arith.divf %350, %351 : vector<2x64xf32>
    %353 = arith.mulf %344, %327 : vector<2x64xf32>
    %354 = arith.mulf %338, %346 : vector<2x64xf32>
    %355 = arith.addf %353, %354 : vector<2x64xf32>
    %356 = math.tanh %355 : vector<2x64xf32>
    %357 = arith.mulf %352, %356 : vector<2x64xf32>
    %358 = vector.extract_strided_slice %240 {offsets = [8, 0], sizes = [2, 256], strides = [1, 1]} : vector<16x256xf32> to vector<2x256xf32>
    %cst_73 = arith.constant dense<0.000000e+00> : vector<2x256xf32>
    %359 = tpu.matmul %357, %241, %cst_73 {dimension_numbers = #tpu.dot_dimension_numbers<[1], [0], [0], [1], [0, 0, 1, 1], [], []>} : vector<2x64xf32>, vector<64x256xf32>, vector<2x256xf32> -> vector<2x256xf32>
    %360 = arith.addf %358, %359 : vector<2x256xf32>
    %361 = vector.extract_strided_slice %360 {offsets = [0, 0], sizes = [2, 64], strides = [1, 1]} : vector<2x256xf32> to vector<2x64xf32>
    %362 = arith.negf %361 : vector<2x64xf32>
    %363 = math.exp %362 : vector<2x64xf32>
    %cst_74 = arith.constant 1.000000e+00 : f32
    %364 = vector.broadcast %cst_74 : f32 to vector<2x64xf32>
    %365 = arith.addf %364, %363 : vector<2x64xf32>
    %366 = arith.divf %364, %365 : vector<2x64xf32>
    %367 = vector.extract_strided_slice %360 {offsets = [0, 64], sizes = [2, 64], strides = [1, 1]} : vector<2x256xf32> to vector<2x64xf32>
    %368 = arith.negf %367 : vector<2x64xf32>
    %369 = math.exp %368 : vector<2x64xf32>
    %cst_75 = arith.constant 1.000000e+00 : f32
    %370 = vector.broadcast %cst_75 : f32 to vector<2x64xf32>
    %371 = arith.addf %370, %369 : vector<2x64xf32>
    %372 = arith.divf %370, %371 : vector<2x64xf32>
    %373 = vector.extract_strided_slice %360 {offsets = [0, 128], sizes = [2, 64], strides = [1, 1]} : vector<2x256xf32> to vector<2x64xf32>
    %374 = math.tanh %373 : vector<2x64xf32>
    %375 = vector.extract_strided_slice %360 {offsets = [0, 192], sizes = [2, 64], strides = [1, 1]} : vector<2x256xf32> to vector<2x64xf32>
    %376 = arith.negf %375 : vector<2x64xf32>
    %377 = math.exp %376 : vector<2x64xf32>
    %cst_76 = arith.constant 1.000000e+00 : f32
    %378 = vector.broadcast %cst_76 : f32 to vector<2x64xf32>
    %379 = arith.addf %378, %377 : vector<2x64xf32>
    %380 = arith.divf %378, %379 : vector<2x64xf32>
    %381 = arith.mulf %372, %355 : vector<2x64xf32>
    %382 = arith.mulf %366, %374 : vector<2x64xf32>
    %383 = arith.addf %381, %382 : vector<2x64xf32>
    %384 = math.tanh %383 : vector<2x64xf32>
    %385 = arith.mulf %380, %384 : vector<2x64xf32>
    %386 = vector.extract_strided_slice %240 {offsets = [10, 0], sizes = [2, 256], strides = [1, 1]} : vector<16x256xf32> to vector<2x256xf32>
    %cst_77 = arith.constant dense<0.000000e+00> : vector<2x256xf32>
    %387 = tpu.matmul %385, %241, %cst_77 {dimension_numbers = #tpu.dot_dimension_numbers<[1], [0], [0], [1], [0, 0, 1, 1], [], []>} : vector<2x64xf32>, vector<64x256xf32>, vector<2x256xf32> -> vector<2x256xf32>
    %388 = arith.addf %386, %387 : vector<2x256xf32>
    %389 = vector.extract_strided_slice %388 {offsets = [0, 0], sizes = [2, 64], strides = [1, 1]} : vector<2x256xf32> to vector<2x64xf32>
    %390 = arith.negf %389 : vector<2x64xf32>
    %391 = math.exp %390 : vector<2x64xf32>
    %cst_78 = arith.constant 1.000000e+00 : f32
    %392 = vector.broadcast %cst_78 : f32 to vector<2x64xf32>
    %393 = arith.addf %392, %391 : vector<2x64xf32>
    %394 = arith.divf %392, %393 : vector<2x64xf32>
    %395 = vector.extract_strided_slice %388 {offsets = [0, 64], sizes = [2, 64], strides = [1, 1]} : vector<2x256xf32> to vector<2x64xf32>
    %396 = arith.negf %395 : vector<2x64xf32>
    %397 = math.exp %396 : vector<2x64xf32>
    %cst_79 = arith.constant 1.000000e+00 : f32
    %398 = vector.broadcast %cst_79 : f32 to vector<2x64xf32>
    %399 = arith.addf %398, %397 : vector<2x64xf32>
    %400 = arith.divf %398, %399 : vector<2x64xf32>
    %401 = vector.extract_strided_slice %388 {offsets = [0, 128], sizes = [2, 64], strides = [1, 1]} : vector<2x256xf32> to vector<2x64xf32>
    %402 = math.tanh %401 : vector<2x64xf32>
    %403 = vector.extract_strided_slice %388 {offsets = [0, 192], sizes = [2, 64], strides = [1, 1]} : vector<2x256xf32> to vector<2x64xf32>
    %404 = arith.negf %403 : vector<2x64xf32>
    %405 = math.exp %404 : vector<2x64xf32>
    %cst_80 = arith.constant 1.000000e+00 : f32
    %406 = vector.broadcast %cst_80 : f32 to vector<2x64xf32>
    %407 = arith.addf %406, %405 : vector<2x64xf32>
    %408 = arith.divf %406, %407 : vector<2x64xf32>
    %409 = arith.mulf %400, %383 : vector<2x64xf32>
    %410 = arith.mulf %394, %402 : vector<2x64xf32>
    %411 = arith.addf %409, %410 : vector<2x64xf32>
    %412 = math.tanh %411 : vector<2x64xf32>
    %413 = arith.mulf %408, %412 : vector<2x64xf32>
    %414 = vector.extract_strided_slice %240 {offsets = [12, 0], sizes = [2, 256], strides = [1, 1]} : vector<16x256xf32> to vector<2x256xf32>
    %cst_81 = arith.constant dense<0.000000e+00> : vector<2x256xf32>
    %415 = tpu.matmul %413, %241, %cst_81 {dimension_numbers = #tpu.dot_dimension_numbers<[1], [0], [0], [1], [0, 0, 1, 1], [], []>} : vector<2x64xf32>, vector<64x256xf32>, vector<2x256xf32> -> vector<2x256xf32>
    %416 = arith.addf %414, %415 : vector<2x256xf32>
    %417 = vector.extract_strided_slice %416 {offsets = [0, 0], sizes = [2, 64], strides = [1, 1]} : vector<2x256xf32> to vector<2x64xf32>
    %418 = arith.negf %417 : vector<2x64xf32>
    %419 = math.exp %418 : vector<2x64xf32>
    %cst_82 = arith.constant 1.000000e+00 : f32
    %420 = vector.broadcast %cst_82 : f32 to vector<2x64xf32>
    %421 = arith.addf %420, %419 : vector<2x64xf32>
    %422 = arith.divf %420, %421 : vector<2x64xf32>
    %423 = vector.extract_strided_slice %416 {offsets = [0, 64], sizes = [2, 64], strides = [1, 1]} : vector<2x256xf32> to vector<2x64xf32>
    %424 = arith.negf %423 : vector<2x64xf32>
    %425 = math.exp %424 : vector<2x64xf32>
    %cst_83 = arith.constant 1.000000e+00 : f32
    %426 = vector.broadcast %cst_83 : f32 to vector<2x64xf32>
    %427 = arith.addf %426, %425 : vector<2x64xf32>
    %428 = arith.divf %426, %427 : vector<2x64xf32>
    %429 = vector.extract_strided_slice %416 {offsets = [0, 128], sizes = [2, 64], strides = [1, 1]} : vector<2x256xf32> to vector<2x64xf32>
    %430 = math.tanh %429 : vector<2x64xf32>
    %431 = vector.extract_strided_slice %416 {offsets = [0, 192], sizes = [2, 64], strides = [1, 1]} : vector<2x256xf32> to vector<2x64xf32>
    %432 = arith.negf %431 : vector<2x64xf32>
    %433 = math.exp %432 : vector<2x64xf32>
    %cst_84 = arith.constant 1.000000e+00 : f32
    %434 = vector.broadcast %cst_84 : f32 to vector<2x64xf32>
    %435 = arith.addf %434, %433 : vector<2x64xf32>
    %436 = arith.divf %434, %435 : vector<2x64xf32>
    %437 = arith.mulf %428, %411 : vector<2x64xf32>
    %438 = arith.mulf %422, %430 : vector<2x64xf32>
    %439 = arith.addf %437, %438 : vector<2x64xf32>
    %440 = math.tanh %439 : vector<2x64xf32>
    %441 = arith.mulf %436, %440 : vector<2x64xf32>
    %442 = vector.extract_strided_slice %240 {offsets = [14, 0], sizes = [2, 256], strides = [1, 1]} : vector<16x256xf32> to vector<2x256xf32>
    %cst_85 = arith.constant dense<0.000000e+00> : vector<2x256xf32>
    %443 = tpu.matmul %441, %241, %cst_85 {dimension_numbers = #tpu.dot_dimension_numbers<[1], [0], [0], [1], [0, 0, 1, 1], [], []>} : vector<2x64xf32>, vector<64x256xf32>, vector<2x256xf32> -> vector<2x256xf32>
    %444 = arith.addf %442, %443 : vector<2x256xf32>
    %445 = vector.extract_strided_slice %444 {offsets = [0, 0], sizes = [2, 64], strides = [1, 1]} : vector<2x256xf32> to vector<2x64xf32>
    %446 = arith.negf %445 : vector<2x64xf32>
    %447 = math.exp %446 : vector<2x64xf32>
    %cst_86 = arith.constant 1.000000e+00 : f32
    %448 = vector.broadcast %cst_86 : f32 to vector<2x64xf32>
    %449 = arith.addf %448, %447 : vector<2x64xf32>
    %450 = arith.divf %448, %449 : vector<2x64xf32>
    %451 = vector.extract_strided_slice %444 {offsets = [0, 64], sizes = [2, 64], strides = [1, 1]} : vector<2x256xf32> to vector<2x64xf32>
    %452 = arith.negf %451 : vector<2x64xf32>
    %453 = math.exp %452 : vector<2x64xf32>
    %cst_87 = arith.constant 1.000000e+00 : f32
    %454 = vector.broadcast %cst_87 : f32 to vector<2x64xf32>
    %455 = arith.addf %454, %453 : vector<2x64xf32>
    %456 = arith.divf %454, %455 : vector<2x64xf32>
    %457 = vector.extract_strided_slice %444 {offsets = [0, 128], sizes = [2, 64], strides = [1, 1]} : vector<2x256xf32> to vector<2x64xf32>
    %458 = math.tanh %457 : vector<2x64xf32>
    %459 = vector.extract_strided_slice %444 {offsets = [0, 192], sizes = [2, 64], strides = [1, 1]} : vector<2x256xf32> to vector<2x64xf32>
    %460 = arith.negf %459 : vector<2x64xf32>
    %461 = math.exp %460 : vector<2x64xf32>
    %cst_88 = arith.constant 1.000000e+00 : f32
    %462 = vector.broadcast %cst_88 : f32 to vector<2x64xf32>
    %463 = arith.addf %462, %461 : vector<2x64xf32>
    %464 = arith.divf %462, %463 : vector<2x64xf32>
    %465 = arith.mulf %456, %439 : vector<2x64xf32>
    %466 = arith.mulf %450, %458 : vector<2x64xf32>
    %467 = arith.addf %465, %466 : vector<2x64xf32>
    %468 = math.tanh %467 : vector<2x64xf32>
    %469 = arith.mulf %464, %468 : vector<2x64xf32>
    %c0_89 = arith.constant 0 : index
    %c0_90 = arith.constant 0 : index
    %470 = vector.load %arg11[%c0_89, %c0_90] : memref<64x32xf32, #tpu.memory_space<vmem>>, vector<64x32xf32>
    %cst_91 = arith.constant dense<0.000000e+00> : vector<2x32xf32>
    %471 = tpu.matmul %469, %470, %cst_91 {dimension_numbers = #tpu.dot_dimension_numbers<[1], [0], [0], [1], [0, 0, 1, 1], [], []>} : vector<2x64xf32>, vector<64x32xf32>, vector<2x32xf32> -> vector<2x32xf32>
    %c0_92 = arith.constant 0 : index
    %c0_93 = arith.constant 0 : index
    %472 = vector.load %arg10[%c0_92, %c0_93] : memref<2x27xf32, #tpu.memory_space<vmem>>, vector<2x27xf32>
    %c0_94 = arith.constant 0 : index
    %c0_95 = arith.constant 0 : index
    %473 = vector.load %arg12[%c0_94, %c0_95] : memref<27x32xf32, #tpu.memory_space<vmem>>, vector<27x32xf32>
    %cst_96 = arith.constant dense<0.000000e+00> : vector<2x32xf32>
    %474 = tpu.matmul %472, %473, %cst_96 {dimension_numbers = #tpu.dot_dimension_numbers<[1], [0], [0], [1], [0, 0, 1, 1], [], []>} : vector<2x27xf32>, vector<27x32xf32>, vector<2x32xf32> -> vector<2x32xf32>
    %475 = arith.addf %471, %474 : vector<2x32xf32>
    %c0_97 = arith.constant 0 : index
    %c0_98 = arith.constant 0 : index
    %476 = vector.load %arg13[%c0_97, %c0_98] : memref<1x32xf32, #tpu.memory_space<vmem>>, vector<1x32xf32>
    %477 = vector.broadcast %476 : vector<1x32xf32> to vector<2x32xf32>
    %478 = arith.addf %475, %477 : vector<2x32xf32>
    %c0_99 = arith.constant 0 : index
    %c0_100 = arith.constant 0 : index
    %479 = vector.load %arg14[%c0_99, %c0_100] : memref<32x16xf32, #tpu.memory_space<vmem>>, vector<32x16xf32>
    %cst_101 = arith.constant dense<0.000000e+00> : vector<2x16xf32>
    %480 = tpu.matmul %478, %479, %cst_101 {dimension_numbers = #tpu.dot_dimension_numbers<[1], [0], [0], [1], [0, 0, 1, 1], [], []>} : vector<2x32xf32>, vector<32x16xf32>, vector<2x16xf32> -> vector<2x16xf32>
    %c0_102 = arith.constant 0 : index
    %c0_103 = arith.constant 0 : index
    %481 = vector.load %arg15[%c0_102, %c0_103] : memref<1x16xf32, #tpu.memory_space<vmem>>, vector<1x16xf32>
    %482 = vector.broadcast %481 : vector<1x16xf32> to vector<2x16xf32>
    %483 = arith.addf %480, %482 : vector<2x16xf32>
    %c0_104 = arith.constant 0 : index
    %c0_105 = arith.constant 0 : index
    %484 = vector.load %arg16[%c0_104, %c0_105] : memref<16x128xf32, #tpu.memory_space<vmem>>, vector<16x128xf32>
    %cst_106 = arith.constant dense<0.000000e+00> : vector<2x128xf32>
    %485 = tpu.matmul %483, %484, %cst_106 {dimension_numbers = #tpu.dot_dimension_numbers<[1], [0], [0], [1], [0, 0, 1, 1], [], []>} : vector<2x16xf32>, vector<16x128xf32>, vector<2x128xf32> -> vector<2x128xf32>
    %c0_107 = arith.constant 0 : index
    %c0_108 = arith.constant 0 : index
    %486 = vector.load %arg17[%c0_107, %c0_108] : memref<1x128xf32, #tpu.memory_space<vmem>>, vector<1x128xf32>
    %487 = vector.broadcast %486 : vector<1x128xf32> to vector<2x128xf32>
    %488 = arith.addf %485, %487 : vector<2x128xf32>
    %489 = tpu.iota {dimensions = array<i32: 1>} : vector<2x128xi32>
    %c7_i32 = arith.constant 7 : i32
    %490 = vector.broadcast %c7_i32 : i32 to vector<2x128xi32>
    %491 = arith.cmpi slt, %489, %490 : vector<2x128xi32>
    %c7_i32_109 = arith.constant 7 : i32
    %492 = vector.broadcast %c7_i32_109 : i32 to vector<2x128xi32>
    %493 = arith.cmpi sge, %489, %492 : vector<2x128xi32>
    %c9_i32 = arith.constant 9 : i32
    %494 = vector.broadcast %c9_i32 : i32 to vector<2x128xi32>
    %495 = arith.cmpi slt, %489, %494 : vector<2x128xi32>
    %496 = arith.andi %493, %495 : vector<2x128xi1>
    %cst_110 = arith.constant 0.000000e+00 : f32
    %497 = vector.broadcast %cst_110 : f32 to vector<2x128xf32>
    %498 = arith.select %491, %488, %497 : vector<2x128xi1>, vector<2x128xf32>
    %499 = vector.shape_cast %498 : vector<2x128xf32> to vector<1x2x128xf32>
    %cst_111 = arith.constant dense<0.000000e+00> : vector<1xf32>
    %500 = vector.multi_reduction <add>, %499, %cst_111 [1, 2] : vector<1x2x128xf32> to vector<1xf32>
    %501 = vector.shape_cast %500 : vector<1xf32> to vector<1x1x1xf32>
    %502 = vector.extract %501[0, 0, 0] : f32 from vector<1x1x1xf32>
    %cst_112 = arith.constant 1.400000e+01 : f32
    %503 = arith.divf %502, %cst_112 : f32
    %504 = arith.select %496, %488, %497 : vector<2x128xi1>, vector<2x128xf32>
    %505 = vector.shape_cast %504 : vector<2x128xf32> to vector<1x2x128xf32>
    %cst_113 = arith.constant dense<0.000000e+00> : vector<1xf32>
    %506 = vector.multi_reduction <add>, %505, %cst_113 [1, 2] : vector<1x2x128xf32> to vector<1xf32>
    %507 = vector.shape_cast %506 : vector<1xf32> to vector<1x1x1xf32>
    %508 = vector.extract %507[0, 0, 0] : f32 from vector<1x1x1xf32>
    %cst_114 = arith.constant 4.000000e+00 : f32
    %509 = arith.divf %508, %cst_114 : f32
    %510 = vector.broadcast %503 : f32 to vector<2x128xf32>
    %511 = vector.broadcast %509 : f32 to vector<2x128xf32>
    %512 = arith.select %491, %510, %511 : vector<2x128xi1>, vector<2x128xf32>
    %513 = arith.subf %488, %512 : vector<2x128xf32>
    %514 = arith.mulf %513, %513 : vector<2x128xf32>
    %515 = arith.select %491, %514, %497 : vector<2x128xi1>, vector<2x128xf32>
    %516 = vector.shape_cast %515 : vector<2x128xf32> to vector<1x2x128xf32>
    %cst_115 = arith.constant dense<0.000000e+00> : vector<1xf32>
    %517 = vector.multi_reduction <add>, %516, %cst_115 [1, 2] : vector<1x2x128xf32> to vector<1xf32>
    %518 = vector.shape_cast %517 : vector<1xf32> to vector<1x1x1xf32>
    %519 = vector.extract %518[0, 0, 0] : f32 from vector<1x1x1xf32>
    %cst_116 = arith.constant 1.400000e+01 : f32
    %520 = arith.divf %519, %cst_116 : f32
    %521 = arith.select %496, %514, %497 : vector<2x128xi1>, vector<2x128xf32>
    %522 = vector.shape_cast %521 : vector<2x128xf32> to vector<1x2x128xf32>
    %cst_117 = arith.constant dense<0.000000e+00> : vector<1xf32>
    %523 = vector.multi_reduction <add>, %522, %cst_117 [1, 2] : vector<1x2x128xf32> to vector<1xf32>
    %524 = vector.shape_cast %523 : vector<1xf32> to vector<1x1x1xf32>
    %525 = vector.extract %524[0, 0, 0] : f32 from vector<1x1x1xf32>
    %cst_118 = arith.constant 4.000000e+00 : f32
    %526 = arith.divf %525, %cst_118 : f32
    %cst_119 = arith.constant 9.99999974E-6 : f32
    %527 = arith.addf %520, %cst_119 : f32
    %528 = math.rsqrt %527 : f32
    %cst_120 = arith.constant 9.99999974E-6 : f32
    %529 = arith.addf %526, %cst_120 : f32
    %530 = math.rsqrt %529 : f32
    %531 = vector.broadcast %528 : f32 to vector<2x128xf32>
    %532 = vector.broadcast %530 : f32 to vector<2x128xf32>
    %533 = arith.select %491, %531, %532 : vector<2x128xi1>, vector<2x128xf32>
    %534 = arith.mulf %513, %533 : vector<2x128xf32>
    %c0_121 = arith.constant 0 : index
    %c0_122 = arith.constant 0 : index
    %535 = vector.load %arg18[%c0_121, %c0_122] : memref<2x128xf32, #tpu.memory_space<vmem>>, vector<2x128xf32>
    tpu.vector_store %arg18[%c0_121, %c0_122], %534 {strides = array<i32>} : memref<2x128xf32, #tpu.memory_space<vmem>>, vector<2x128xf32>,
    return
  }
  func.func @transform_0(%arg0: i32) -> (i32, i32) {
    %c0_i32 = arith.constant 0 : i32
    %c0_i32_0 = arith.constant 0 : i32
    %c0_i32_1 = arith.constant 0 : i32
    return %c0_i32, %c0_i32_0 : i32, i32
  }
  func.func @transform_1(%arg0: i32) -> (i32, i32, i32) {
    %c0_i32 = arith.constant 0 : i32
    %c0_i32_0 = arith.constant 0 : i32
    %c0_i32_1 = arith.constant 0 : i32
    %c0_i32_2 = arith.constant 0 : i32
    return %c0_i32, %c0_i32_0, %c0_i32_1 : i32, i32, i32
  }
  func.func @transform_2(%arg0: i32) -> (i32, i32, i32) {
    %c0_i32 = arith.constant 0 : i32
    %c0_i32_0 = arith.constant 0 : i32
    %c0_i32_1 = arith.constant 0 : i32
    %c0_i32_2 = arith.constant 0 : i32
    return %c0_i32, %c0_i32_0, %c0_i32_1 : i32, i32, i32
  }
  func.func @transform_3(%arg0: i32) -> (i32, i32) {
    %c0_i32 = arith.constant 0 : i32
    %c0_i32_0 = arith.constant 0 : i32
    %c0_i32_1 = arith.constant 0 : i32
    return %c0_i32, %c0_i32_0 : i32, i32
  }
  func.func @transform_4(%arg0: i32) -> (i32, i32) {
    %c0_i32 = arith.constant 0 : i32
    %c0_i32_0 = arith.constant 0 : i32
    %c0_i32_1 = arith.constant 0 : i32
    return %c0_i32, %c0_i32_0 : i32, i32
  }
  func.func @transform_5(%arg0: i32) -> (i32, i32) {
    %c0_i32 = arith.constant 0 : i32
    %c0_i32_0 = arith.constant 0 : i32
    %c0_i32_1 = arith.constant 0 : i32
    return %c0_i32, %c0_i32_0 : i32, i32
  }
  func.func @transform_6(%arg0: i32) -> (i32, i32) {
    %c0_i32 = arith.constant 0 : i32
    %c0_i32_0 = arith.constant 0 : i32
    %c0_i32_1 = arith.constant 0 : i32
    return %c0_i32, %c0_i32_0 : i32, i32
  }
  func.func @transform_7(%arg0: i32) -> (i32, i32) {
    %c0_i32 = arith.constant 0 : i32
    %c0_i32_0 = arith.constant 0 : i32
    %c0_i32_1 = arith.constant 0 : i32
    return %c0_i32, %c0_i32_0 : i32, i32
  }
  func.func @transform_8(%arg0: i32) -> (i32, i32) {
    %c0_i32 = arith.constant 0 : i32
    %c0_i32_0 = arith.constant 0 : i32
    %c0_i32_1 = arith.constant 0 : i32
    return %c0_i32, %c0_i32_0 : i32, i32
  }
  func.func @transform_9(%arg0: i32) -> (i32, i32) {
    %c0_i32 = arith.constant 0 : i32
    %c0_i32_0 = arith.constant 0 : i32
    %c0_i32_1 = arith.constant 0 : i32
    return %c0_i32, %c0_i32_0 : i32, i32
  }
  func.func @transform_10(%arg0: i32) -> (i32, i32) {
    %c0_i32 = arith.constant 0 : i32
    %c0_i32_0 = arith.constant 0 : i32
    %c0_i32_1 = arith.constant 0 : i32
    return %c0_i32, %c0_i32_0 : i32, i32
  }
  func.func @transform_11(%arg0: i32) -> (i32, i32) {
    %c0_i32 = arith.constant 0 : i32
    %c0_i32_0 = arith.constant 0 : i32
    %c0_i32_1 = arith.constant 0 : i32
    return %c0_i32, %c0_i32_0 : i32, i32
  }
  func.func @transform_12(%arg0: i32) -> (i32, i32) {
    %c0_i32 = arith.constant 0 : i32
    %c0_i32_0 = arith.constant 0 : i32
    %c0_i32_1 = arith.constant 0 : i32
    return %c0_i32, %c0_i32_0 : i32, i32
  }
  func.func @transform_13(%arg0: i32) -> (i32, i32) {
    %c0_i32 = arith.constant 0 : i32
    %c0_i32_0 = arith.constant 0 : i32
    %c0_i32_1 = arith.constant 0 : i32
    return %c0_i32, %c0_i32_0 : i32, i32
  }
  func.func @transform_14(%arg0: i32) -> (i32, i32) {
    %c0_i32 = arith.constant 0 : i32
    %c0_i32_0 = arith.constant 0 : i32
    %c0_i32_1 = arith.constant 0 : i32
    return %c0_i32, %c0_i32_0 : i32, i32
  }
  func.func @transform_15(%arg0: i32) -> (i32, i32) {
    %c0_i32 = arith.constant 0 : i32
    %c0_i32_0 = arith.constant 0 : i32
    %c0_i32_1 = arith.constant 0 : i32
    return %c0_i32, %c0_i32_0 : i32, i32
  }
  func.func @transform_16(%arg0: i32) -> (i32, i32) {
    %c0_i32 = arith.constant 0 : i32
    %c0_i32_0 = arith.constant 0 : i32
    %c0_i32_1 = arith.constant 0 : i32
    return %c0_i32, %c0_i32_0 : i32, i32
  }
  func.func @transform_17(%arg0: i32) -> (i32, i32) {
    %c0_i32 = arith.constant 0 : i32
    %c0_i32_0 = arith.constant 0 : i32
    %c0_i32_1 = arith.constant 0 : i32
    return %c0_i32, %c0_i32_0 : i32, i32
  }
}

</mosaic_0001>

<llo_original>
// kernel: lstm_forward.1
$region0: #{lstm_forward.1}
  #allocation0 [shape = 'u32[]', space=smem, size = 0x4, offset = 0x4, fixed_abs, tag = 'smem constant byte address 0x4 - core index']
  #allocation1 [shape = 'u32[144,128]{1,0:T(1,128)}', space=vmem, size = 0x12000, scoped, tag = 'internal scratch']
  %s0 = inlined_call_operand.vmem [shape: f32[16,22], index: 0, kind: input, shape index: {}]
  %s1 = inlined_call_operand.hbm [shape: f32[2,2,64], index: 1, kind: input, shape index: {}]
  %s2 = inlined_call_operand.hbm [shape: f32[2,2,64], index: 2, kind: input, shape index: {}]
  %s3 = inlined_call_operand.vmem [shape: f32[22,256], index: 3, kind: input, shape index: {}]
  %s4 = inlined_call_operand.vmem [shape: f32[64,256], index: 4, kind: input, shape index: {}]
  %s5 = inlined_call_operand.hbm [shape: f32[1,256], index: 5, kind: input, shape index: {}]
  %s6 = inlined_call_operand.hbm [shape: f32[64,256], index: 6, kind: input, shape index: {}]
  %s7 = inlined_call_operand.hbm [shape: f32[64,256], index: 7, kind: input, shape index: {}]
  %s8 = inlined_call_operand.hbm [shape: f32[1,256], index: 8, kind: input, shape index: {}]
  %s9 = inlined_call_operand.hbm [shape: f32[2,27], index: 9, kind: input, shape index: {}]
  %s10 = inlined_call_operand.vmem [shape: f32[64,32], index: 10, kind: input, shape index: {}]
  %s11 = inlined_call_operand.hbm [shape: f32[27,32], index: 11, kind: input, shape index: {}]
  %s12 = inlined_call_operand.hbm [shape: f32[1,32], index: 12, kind: input, shape index: {}]
  %s13 = inlined_call_operand.vmem [shape: f32[32,16], index: 13, kind: input, shape index: {}]
  %s14 = inlined_call_operand.hbm [shape: f32[1,16], index: 14, kind: input, shape index: {}]
  %s15 = inlined_call_operand.vmem [shape: f32[16,128], index: 15, kind: input, shape index: {}]
  %s16 = inlined_call_operand.vmem [shape: f32[1,128], index: 16, kind: input, shape index: {}]
  %s17 = inlined_call_operand.vmem [shape: f32[2,128], index: 17, kind: output, shape index: {}]
  %s18 = sld [smem:[#allocation0]]
  $region118: #{lstm_forward.1} parent=0
    _
  %s20 = ssub.s32 1, %s18
  %s21 = scalar_select 0, %s20, %s18
  $region1: #{lstm_forward.1} parent=0
    #allocation2 [shape = 'u8[2048]{0}', space=vmem, size = 0x800, scoped, tag = 'input window, operand 1, single buffered']
    #allocation3 [shape = 's32[1]{0}', space=sflag, size = 0x4, scoped, tag = 'scoped memory for lstm_forward.1']
    #allocation4 [shape = 'u8[2048]{0}', space=vmem, size = 0x800, scoped, tag = 'input window, operand 2, single buffered']
    #allocation5 [shape = 's32[1]{0}', space=sflag, size = 0x4, scoped, tag = 'scoped memory for lstm_forward.1']
    #allocation6 [shape = 'u8[1024]{0}', space=vmem, size = 0x400, scoped, tag = 'input window, operand 5, single buffered']
    #allocation7 [shape = 'u8[65536]{0}', space=vmem, size = 0x10000, scoped, tag = 'input window, operand 6, single buffered']
    #allocation8 [shape = 's32[1]{0}', space=sflag, size = 0x4, scoped, tag = 'scoped memory for lstm_forward.1']
    #allocation9 [shape = 'u8[65536]{0}', space=vmem, size = 0x10000, scoped, tag = 'input window, operand 7, single buffered']
    #allocation10 [shape = 'u8[1024]{0}', space=vmem, size = 0x400, scoped, tag = 'input window, operand 8, single buffered']
    #allocation11 [shape = 's32[1]{0}', space=sflag, size = 0x4, scoped, tag = 'scoped memory for lstm_forward.1']
    #allocation12 [shape = 'u8[1024]{0}', space=vmem, size = 0x400, scoped, tag = 'input window, operand 9, single buffered']
    #allocation13 [shape = 'u8[16384]{0}', space=vmem, size = 0x4000, scoped, tag = 'input window, operand 11, single buffered']
    #allocation14 [shape = 's32[1]{0}', space=sflag, size = 0x4, scoped, tag = 'scoped memory for lstm_forward.1']
    #allocation15 [shape = 'u8[512]{0}', space=vmem, size = 0x400, scoped, tag = 'input window, operand 12, single buffered']
    #allocation16 [shape = 'u8[512]{0}', space=vmem, size = 0x400, scoped, tag = 'input window, operand 14, single buffered']
    #allocation17 [shape = 's32[1]{0}', space=sflag, size = 0x4, scoped, tag = 'scoped memory for lstm_forward.1']
    %22 = vsyncpa [#allocation3], 0
    %23 = vsyncpa [#allocation5], 0
    %24 = vsyncpa [#allocation8], 0
    %25 = vsyncpa [#allocation11], 0
    %26 = vsyncpa [#allocation14], 0
    %27 = vsyncpa [#allocation17], 0
    // Predicated region
    $region2: #{lstm_forward.1} parent=1 // pred_check
      _
    $region3: #{lstm_forward.1} parent=1 // pred_check_branch
      %29 = sbr.rel (0) target = $region5
    $region4: #{lstm_forward.1} parent=1 // pred_region
      _
    $region5: #{lstm_forward.1} parent=1 // pred_fallthru
      _
    // Predicated region
    $region6: #{lstm_forward.1} parent=1 // pred_check
      _
    $region7: #{lstm_forward.1} parent=1 // pred_check_branch
      %31 = sbr.rel (0) target = $region9
    $region8: #{lstm_forward.1} parent=1 // pred_region
      %s33 = ssub.s32 64, 64
      %34 = vsyncadd [#allocation3], %s33
      %s35 = sshll.u32 [#allocation2], 4
      %s36 = int_to_ptr.vmem [resolvable:$true] %s35
      %41 = dma.hbm_to_vmem [thread:$0]  %s1, 64, %s36, [#allocation3], 32, 32, 2
    $region9: #{lstm_forward.1} parent=1 // pred_fallthru
      _
    // Predicated region
    $region10: #{lstm_forward.1} parent=1 // pred_check
      _
    $region11: #{lstm_forward.1} parent=1 // pred_check_branch
      %43 = sbr.rel (0) target = $region13
    $region12: #{lstm_forward.1} parent=1 // pred_region
      %s45 = ssub.s32 64, 64
      %46 = vsyncadd [#allocation5], %s45
      %s47 = sshll.u32 [#allocation4], 4
      %s48 = int_to_ptr.vmem [resolvable:$true] %s47
      %53 = dma.hbm_to_vmem [thread:$0]  %s2, 64, %s48, [#allocation5], 32, 32, 2
    $region13: #{lstm_forward.1} parent=1 // pred_fallthru
      _
    // Predicated region
    $region14: #{lstm_forward.1} parent=1 // pred_check
      _
    $region15: #{lstm_forward.1} parent=1 // pred_check_branch
      %55 = sbr.rel (0) target = $region17
    $region16: #{lstm_forward.1} parent=1 // pred_region
      _
    $region17: #{lstm_forward.1} parent=1 // pred_fallthru
      _
    // Predicated region
    $region18: #{lstm_forward.1} parent=1 // pred_check
      _
    $region19: #{lstm_forward.1} parent=1 // pred_check_branch
      %57 = sbr.rel (0) target = $region21
    $region20: #{lstm_forward.1} parent=1 // pred_region
      _
    $region21: #{lstm_forward.1} parent=1 // pred_fallthru
      _
    // Predicated region
    $region22: #{lstm_forward.1} parent=1 // pred_check
      _
    $region23: #{lstm_forward.1} parent=1 // pred_check_branch
      %59 = sbr.rel (0) target = $region25
    $region24: #{lstm_forward.1} parent=1 // pred_region
      %s61 = ssub.s32 32, 32
      %62 = vsyncadd [#allocation5], %s61
      %s64 = sshll.u32 [#allocation6], 4
      %s65 = int_to_ptr.vmem [resolvable:$true] %s64
      %67 = dma.hbm_to_vmem [thread:$0]  %s5, 32, %s65, [#allocation5]
    $region25: #{lstm_forward.1} parent=1 // pred_fallthru
      _
    // Predicated region
    $region26: #{lstm_forward.1} parent=1 // pred_check
      _
    $region27: #{lstm_forward.1} parent=1 // pred_check_branch
      %69 = sbr.rel (0) target = $region29
    $region28: #{lstm_forward.1} parent=1 // pred_region
      %s71 = ssub.s32 2048, 2048
      %72 = vsyncadd [#allocation8], %s71
      %s73 = sshll.u32 [#allocation7], 4
      %s74 = int_to_ptr.vmem [resolvable:$true] %s73
      %79 = dma.hbm_to_vmem [thread:$0]  %s6, 2048, %s74, [#allocation8], 256, 256, 16
    $region29: #{lstm_forward.1} parent=1 // pred_fallthru
      _
    // Predicated region
    $region30: #{lstm_forward.1} parent=1 // pred_check
      _
    $region31: #{lstm_forward.1} parent=1 // pred_check_branch
      %81 = sbr.rel (0) target = $region33
    $region32: #{lstm_forward.1} parent=1 // pred_region
      %s83 = ssub.s32 2048, 2048
      %84 = vsyncadd [#allocation8], %s83
      %s85 = sshll.u32 [#allocation9], 4
      %s86 = int_to_ptr.vmem [resolvable:$true] %s85
      %91 = dma.hbm_to_vmem [thread:$0]  %s7, 2048, %s86, [#allocation8], 256, 256, 16
    $region33: #{lstm_forward.1} parent=1 // pred_fallthru
      _
    // Predicated region
    $region34: #{lstm_forward.1} parent=1 // pred_check
      _
    $region35: #{lstm_forward.1} parent=1 // pred_check_branch
      %93 = sbr.rel (0) target = $region37
    $region36: #{lstm_forward.1} parent=1 // pred_region
      %s95 = ssub.s32 32, 32
      %96 = vsyncadd [#allocation11], %s95
      %s98 = sshll.u32 [#allocation10], 4
      %s99 = int_to_ptr.vmem [resolvable:$true] %s98
      %101 = dma.hbm_to_vmem [thread:$0]  %s8, 32, %s99, [#allocation11]
    $region37: #{lstm_forward.1} parent=1 // pred_fallthru
      _
    // Predicated region
    $region38: #{lstm_forward.1} parent=1 // pred_check
      _
    $region39: #{lstm_forward.1} parent=1 // pred_check_branch
      %103 = sbr.rel (0) target = $region41
    $region40: #{lstm_forward.1} parent=1 // pred_region
      %s105 = ssub.s32 32, 32
      %106 = vsyncadd [#allocation11], %s105
      %s108 = sshll.u32 [#allocation12], 4
      %s109 = int_to_ptr.vmem [resolvable:$true] %s108
      %111 = dma.hbm_to_vmem [thread:$0]  %s9, 32, %s109, [#allocation11]
    $region41: #{lstm_forward.1} parent=1 // pred_fallthru
      _
    // Predicated region
    $region42: #{lstm_forward.1} parent=1 // pred_check
      _
    $region43: #{lstm_forward.1} parent=1 // pred_check_branch
      %113 = sbr.rel (0) target = $region45
    $region44: #{lstm_forward.1} parent=1 // pred_region
      _
    $region45: #{lstm_forward.1} parent=1 // pred_fallthru
      _
    // Predicated region
    $region46: #{lstm_forward.1} parent=1 // pred_check
      _
    $region47: #{lstm_forward.1} parent=1 // pred_check_branch
      %115 = sbr.rel (0) target = $region49
    $region48: #{lstm_forward.1} parent=1 // pred_region
      %s117 = ssub.s32 512, 512
      %118 = vsyncadd [#allocation14], %s117
      %s119 = sshll.u32 [#allocation13], 4
      %s120 = int_to_ptr.vmem [resolvable:$true] %s119
      %125 = dma.hbm_to_vmem [thread:$0]  %s11, 512, %s120, [#allocation14], 128, 128, 8
    $region49: #{lstm_forward.1} parent=1 // pred_fallthru
      _
    // Predicated region
    $region50: #{lstm_forward.1} parent=1 // pred_check
      _
    $region51: #{lstm_forward.1} parent=1 // pred_check_branch
      %127 = sbr.rel (0) target = $region53
    $region52: #{lstm_forward.1} parent=1 // pred_region
      %s129 = ssub.s32 16, 16
      %130 = vsyncadd [#allocation14], %s129
      %s132 = sshll.u32 [#allocation15], 4
      %s133 = int_to_ptr.vmem [resolvable:$true] %s132
      %135 = dma.hbm_to_vmem [thread:$0]  %s12, 16, %s133, [#allocation14]
    $region53: #{lstm_forward.1} parent=1 // pred_fallthru
      _
    // Predicated region
    $region54: #{lstm_forward.1} parent=1 // pred_check
      _
    $region55: #{lstm_forward.1} parent=1 // pred_check_branch
      %137 = sbr.rel (0) target = $region57
    $region56: #{lstm_forward.1} parent=1 // pred_region
      _
    $region57: #{lstm_forward.1} parent=1 // pred_fallthru
      _
    // Predicated region
    $region58: #{lstm_forward.1} parent=1 // pred_check
      _
    $region59: #{lstm_forward.1} parent=1 // pred_check_branch
      %139 = sbr.rel (0) target = $region61
    $region60: #{lstm_forward.1} parent=1 // pred_region
      %s141 = ssub.s32 16, 16
      %142 = vsyncadd [#allocation17], %s141
      %s144 = sshll.u32 [#allocation16], 4
      %s145 = int_to_ptr.vmem [resolvable:$true] %s144
      %147 = dma.hbm_to_vmem [thread:$0]  %s14, 16, %s145, [#allocation17]
    $region61: #{lstm_forward.1} parent=1 // pred_fallthru
      _
    // Predicated region
    $region62: #{lstm_forward.1} parent=1 // pred_check
      _
    $region63: #{lstm_forward.1} parent=1 // pred_check_branch
      %149 = sbr.rel (0) target = $region65
    $region64: #{lstm_forward.1} parent=1 // pred_region
      _
    $region65: #{lstm_forward.1} parent=1 // pred_fallthru
      _
    // Predicated region
    $region66: #{lstm_forward.1} parent=1 // pred_check
      _
    $region67: #{lstm_forward.1} parent=1 // pred_check_branch
      %151 = sbr.rel (0) target = $region69
    $region68: #{lstm_forward.1} parent=1 // pred_region
      _
    $region69: #{lstm_forward.1} parent=1 // pred_fallthru
      _
    // Predicated region
    $region70: #{lstm_forward.1} parent=1 // pred_check
      _
    $region71: #{lstm_forward.1} parent=1 // pred_check_branch
      %153 = sbr.rel (0) target = $region73
    $region72: #{lstm_forward.1} parent=1 // pred_region
      %154 = dma.done [#allocation3], 64
    $region73: #{lstm_forward.1} parent=1 // pred_fallthru
      _
    // Predicated region
    $region74: #{lstm_forward.1} parent=1 // pred_check
      _
    $region75: #{lstm_forward.1} parent=1 // pred_check_branch
      %156 = sbr.rel (0) target = $region77
    $region76: #{lstm_forward.1} parent=1 // pred_region
      %157 = dma.done [#allocation5], 64
    $region77: #{lstm_forward.1} parent=1 // pred_fallthru
      _
    // Predicated region
    $region78: #{lstm_forward.1} parent=1 // pred_check
      _
    $region79: #{lstm_forward.1} parent=1 // pred_check_branch
      %159 = sbr.rel (0) target = $region81
    $region80: #{lstm_forward.1} parent=1 // pred_region
      %160 = dma.done [#allocation5], 32
    $region81: #{lstm_forward.1} parent=1 // pred_fallthru
      _
    // Predicated region
    $region82: #{lstm_forward.1} parent=1 // pred_check
      _
    $region83: #{lstm_forward.1} parent=1 // pred_check_branch
      %162 = sbr.rel (0) target = $region85
    $region84: #{lstm_forward.1} parent=1 // pred_region
      %163 = dma.done [#allocation8], 2048
    $region85: #{lstm_forward.1} parent=1 // pred_fallthru
      _
    // Predicated region
    $region86: #{lstm_forward.1} parent=1 // pred_check
      _
    $region87: #{lstm_forward.1} parent=1 // pred_check_branch
      %165 = sbr.rel (0) target = $region89
    $region88: #{lstm_forward.1} parent=1 // pred_region
      %166 = dma.done [#allocation8], 2048
    $region89: #{lstm_forward.1} parent=1 // pred_fallthru
      _
    // Predicated region
    $region90: #{lstm_forward.1} parent=1 // pred_check
      _
    $region91: #{lstm_forward.1} parent=1 // pred_check_branch
      %168 = sbr.rel (0) target = $region93
    $region92: #{lstm_forward.1} parent=1 // pred_region
      %169 = dma.done [#allocation11], 32
    $region93: #{lstm_forward.1} parent=1 // pred_fallthru
      _
    // Predicated region
    $region94: #{lstm_forward.1} parent=1 // pred_check
      _
    $region95: #{lstm_forward.1} parent=1 // pred_check_branch
      %171 = sbr.rel (0) target = $region97
    $region96: #{lstm_forward.1} parent=1 // pred_region
      %172 = dma.done [#allocation11], 32
    $region97: #{lstm_forward.1} parent=1 // pred_fallthru
      _
    // Predicated region
    $region98: #{lstm_forward.1} parent=1 // pred_check
      _
    $region99: #{lstm_forward.1} parent=1 // pred_check_branch
      %174 = sbr.rel (0) target = $region101
    $region100: #{lstm_forward.1} parent=1 // pred_region
      %175 = dma.done [#allocation14], 512
    $region101: #{lstm_forward.1} parent=1 // pred_fallthru
      _
    // Predicated region
    $region102: #{lstm_forward.1} parent=1 // pred_check
      _
    $region103: #{lstm_forward.1} parent=1 // pred_check_branch
      %177 = sbr.rel (0) target = $region105
    $region104: #{lstm_forward.1} parent=1 // pred_region
      %178 = dma.done [#allocation14], 16
    $region105: #{lstm_forward.1} parent=1 // pred_fallthru
      _
    // Predicated region
    $region106: #{lstm_forward.1} parent=1 // pred_check
      _
    $region107: #{lstm_forward.1} parent=1 // pred_check_branch
      %180 = sbr.rel (0) target = $region109
    $region108: #{lstm_forward.1} parent=1 // pred_region
      %181 = dma.done [#allocation17], 16
    $region109: #{lstm_forward.1} parent=1 // pred_fallthru
      _
    %v182 = vld [vmem:[%s0] sm:$0xff]
    %v183 = vld [vmem:[%s0 + $0x8] sm:$0xff]
    %v184 = vld [vmem:[%s3] sm:$0xff]
    %v185 = vld [vmem:[%s3 + $0x8] sm:$0xff]
    %v186 = vld [vmem:[%s3 + $0x10] sm:$0xff]
    %v187 = vld [vmem:[%s3 + $0x18] sm:$0xff]
    %v188 = vld [vmem:[%s3 + $0x20] sm:$0x3f]
    %v189 = vld [vmem:[%s3 + $0x28] sm:$0x3f]
    %v190 = vld [vmem:[#allocation6] sm:$0x3]
    %v192 = vlaneseq
    %v193 = vshrl.u32 %v192, 7
    %v194 = vsub.s32 0, %v193
    %v195 = vrot.slane %v190, %v194
    %v196 = vlaneseq
    %v197 = vshrl.u32 %v196, 7
    %v198 = vsub.s32 1, %v197
    %v199 = vrot.slane %v190, %v198
    %vm202 = vcmask 179200
    %v204 = vsel %vm202, %v182, 0
    %v207 = vsel %vm202, %v183, 0
    %vm209 = vcmask 1045504
    %v211 = vsel %vm209, %v188, 0
    %v214 = vsel %vm209, %v189, 0
    %216 = vmatprep.subr.mxu0 %v185
    %217 = vmatpush1.msra.mxu0 %v184
    %218 = vmatprep.subr.mxu0 %v187
    %219 = vmatpush1.msra.mxu0 %v186
    %220 = vmatprep.subr.mxu0 %v214
    %221 = vmatpush1.msra.mxu0 %v211
    %222 = vmatprep.subr.mxu0 0.0
    %223 = vmatpush1.msra.mxu0 0.0
    %224 = vmatprep.subr.mxu0 0.0
    %225 = vmatpush1.msra.mxu0 0.0
    %226 = vmatprep.subr.mxu0 0.0
    %227 = vmatpush1.msra.mxu0 0.0
    %228 = vmatprep.subr.mxu0 0.0
    %229 = vmatpush1.msra.mxu0 0.0
    %230 = vmatprep.subr.mxu0 0.0
    %231 = vmatpush1.msra.mxu0 0.0
    %232 = vmatprep.subr.mxu0 0.0
    %233 = vmatpush1.msra.mxu0 0.0
    %234 = vmatprep.subr.mxu0 0.0
    %235 = vmatpush1.msra.mxu0 0.0
    %236 = vmatprep.subr.mxu0 0.0
    %237 = vmatpush1.msra.mxu0 0.0
    %238 = vmatprep.subr.mxu0 0.0
    %239 = vmatpush1.msra.mxu0 0.0
    %240 = vmatprep.subr.mxu0 0.0
    %241 = vmatpush1.msra.mxu0 0.0
    %242 = vmatprep.subr.mxu0 0.0
    %243 = vmatpush1.msra.mxu0 0.0
    %244 = vmatprep.subr.mxu0 0.0
    %245 = vmatpush1.msra.mxu0 0.0
    %246 = vmatprep.subr.mxu0 0.0
    %247 = vmatpush1.msra.mxu0 0.0
    %248 = vmatprep.subr.mxu0 0.0
    %249 = vmatpush1.msra.mxu0 0.0
    %250 = vmatprep.subr.mxu0 0.0
    %251 = vmatpush1.msra.mxu0 0.0
    %252 = vmatprep.subr.mxu0 0.0
    %253 = vmatpush1.msra.mxu0 0.0
    %254 = vmatprep.subr.mxu0 0.0
    %255 = vmatpush1.msra.mxu0 0.0
    %256 = vmatprep.subr.mxu0 0.0
    %257 = vmatpush1.msra.mxu0 0.0
    %258 = vmatprep.subr.mxu0 0.0
    %259 = vmatpush1.msra.mxu0 0.0
    %260 = vmatprep.subr.mxu0 0.0
    %261 = vmatpush1.msra.mxu0 0.0
    %262 = vmatprep.subr.mxu0 0.0
    %263 = vmatpush1.msra.mxu0 0.0
    %264 = vmatprep.subr.mxu0 0.0
    %265 = vmatpush1.msra.mxu0 0.0
    %266 = vmatprep.subr.mxu0 0.0
    %267 = vmatpush1.msra.mxu0 0.0
    %268 = vmatprep.subr.mxu0 0.0
    %269 = vmatpush1.msra.mxu0 0.0
    %270 = vmatprep.subr.mxu0 0.0
    %271 = vmatpush1.msra.mxu0 0.0
    %272 = vmatprep.subr.mxu0 0.0
    %273 = vmatpush1.msra.mxu0 0.0
    %274 = vmatprep.subr.mxu0 0.0
    %275 = vmatpush1.msra.mxu0 0.0
    %276 = vmatprep.subr.mxu0 0.0
    %277 = vmatpush1.msra.mxu0 0.0
    %278 = vmatprep.subr.mxu0 0.0
    %279 = vmatpush1.msra.mxu0 0.0
    %280 = vmatprep.mubr.f32.mxu0 0.0
    %281 = vmatmul.mubr.f32.gmra.mrb[0].mxu0 %v204
    %v282 = vpop.f32.mrb[0].mxu0
    %v283 = vadd.f32 %v195, %v282
    %v284 = vpop.f32.mrb[0].mxu0
    %v285 = vadd.f32 %v199, %v284
    %286 = vmatprep.mubr.f32.mxu0 0.0
    %287 = vmatmul.mubr.f32.gmra.mrb[0].mxu0 %v207
    %v288 = vpop.f32.mrb[0].mxu0
    %v289 = vadd.f32 %v195, %v288
    %v290 = vpop.f32.mrb[0].mxu0
    %v291 = vadd.f32 %v199, %v290
    %292 = vdwg.mxu0
    %v293 = vld [vmem:[%s4] sm:$0xff]
    %v294 = vld [vmem:[%s4 + $0x8] sm:$0xff]
    %v295 = vld [vmem:[%s4 + $0x10] sm:$0xff]
    %v296 = vld [vmem:[%s4 + $0x18] sm:$0xff]
    %v297 = vld [vmem:[%s4 + $0x20] sm:$0xff]
    %v298 = vld [vmem:[%s4 + $0x28] sm:$0xff]
    %v299 = vld [vmem:[%s4 + $0x30] sm:$0xff]
    %v300 = vld [vmem:[%s4 + $0x38] sm:$0xff]
    %v301 = vld [vmem:[%s4 + $0x40] sm:$0xff]
    %v302 = vld [vmem:[%s4 + $0x48] sm:$0xff]
    %v303 = vld [vmem:[%s4 + $0x50] sm:$0xff]
    %v304 = vld [vmem:[%s4 + $0x58] sm:$0xff]
    %v305 = vld [vmem:[%s4 + $0x60] sm:$0xff]
    %v306 = vld [vmem:[%s4 + $0x68] sm:$0xff]
    %v307 = vld [vmem:[%s4 + $0x70] sm:$0xff]
    %v308 = vld [vmem:[%s4 + $0x78] sm:$0xff]
    %v309 = vld [vmem:[#allocation2] sm:$0x3]
    %v310 = vld [vmem:[#allocation4] sm:$0x3]
    %vm311 = vcmask 523264
    %v313 = vsel %vm311, %v309, 0
    %315 = vmatprep.subr.mxu0 %v294
    %316 = vmatpush1.msra.mxu0 %v293
    %317 = vmatprep.subr.mxu0 %v296
    %318 = vmatpush1.msra.mxu0 %v295
    %319 = vmatprep.subr.mxu0 %v298
    %320 = vmatpush1.msra.mxu0 %v297
    %321 = vmatprep.subr.mxu0 %v300
    %322 = vmatpush1.msra.mxu0 %v299
    %323 = vmatprep.subr.mxu0 %v302
    %324 = vmatpush1.msra.mxu0 %v301
    %325 = vmatprep.subr.mxu0 %v304
    %326 = vmatpush1.msra.mxu0 %v303
    %327 = vmatprep.subr.mxu0 %v306
    %328 = vmatpush1.msra.mxu0 %v305
    %329 = vmatprep.subr.mxu0 %v308
    %330 = vmatpush1.msra.mxu0 %v307
    %331 = vmatprep.subr.mxu0 0.0
    %332 = vmatpush1.msra.mxu0 0.0
    %333 = vmatprep.subr.mxu0 0.0
    %334 = vmatpush1.msra.mxu0 0.0
    %335 = vmatprep.subr.mxu0 0.0
    %336 = vmatpush1.msra.mxu0 0.0
    %337 = vmatprep.subr.mxu0 0.0
    %338 = vmatpush1.msra.mxu0 0.0
    %339 = vmatprep.subr.mxu0 0.0
    %340 = vmatpush1.msra.mxu0 0.0
    %341 = vmatprep.subr.mxu0 0.0
    %342 = vmatpush1.msra.mxu0 0.0
    %343 = vmatprep.subr.mxu0 0.0
    %344 = vmatpush1.msra.mxu0 0.0
    %345 = vmatprep.subr.mxu0 0.0
    %346 = vmatpush1.msra.mxu0 0.0
    %347 = vmatprep.subr.mxu0 0.0
    %348 = vmatpush1.msra.mxu0 0.0
    %349 = vmatprep.subr.mxu0 0.0
    %350 = vmatpush1.msra.mxu0 0.0
    %351 = vmatprep.subr.mxu0 0.0
    %352 = vmatpush1.msra.mxu0 0.0
    %353 = vmatprep.subr.mxu0 0.0
    %354 = vmatpush1.msra.mxu0 0.0
    %355 = vmatprep.subr.mxu0 0.0
    %356 = vmatpush1.msra.mxu0 0.0
    %357 = vmatprep.subr.mxu0 0.0
    %358 = vmatpush1.msra.mxu0 0.0
    %359 = vmatprep.subr.mxu0 0.0
    %360 = vmatpush1.msra.mxu0 0.0
    %361 = vmatprep.subr.mxu0 0.0
    %362 = vmatpush1.msra.mxu0 0.0
    %363 = vmatprep.subr.mxu0 0.0
    %364 = vmatpush1.msra.mxu0 0.0
    %365 = vmatprep.subr.mxu0 0.0
    %366 = vmatpush1.msra.mxu0 0.0
    %367 = vmatprep.subr.mxu0 0.0
    %368 = vmatpush1.msra.mxu0 0.0
    %369 = vmatprep.subr.mxu0 0.0
    %370 = vmatpush1.msra.mxu0 0.0
    %371 = vmatprep.subr.mxu0 0.0
    %372 = vmatpush1.msra.mxu0 0.0
    %373 = vmatprep.subr.mxu0 0.0
    %374 = vmatpush1.msra.mxu0 0.0
    %375 = vmatprep.subr.mxu0 0.0
    %376 = vmatpush1.msra.mxu0 0.0
    %377 = vmatprep.subr.mxu0 0.0
    %378 = vmatpush1.msra.mxu0 0.0
    %379 = vmatprep.mubr.f32.mxu0 0.0
    %380 = vmatmul.mubr.f32.gmra.mrb[0].mxu0 %v313
    %v381 = vpop.f32.mrb[0].mxu0
    %v382 = vadd.f32 0.0, %v381
    %v383 = vpop.f32.mrb[0].mxu0
    %v384 = vadd.f32 0.0, %v383
    %385 = vdwg.mxu0
    %v386 = vadd.f32 %v283, %v382
    %v387 = vadd.f32 %v285, %v384
    %v388 = vxor.u32 %v386, 2147483648
    %v389 = vmul.f32 %v388, 1.442695
    %v390 = vpow.pop %v389
    %v391 = vadd.f32 %v390, 1.0
    %v392 = vrcp.pop %v391
    %v393 = vmul.f32 1.0, %v392
    %v394 = vtanh.pop %v387
    %v395 = vxor.u32 %v387, 2147483648
    %v396 = vmul.f32 %v395, 1.442695
    %v397 = vpow.pop %v396
    %v398 = vadd.f32 %v397, 1.0
    %v399 = vrcp.pop %v398
    %v400 = vmul.f32 1.0, %v399
    %402 = vrot.lane.b32.xlu0 %v310, 64
    %v403 = vpop.permute.xlu0 %402
    %v405 = vmul.f32 %v393, %v403
    %v406 = vmul.f32 %v393, %v394
    %408 = vrot.lane.b32.xlu0 %v406, 64
    %v409 = vpop.permute.xlu0 %408
    %v411 = vadd.f32 %v405, %v409
    %v412 = vtanh.pop %v411
    %v413 = vmul.f32 %v400, %v412
    %415 = vrot.lane.b32.xlu0 %v413, 64
    %v416 = vpop.permute.xlu0 %415
    %v417 = vsel %vm311, %v416, 0
    %419 = vmatprep.subr.mxu0 %v294
    %420 = vmatpush1.msra.mxu0 %v293
    %421 = vmatprep.subr.mxu0 %v296
    %422 = vmatpush1.msra.mxu0 %v295
    %423 = vmatprep.subr.mxu0 %v298
    %424 = vmatpush1.msra.mxu0 %v297
    %425 = vmatprep.subr.mxu0 %v300
    %426 = vmatpush1.msra.mxu0 %v299
    %427 = vmatprep.subr.mxu0 %v302
    %428 = vmatpush1.msra.mxu0 %v301
    %429 = vmatprep.subr.mxu0 %v304
    %430 = vmatpush1.msra.mxu0 %v303
    %431 = vmatprep.subr.mxu0 %v306
    %432 = vmatpush1.msra.mxu0 %v305
    %433 = vmatprep.subr.mxu0 %v308
    %434 = vmatpush1.msra.mxu0 %v307
    %435 = vmatprep.subr.mxu0 0.0
    %436 = vmatpush1.msra.mxu0 0.0
    %437 = vmatprep.subr.mxu0 0.0
    %438 = vmatpush1.msra.mxu0 0.0
    %439 = vmatprep.subr.mxu0 0.0
    %440 = vmatpush1.msra.mxu0 0.0
    %441 = vmatprep.subr.mxu0 0.0
    %442 = vmatpush1.msra.mxu0 0.0
    %443 = vmatprep.subr.mxu0 0.0
    %444 = vmatpush1.msra.mxu0 0.0
    %445 = vmatprep.subr.mxu0 0.0
    %446 = vmatpush1.msra.mxu0 0.0
    %447 = vmatprep.subr.mxu0 0.0
    %448 = vmatpush1.msra.mxu0 0.0
    %449 = vmatprep.subr.mxu0 0.0
    %450 = vmatpush1.msra.mxu0 0.0
    %451 = vmatprep.subr.mxu0 0.0
    %452 = vmatpush1.msra.mxu0 0.0
    %453 = vmatprep.subr.mxu0 0.0
    %454 = vmatpush1.msra.mxu0 0.0
    %455 = vmatprep.subr.mxu0 0.0
    %456 = vmatpush1.msra.mxu0 0.0
    %457 = vmatprep.subr.mxu0 0.0
    %458 = vmatpush1.msra.mxu0 0.0
    %459 = vmatprep.subr.mxu0 0.0
    %460 = vmatpush1.msra.mxu0 0.0
    %461 = vmatprep.subr.mxu0 0.0
    %462 = vmatpush1.msra.mxu0 0.0
    %463 = vmatprep.subr.mxu0 0.0
    %464 = vmatpush1.msra.mxu0 0.0
    %465 = vmatprep.subr.mxu0 0.0
    %466 = vmatpush1.msra.mxu0 0.0
    %467 = vmatprep.subr.mxu0 0.0
    %468 = vmatpush1.msra.mxu0 0.0
    %469 = vmatprep.subr.mxu0 0.0
    %470 = vmatpush1.msra.mxu0 0.0
    %471 = vmatprep.subr.mxu0 0.0
    %472 = vmatpush1.msra.mxu0 0.0
    %473 = vmatprep.subr.mxu0 0.0
    %474 = vmatpush1.msra.mxu0 0.0
    %475 = vmatprep.subr.mxu0 0.0
    %476 = vmatpush1.msra.mxu0 0.0
    %477 = vmatprep.subr.mxu0 0.0
    %478 = vmatpush1.msra.mxu0 0.0
    %479 = vmatprep.subr.mxu0 0.0
    %480 = vmatpush1.msra.mxu0 0.0
    %481 = vmatprep.subr.mxu0 0.0
    %482 = vmatpush1.msra.mxu0 0.0
    %483 = vmatprep.mubr.f32.mxu0 0.0
    %484 = vmatmul.mubr.f32.gmra.mrb[0].mxu0 %v417
    %v485 = vpop.f32.mrb[0].mxu0
    %v486 = vadd.f32 0.0, %v485
    %v487 = vpop.f32.mrb[0].mxu0
    %v488 = vadd.f32 0.0, %v487
    %489 = vdwg.mxu0
    %v492 = vrot.slane %v486, 6
    %v493 = vrot.slane %v488, 6
    %v496 = vadd.f32 %v283, %v492
    %v497 = vadd.f32 %v285, %v493
    %v498 = vxor.u32 %v496, 2147483648
    %v499 = vmul.f32 %v498, 1.442695
    %v500 = vpow.pop %v499
    %v501 = vadd.f32 %v500, 1.0
    %v502 = vrcp.pop %v501
    %v503 = vmul.f32 1.0, %v502
    %v504 = vtanh.pop %v497
    %v505 = vxor.u32 %v497, 2147483648
    %v506 = vmul.f32 %v505, 1.442695
    %v507 = vpow.pop %v506
    %v508 = vadd.f32 %v507, 1.0
    %v509 = vrcp.pop %v508
    %v510 = vmul.f32 1.0, %v509
    %v512 = vrot.slane %v411, 6
    %v514 = vmul.f32 %v503, %v512
    %v515 = vmul.f32 %v503, %v504
    %517 = vrot.lane.b32.xlu0 %v515, 64
    %v518 = vpop.permute.xlu0 %517
    %v520 = vadd.f32 %v514, %v518
    %v521 = vtanh.pop %v520
    %v522 = vmul.f32 %v510, %v521
    %v524 = vrot.slane %v522, 2
    %525 = vrot.lane.b32.xlu0 %v524, 64
    %v526 = vpop.permute.xlu0 %525
    %v527 = vsel %vm311, %v526, 0
    %529 = vmatprep.subr.mxu0 %v294
    %530 = vmatpush1.msra.mxu0 %v293
    %531 = vmatprep.subr.mxu0 %v296
    %532 = vmatpush1.msra.mxu0 %v295
    %533 = vmatprep.subr.mxu0 %v298
    %534 = vmatpush1.msra.mxu0 %v297
    %535 = vmatprep.subr.mxu0 %v300
    %536 = vmatpush1.msra.mxu0 %v299
    %537 = vmatprep.subr.mxu0 %v302
    %538 = vmatpush1.msra.mxu0 %v301
    %539 = vmatprep.subr.mxu0 %v304
    %540 = vmatpush1.msra.mxu0 %v303
    %541 = vmatprep.subr.mxu0 %v306
    %542 = vmatpush1.msra.mxu0 %v305
    %543 = vmatprep.subr.mxu0 %v308
    %544 = vmatpush1.msra.mxu0 %v307
    %545 = vmatprep.subr.mxu0 0.0
    %546 = vmatpush1.msra.mxu0 0.0
    %547 = vmatprep.subr.mxu0 0.0
    %548 = vmatpush1.msra.mxu0 0.0
    %549 = vmatprep.subr.mxu0 0.0
    %550 = vmatpush1.msra.mxu0 0.0
    %551 = vmatprep.subr.mxu0 0.0
    %552 = vmatpush1.msra.mxu0 0.0
    %553 = vmatprep.subr.mxu0 0.0
    %554 = vmatpush1.msra.mxu0 0.0
    %555 = vmatprep.subr.mxu0 0.0
    %556 = vmatpush1.msra.mxu0 0.0
    %557 = vmatprep.subr.mxu0 0.0
    %558 = vmatpush1.msra.mxu0 0.0
    %559 = vmatprep.subr.mxu0 0.0
    %560 = vmatpush1.msra.mxu0 0.0
    %561 = vmatprep.subr.mxu0 0.0
    %562 = vmatpush1.msra.mxu0 0.0
    %563 = vmatprep.subr.mxu0 0.0
    %564 = vmatpush1.msra.mxu0 0.0
    %565 = vmatprep.subr.mxu0 0.0
    %566 = vmatpush1.msra.mxu0 0.0
    %567 = vmatprep.subr.mxu0 0.0
    %568 = vmatpush1.msra.mxu0 0.0
    %569 = vmatprep.subr.mxu0 0.0
    %570 = vmatpush1.msra.mxu0 0.0
    %571 = vmatprep.subr.mxu0 0.0
    %572 = vmatpush1.msra.mxu0 0.0
    %573 = vmatprep.subr.mxu0 0.0
    %574 = vmatpush1.msra.mxu0 0.0
    %575 = vmatprep.subr.mxu0 0.0
    %576 = vmatpush1.msra.mxu0 0.0
    %577 = vmatprep.subr.mxu0 0.0
    %578 = vmatpush1.msra.mxu0 0.0
    %579 = vmatprep.subr.mxu0 0.0
    %580 = vmatpush1.msra.mxu0 0.0
    %581 = vmatprep.subr.mxu0 0.0
    %582 = vmatpush1.msra.mxu0 0.0
    %583 = vmatprep.subr.mxu0 0.0
    %584 = vmatpush1.msra.mxu0 0.0
    %585 = vmatprep.subr.mxu0 0.0
    %586 = vmatpush1.msra.mxu0 0.0
    %587 = vmatprep.subr.mxu0 0.0
    %588 = vmatpush1.msra.mxu0 0.0
    %589 = vmatprep.subr.mxu0 0.0
    %590 = vmatpush1.msra.mxu0 0.0
    %591 = vmatprep.subr.mxu0 0.0
    %592 = vmatpush1.msra.mxu0 0.0
    %593 = vmatprep.mubr.f32.mxu0 0.0
    %594 = vmatmul.mubr.f32.gmra.mrb[0].mxu0 %v527
    %v595 = vpop.f32.mrb[0].mxu0
    %v596 = vadd.f32 0.0, %v595
    %v597 = vpop.f32.mrb[0].mxu0
    %v598 = vadd.f32 0.0, %v597
    %599 = vdwg.mxu0
    %v602 = vrot.slane %v596, 4
    %v603 = vrot.slane %v598, 4
    %v606 = vadd.f32 %v283, %v602
    %v607 = vadd.f32 %v285, %v603
    %v608 = vxor.u32 %v606, 2147483648
    %v609 = vmul.f32 %v608, 1.442695
    %v610 = vpow.pop %v609
    %v611 = vadd.f32 %v610, 1.0
    %v612 = vrcp.pop %v611
    %v613 = vmul.f32 1.0, %v612
    %v614 = vtanh.pop %v607
    %v615 = vxor.u32 %v607, 2147483648
    %v616 = vmul.f32 %v615, 1.442695
    %v617 = vpow.pop %v616
    %v618 = vadd.f32 %v617, 1.0
    %v619 = vrcp.pop %v618
    %v620 = vmul.f32 1.0, %v619
    %v622 = vrot.slane %v520, 6
    %v624 = vmul.f32 %v613, %v622
    %v625 = vmul.f32 %v613, %v614
    %627 = vrot.lane.b32.xlu0 %v625, 64
    %v628 = vpop.permute.xlu0 %627
    %v630 = vadd.f32 %v624, %v628
    %v631 = vtanh.pop %v630
    %v632 = vmul.f32 %v620, %v631
    %v634 = vrot.slane %v632, 4
    %635 = vrot.lane.b32.xlu0 %v634, 64
    %v636 = vpop.permute.xlu0 %635
    %v637 = vsel %vm311, %v636, 0
    %639 = vmatprep.subr.mxu0 %v294
    %640 = vmatpush1.msra.mxu0 %v293
    %641 = vmatprep.subr.mxu0 %v296
    %642 = vmatpush1.msra.mxu0 %v295
    %643 = vmatprep.subr.mxu0 %v298
    %644 = vmatpush1.msra.mxu0 %v297
    %645 = vmatprep.subr.mxu0 %v300
    %646 = vmatpush1.msra.mxu0 %v299
    %647 = vmatprep.subr.mxu0 %v302
    %648 = vmatpush1.msra.mxu0 %v301
    %649 = vmatprep.subr.mxu0 %v304
    %650 = vmatpush1.msra.mxu0 %v303
    %651 = vmatprep.subr.mxu0 %v306
    %652 = vmatpush1.msra.mxu0 %v305
    %653 = vmatprep.subr.mxu0 %v308
    %654 = vmatpush1.msra.mxu0 %v307
    %655 = vmatprep.subr.mxu0 0.0
    %656 = vmatpush1.msra.mxu0 0.0
    %657 = vmatprep.subr.mxu0 0.0
    %658 = vmatpush1.msra.mxu0 0.0
    %659 = vmatprep.subr.mxu0 0.0
    %660 = vmatpush1.msra.mxu0 0.0
    %661 = vmatprep.subr.mxu0 0.0
    %662 = vmatpush1.msra.mxu0 0.0
    %663 = vmatprep.subr.mxu0 0.0
    %664 = vmatpush1.msra.mxu0 0.0
    %665 = vmatprep.subr.mxu0 0.0
    %666 = vmatpush1.msra.mxu0 0.0
    %667 = vmatprep.subr.mxu0 0.0
    %668 = vmatpush1.msra.mxu0 0.0
    %669 = vmatprep.subr.mxu0 0.0
    %670 = vmatpush1.msra.mxu0 0.0
    %671 = vmatprep.subr.mxu0 0.0
    %672 = vmatpush1.msra.mxu0 0.0
    %673 = vmatprep.subr.mxu0 0.0
    %674 = vmatpush1.msra.mxu0 0.0
    %675 = vmatprep.subr.mxu0 0.0
    %676 = vmatpush1.msra.mxu0 0.0
    %677 = vmatprep.subr.mxu0 0.0
    %678 = vmatpush1.msra.mxu0 0.0
    %679 = vmatprep.subr.mxu0 0.0
    %680 = vmatpush1.msra.mxu0 0.0
    %681 = vmatprep.subr.mxu0 0.0
    %682 = vmatpush1.msra.mxu0 0.0
    %683 = vmatprep.subr.mxu0 0.0
    %684 = vmatpush1.msra.mxu0 0.0
    %685 = vmatprep.subr.mxu0 0.0
    %686 = vmatpush1.msra.mxu0 0.0
    %687 = vmatprep.subr.mxu0 0.0
    %688 = vmatpush1.msra.mxu0 0.0
    %689 = vmatprep.subr.mxu0 0.0
    %690 = vmatpush1.msra.mxu0 0.0
    %691 = vmatprep.subr.mxu0 0.0
    %692 = vmatpush1.msra.mxu0 0.0
    %693 = vmatprep.subr.mxu0 0.0
    %694 = vmatpush1.msra.mxu0 0.0
    %695 = vmatprep.subr.mxu0 0.0
    %696 = vmatpush1.msra.mxu0 0.0
    %697 = vmatprep.subr.mxu0 0.0
    %698 = vmatpush1.msra.mxu0 0.0
    %699 = vmatprep.subr.mxu0 0.0
    %700 = vmatpush1.msra.mxu0 0.0
    %701 = vmatprep.subr.mxu0 0.0
    %702 = vmatpush1.msra.mxu0 0.0
    %703 = vmatprep.mubr.f32.mxu0 0.0
    %704 = vmatmul.mubr.f32.gmra.mrb[0].mxu0 %v637
    %v705 = vpop.f32.mrb[0].mxu0
    %v706 = vadd.f32 0.0, %v705
    %v707 = vpop.f32.mrb[0].mxu0
    %v708 = vadd.f32 0.0, %v707
    %709 = vdwg.mxu0
    %v712 = vrot.slane %v706, 2
    %v713 = vrot.slane %v708, 2
    %v716 = vadd.f32 %v283, %v712
    %v717 = vadd.f32 %v285, %v713
    %v718 = vxor.u32 %v716, 2147483648
    %v719 = vmul.f32 %v718, 1.442695
    %v720 = vpow.pop %v719
    %v721 = vadd.f32 %v720, 1.0
    %v722 = vrcp.pop %v721
    %v723 = vmul.f32 1.0, %v722
    %v724 = vtanh.pop %v717
    %v725 = vxor.u32 %v717, 2147483648
    %v726 = vmul.f32 %v725, 1.442695
    %v727 = vpow.pop %v726
    %v728 = vadd.f32 %v727, 1.0
    %v729 = vrcp.pop %v728
    %v730 = vmul.f32 1.0, %v729
    %v732 = vrot.slane %v630, 6
    %v734 = vmul.f32 %v723, %v732
    %v735 = vmul.f32 %v723, %v724
    %737 = vrot.lane.b32.xlu0 %v735, 64
    %v738 = vpop.permute.xlu0 %737
    %v740 = vadd.f32 %v734, %v738
    %v741 = vtanh.pop %v740
    %v742 = vmul.f32 %v730, %v741
    %v744 = vrot.slane %v742, 6
    %745 = vrot.lane.b32.xlu0 %v744, 64
    %v746 = vpop.permute.xlu0 %745
    %v747 = vsel %vm311, %v746, 0
    %749 = vmatprep.subr.mxu0 %v294
    %750 = vmatpush1.msra.mxu0 %v293
    %751 = vmatprep.subr.mxu0 %v296
    %752 = vmatpush1.msra.mxu0 %v295
    %753 = vmatprep.subr.mxu0 %v298
    %754 = vmatpush1.msra.mxu0 %v297
    %755 = vmatprep.subr.mxu0 %v300
    %756 = vmatpush1.msra.mxu0 %v299
    %757 = vmatprep.subr.mxu0 %v302
    %758 = vmatpush1.msra.mxu0 %v301
    %759 = vmatprep.subr.mxu0 %v304
    %760 = vmatpush1.msra.mxu0 %v303
    %761 = vmatprep.subr.mxu0 %v306
    %762 = vmatpush1.msra.mxu0 %v305
    %763 = vmatprep.subr.mxu0 %v308
    %764 = vmatpush1.msra.mxu0 %v307
    %765 = vmatprep.subr.mxu0 0.0
    %766 = vmatpush1.msra.mxu0 0.0
    %767 = vmatprep.subr.mxu0 0.0
    %768 = vmatpush1.msra.mxu0 0.0
    %769 = vmatprep.subr.mxu0 0.0
    %770 = vmatpush1.msra.mxu0 0.0
    %771 = vmatprep.subr.mxu0 0.0
    %772 = vmatpush1.msra.mxu0 0.0
    %773 = vmatprep.subr.mxu0 0.0
    %774 = vmatpush1.msra.mxu0 0.0
    %775 = vmatprep.subr.mxu0 0.0
    %776 = vmatpush1.msra.mxu0 0.0
    %777 = vmatprep.subr.mxu0 0.0
    %778 = vmatpush1.msra.mxu0 0.0
    %779 = vmatprep.subr.mxu0 0.0
    %780 = vmatpush1.msra.mxu0 0.0
    %781 = vmatprep.subr.mxu0 0.0
    %782 = vmatpush1.msra.mxu0 0.0
    %783 = vmatprep.subr.mxu0 0.0
    %784 = vmatpush1.msra.mxu0 0.0
    %785 = vmatprep.subr.mxu0 0.0
    %786 = vmatpush1.msra.mxu0 0.0
    %787 = vmatprep.subr.mxu0 0.0
    %788 = vmatpush1.msra.mxu0 0.0
    %789 = vmatprep.subr.mxu0 0.0
    %790 = vmatpush1.msra.mxu0 0.0
    %791 = vmatprep.subr.mxu0 0.0
    %792 = vmatpush1.msra.mxu0 0.0
    %793 = vmatprep.subr.mxu0 0.0
    %794 = vmatpush1.msra.mxu0 0.0
    %795 = vmatprep.subr.mxu0 0.0
    %796 = vmatpush1.msra.mxu0 0.0
    %797 = vmatprep.subr.mxu0 0.0
    %798 = vmatpush1.msra.mxu0 0.0
    %799 = vmatprep.subr.mxu0 0.0
    %800 = vmatpush1.msra.mxu0 0.0
    %801 = vmatprep.subr.mxu0 0.0
    %802 = vmatpush1.msra.mxu0 0.0
    %803 = vmatprep.subr.mxu0 0.0
    %804 = vmatpush1.msra.mxu0 0.0
    %805 = vmatprep.subr.mxu0 0.0
    %806 = vmatpush1.msra.mxu0 0.0
    %807 = vmatprep.subr.mxu0 0.0
    %808 = vmatpush1.msra.mxu0 0.0
    %809 = vmatprep.subr.mxu0 0.0
    %810 = vmatpush1.msra.mxu0 0.0
    %811 = vmatprep.subr.mxu0 0.0
    %812 = vmatpush1.msra.mxu0 0.0
    %813 = vmatprep.mubr.f32.mxu0 0.0
    %814 = vmatmul.mubr.f32.gmra.mrb[0].mxu0 %v747
    %v815 = vpop.f32.mrb[0].mxu0
    %v816 = vadd.f32 0.0, %v815
    %v817 = vpop.f32.mrb[0].mxu0
    %v818 = vadd.f32 0.0, %v817
    %819 = vdwg.mxu0
    %v820 = vadd.f32 %v289, %v816
    %v821 = vadd.f32 %v291, %v818
    %v822 = vxor.u32 %v820, 2147483648
    %v823 = vmul.f32 %v822, 1.442695
    %v824 = vpow.pop %v823
    %v825 = vadd.f32 %v824, 1.0
    %v826 = vrcp.pop %v825
    %v827 = vmul.f32 1.0, %v826
    %v828 = vtanh.pop %v821
    %v829 = vxor.u32 %v821, 2147483648
    %v830 = vmul.f32 %v829, 1.442695
    %v831 = vpow.pop %v830
    %v832 = vadd.f32 %v831, 1.0
    %v833 = vrcp.pop %v832
    %v834 = vmul.f32 1.0, %v833
    %v836 = vrot.slane %v740, 6
    %v838 = vmul.f32 %v827, %v836
    %v839 = vmul.f32 %v827, %v828
    %841 = vrot.lane.b32.xlu0 %v839, 64
    %v842 = vpop.permute.xlu0 %841
    %v844 = vadd.f32 %v838, %v842
    %v845 = vtanh.pop %v844
    %v846 = vmul.f32 %v834, %v845
    %848 = vrot.lane.b32.xlu0 %v846, 64
    %v849 = vpop.permute.xlu0 %848
    %v850 = vsel %vm311, %v849, 0
    %852 = vmatprep.subr.mxu0 %v294
    %853 = vmatpush1.msra.mxu0 %v293
    %854 = vmatprep.subr.mxu0 %v296
    %855 = vmatpush1.msra.mxu0 %v295
    %856 = vmatprep.subr.mxu0 %v298
    %857 = vmatpush1.msra.mxu0 %v297
    %858 = vmatprep.subr.mxu0 %v300
    %859 = vmatpush1.msra.mxu0 %v299
    %860 = vmatprep.subr.mxu0 %v302
    %861 = vmatpush1.msra.mxu0 %v301
    %862 = vmatprep.subr.mxu0 %v304
    %863 = vmatpush1.msra.mxu0 %v303
    %864 = vmatprep.subr.mxu0 %v306
    %865 = vmatpush1.msra.mxu0 %v305
    %866 = vmatprep.subr.mxu0 %v308
    %867 = vmatpush1.msra.mxu0 %v307
    %868 = vmatprep.subr.mxu0 0.0
    %869 = vmatpush1.msra.mxu0 0.0
    %870 = vmatprep.subr.mxu0 0.0
    %871 = vmatpush1.msra.mxu0 0.0
    %872 = vmatprep.subr.mxu0 0.0
    %873 = vmatpush1.msra.mxu0 0.0
    %874 = vmatprep.subr.mxu0 0.0
    %875 = vmatpush1.msra.mxu0 0.0
    %876 = vmatprep.subr.mxu0 0.0
    %877 = vmatpush1.msra.mxu0 0.0
    %878 = vmatprep.subr.mxu0 0.0
    %879 = vmatpush1.msra.mxu0 0.0
    %880 = vmatprep.subr.mxu0 0.0
    %881 = vmatpush1.msra.mxu0 0.0
    %882 = vmatprep.subr.mxu0 0.0
    %883 = vmatpush1.msra.mxu0 0.0
    %884 = vmatprep.subr.mxu0 0.0
    %885 = vmatpush1.msra.mxu0 0.0
    %886 = vmatprep.subr.mxu0 0.0
    %887 = vmatpush1.msra.mxu0 0.0
    %888 = vmatprep.subr.mxu0 0.0
    %889 = vmatpush1.msra.mxu0 0.0
    %890 = vmatprep.subr.mxu0 0.0
    %891 = vmatpush1.msra.mxu0 0.0
    %892 = vmatprep.subr.mxu0 0.0
    %893 = vmatpush1.msra.mxu0 0.0
    %894 = vmatprep.subr.mxu0 0.0
    %895 = vmatpush1.msra.mxu0 0.0
    %896 = vmatprep.subr.mxu0 0.0
    %897 = vmatpush1.msra.mxu0 0.0
    %898 = vmatprep.subr.mxu0 0.0
    %899 = vmatpush1.msra.mxu0 0.0
    %900 = vmatprep.subr.mxu0 0.0
    %901 = vmatpush1.msra.mxu0 0.0
    %902 = vmatprep.subr.mxu0 0.0
    %903 = vmatpush1.msra.mxu0 0.0
    %904 = vmatprep.subr.mxu0 0.0
    %905 = vmatpush1.msra.mxu0 0.0
    %906 = vmatprep.subr.mxu0 0.0
    %907 = vmatpush1.msra.mxu0 0.0
    %908 = vmatprep.subr.mxu0 0.0
    %909 = vmatpush1.msra.mxu0 0.0
    %910 = vmatprep.subr.mxu0 0.0
    %911 = vmatpush1.msra.mxu0 0.0
    %912 = vmatprep.subr.mxu0 0.0
    %913 = vmatpush1.msra.mxu0 0.0
    %914 = vmatprep.subr.mxu0 0.0
    %915 = vmatpush1.msra.mxu0 0.0
    %916 = vmatprep.mubr.f32.mxu0 0.0
    %917 = vmatmul.mubr.f32.gmra.mrb[0].mxu0 %v850
    %v918 = vpop.f32.mrb[0].mxu0
    %v919 = vadd.f32 0.0, %v918
    %v920 = vpop.f32.mrb[0].mxu0
    %v921 = vadd.f32 0.0, %v920
    %922 = vdwg.mxu0
    %v925 = vrot.slane %v919, 6
    %v926 = vrot.slane %v921, 6
    %v929 = vadd.f32 %v289, %v925
    %v930 = vadd.f32 %v291, %v926
    %v931 = vxor.u32 %v929, 2147483648
    %v932 = vmul.f32 %v931, 1.442695
    %v933 = vpow.pop %v932
    %v934 = vadd.f32 %v933, 1.0
    %v935 = vrcp.pop %v934
    %v936 = vmul.f32 1.0, %v935
    %v937 = vtanh.pop %v930
    %v938 = vxor.u32 %v930, 2147483648
    %v939 = vmul.f32 %v938, 1.442695
    %v940 = vpow.pop %v939
    %v941 = vadd.f32 %v940, 1.0
    %v942 = vrcp.pop %v941
    %v943 = vmul.f32 1.0, %v942
    %v945 = vrot.slane %v844, 6
    %v947 = vmul.f32 %v936, %v945
    %v948 = vmul.f32 %v936, %v937
    %950 = vrot.lane.b32.xlu0 %v948, 64
    %v951 = vpop.permute.xlu0 %950
    %v953 = vadd.f32 %v947, %v951
    %v954 = vtanh.pop %v953
    %v955 = vmul.f32 %v943, %v954
    %v957 = vrot.slane %v955, 2
    %958 = vrot.lane.b32.xlu0 %v957, 64
    %v959 = vpop.permute.xlu0 %958
    %v960 = vsel %vm311, %v959, 0
    %962 = vmatprep.subr.mxu0 %v294
    %963 = vmatpush1.msra.mxu0 %v293
    %964 = vmatprep.subr.mxu0 %v296
    %965 = vmatpush1.msra.mxu0 %v295
    %966 = vmatprep.subr.mxu0 %v298
    %967 = vmatpush1.msra.mxu0 %v297
    %968 = vmatprep.subr.mxu0 %v300
    %969 = vmatpush1.msra.mxu0 %v299
    %970 = vmatprep.subr.mxu0 %v302
    %971 = vmatpush1.msra.mxu0 %v301
    %972 = vmatprep.subr.mxu0 %v304
    %973 = vmatpush1.msra.mxu0 %v303
    %974 = vmatprep.subr.mxu0 %v306
    %975 = vmatpush1.msra.mxu0 %v305
    %976 = vmatprep.subr.mxu0 %v308
    %977 = vmatpush1.msra.mxu0 %v307
    %978 = vmatprep.subr.mxu0 0.0
    %979 = vmatpush1.msra.mxu0 0.0
    %980 = vmatprep.subr.mxu0 0.0
    %981 = vmatpush1.msra.mxu0 0.0
    %982 = vmatprep.subr.mxu0 0.0
    %983 = vmatpush1.msra.mxu0 0.0
    %984 = vmatprep.subr.mxu0 0.0
    %985 = vmatpush1.msra.mxu0 0.0
    %986 = vmatprep.subr.mxu0 0.0
    %987 = vmatpush1.msra.mxu0 0.0
    %988 = vmatprep.subr.mxu0 0.0
    %989 = vmatpush1.msra.mxu0 0.0
    %990 = vmatprep.subr.mxu0 0.0
    %991 = vmatpush1.msra.mxu0 0.0
    %992 = vmatprep.subr.mxu0 0.0
    %993 = vmatpush1.msra.mxu0 0.0
    %994 = vmatprep.subr.mxu0 0.0
    %995 = vmatpush1.msra.mxu0 0.0
    %996 = vmatprep.subr.mxu0 0.0
    %997 = vmatpush1.msra.mxu0 0.0
    %998 = vmatprep.subr.mxu0 0.0
    %999 = vmatpush1.msra.mxu0 0.0
    %1000 = vmatprep.subr.mxu0 0.0
    %1001 = vmatpush1.msra.mxu0 0.0
    %1002 = vmatprep.subr.mxu0 0.0
    %1003 = vmatpush1.msra.mxu0 0.0
    %1004 = vmatprep.subr.mxu0 0.0
    %1005 = vmatpush1.msra.mxu0 0.0
    %1006 = vmatprep.subr.mxu0 0.0
    %1007 = vmatpush1.msra.mxu0 0.0
    %1008 = vmatprep.subr.mxu0 0.0
    %1009 = vmatpush1.msra.mxu0 0.0
    %1010 = vmatprep.subr.mxu0 0.0
    %1011 = vmatpush1.msra.mxu0 0.0
    %1012 = vmatprep.subr.mxu0 0.0
    %1013 = vmatpush1.msra.mxu0 0.0
    %1014 = vmatprep.subr.mxu0 0.0
    %1015 = vmatpush1.msra.mxu0 0.0
    %1016 = vmatprep.subr.mxu0 0.0
    %1017 = vmatpush1.msra.mxu0 0.0
    %1018 = vmatprep.subr.mxu0 0.0
    %1019 = vmatpush1.msra.mxu0 0.0
    %1020 = vmatprep.subr.mxu0 0.0
    %1021 = vmatpush1.msra.mxu0 0.0
    %1022 = vmatprep.subr.mxu0 0.0
    %1023 = vmatpush1.msra.mxu0 0.0
    %1024 = vmatprep.subr.mxu0 0.0
    %1025 = vmatpush1.msra.mxu0 0.0
    %1026 = vmatprep.mubr.f32.mxu0 0.0
    %1027 = vmatmul.mubr.f32.gmra.mrb[0].mxu0 %v960
    %v1028 = vpop.f32.mrb[0].mxu0
    %v1029 = vadd.f32 0.0, %v1028
    %v1030 = vpop.f32.mrb[0].mxu0
    %v1031 = vadd.f32 0.0, %v1030
    %1032 = vdwg.mxu0
    %v1035 = vrot.slane %v1029, 4
    %v1036 = vrot.slane %v1031, 4
    %v1039 = vadd.f32 %v289, %v1035
    %v1040 = vadd.f32 %v291, %v1036
    %v1041 = vxor.u32 %v1039, 2147483648
    %v1042 = vmul.f32 %v1041, 1.442695
    %v1043 = vpow.pop %v1042
    %v1044 = vadd.f32 %v1043, 1.0
    %v1045 = vrcp.pop %v1044
    %v1046 = vmul.f32 1.0, %v1045
    %v1047 = vtanh.pop %v1040
    %v1048 = vxor.u32 %v1040, 2147483648
    %v1049 = vmul.f32 %v1048, 1.442695
    %v1050 = vpow.pop %v1049
    %v1051 = vadd.f32 %v1050, 1.0
    %v1052 = vrcp.pop %v1051
    %v1053 = vmul.f32 1.0, %v1052
    %v1055 = vrot.slane %v953, 6
    %v1057 = vmul.f32 %v1046, %v1055
    %v1058 = vmul.f32 %v1046, %v1047
    %1060 = vrot.lane.b32.xlu0 %v1058, 64
    %v1061 = vpop.permute.xlu0 %1060
    %v1063 = vadd.f32 %v1057, %v1061
    %v1064 = vtanh.pop %v1063
    %v1065 = vmul.f32 %v1053, %v1064
    %v1067 = vrot.slane %v1065, 4
    %1068 = vrot.lane.b32.xlu0 %v1067, 64
    %v1069 = vpop.permute.xlu0 %1068
    %v1070 = vsel %vm311, %v1069, 0
    %1072 = vmatprep.subr.mxu0 %v294
    %1073 = vmatpush1.msra.mxu0 %v293
    %1074 = vmatprep.subr.mxu0 %v296
    %1075 = vmatpush1.msra.mxu0 %v295
    %1076 = vmatprep.subr.mxu0 %v298
    %1077 = vmatpush1.msra.mxu0 %v297
    %1078 = vmatprep.subr.mxu0 %v300
    %1079 = vmatpush1.msra.mxu0 %v299
    %1080 = vmatprep.subr.mxu0 %v302
    %1081 = vmatpush1.msra.mxu0 %v301
    %1082 = vmatprep.subr.mxu0 %v304
    %1083 = vmatpush1.msra.mxu0 %v303
    %1084 = vmatprep.subr.mxu0 %v306
    %1085 = vmatpush1.msra.mxu0 %v305
    %1086 = vmatprep.subr.mxu0 %v308
    %1087 = vmatpush1.msra.mxu0 %v307
    %1088 = vmatprep.subr.mxu0 0.0
    %1089 = vmatpush1.msra.mxu0 0.0
    %1090 = vmatprep.subr.mxu0 0.0
    %1091 = vmatpush1.msra.mxu0 0.0
    %1092 = vmatprep.subr.mxu0 0.0
    %1093 = vmatpush1.msra.mxu0 0.0
    %1094 = vmatprep.subr.mxu0 0.0
    %1095 = vmatpush1.msra.mxu0 0.0
    %1096 = vmatprep.subr.mxu0 0.0
    %1097 = vmatpush1.msra.mxu0 0.0
    %1098 = vmatprep.subr.mxu0 0.0
    %1099 = vmatpush1.msra.mxu0 0.0
    %1100 = vmatprep.subr.mxu0 0.0
    %1101 = vmatpush1.msra.mxu0 0.0
    %1102 = vmatprep.subr.mxu0 0.0
    %1103 = vmatpush1.msra.mxu0 0.0
    %1104 = vmatprep.subr.mxu0 0.0
    %1105 = vmatpush1.msra.mxu0 0.0
    %1106 = vmatprep.subr.mxu0 0.0
    %1107 = vmatpush1.msra.mxu0 0.0
    %1108 = vmatprep.subr.mxu0 0.0
    %1109 = vmatpush1.msra.mxu0 0.0
    %1110 = vmatprep.subr.mxu0 0.0
    %1111 = vmatpush1.msra.mxu0 0.0
    %1112 = vmatprep.subr.mxu0 0.0
    %1113 = vmatpush1.msra.mxu0 0.0
    %1114 = vmatprep.subr.mxu0 0.0
    %1115 = vmatpush1.msra.mxu0 0.0
    %1116 = vmatprep.subr.mxu0 0.0
    %1117 = vmatpush1.msra.mxu0 0.0
    %1118 = vmatprep.subr.mxu0 0.0
    %1119 = vmatpush1.msra.mxu0 0.0
    %1120 = vmatprep.subr.mxu0 0.0
    %1121 = vmatpush1.msra.mxu0 0.0
    %1122 = vmatprep.subr.mxu0 0.0
    %1123 = vmatpush1.msra.mxu0 0.0
    %1124 = vmatprep.subr.mxu0 0.0
    %1125 = vmatpush1.msra.mxu0 0.0
    %1126 = vmatprep.subr.mxu0 0.0
    %1127 = vmatpush1.msra.mxu0 0.0
    %1128 = vmatprep.subr.mxu0 0.0
    %1129 = vmatpush1.msra.mxu0 0.0
    %1130 = vmatprep.subr.mxu0 0.0
    %1131 = vmatpush1.msra.mxu0 0.0
    %1132 = vmatprep.subr.mxu0 0.0
    %1133 = vmatpush1.msra.mxu0 0.0
    %1134 = vmatprep.subr.mxu0 0.0
    %1135 = vmatpush1.msra.mxu0 0.0
    %1136 = vmatprep.mubr.f32.mxu0 0.0
    %1137 = vmatmul.mubr.f32.gmra.mrb[0].mxu0 %v1070
    %v1138 = vpop.f32.mrb[0].mxu0
    %v1139 = vadd.f32 0.0, %v1138
    %v1140 = vpop.f32.mrb[0].mxu0
    %v1141 = vadd.f32 0.0, %v1140
    %1142 = vdwg.mxu0
    %v1145 = vrot.slane %v1139, 2
    %v1146 = vrot.slane %v1141, 2
    %v1149 = vadd.f32 %v289, %v1145
    %v1150 = vadd.f32 %v291, %v1146
    %v1151 = vxor.u32 %v1149, 2147483648
    %v1152 = vmul.f32 %v1151, 1.442695
    %v1153 = vpow.pop %v1152
    %v1154 = vadd.f32 %v1153, 1.0
    %v1155 = vrcp.pop %v1154
    %v1156 = vmul.f32 1.0, %v1155
    %v1157 = vtanh.pop %v1150
    %v1158 = vxor.u32 %v1150, 2147483648
    %v1159 = vmul.f32 %v1158, 1.442695
    %v1160 = vpow.pop %v1159
    %v1161 = vadd.f32 %v1160, 1.0
    %v1162 = vrcp.pop %v1161
    %v1163 = vmul.f32 1.0, %v1162
    %v1165 = vrot.slane %v1063, 6
    %v1167 = vmul.f32 %v1156, %v1165
    %v1168 = vmul.f32 %v1156, %v1157
    %1170 = vrot.lane.b32.xlu0 %v1168, 64
    %v1171 = vpop.permute.xlu0 %1170
    %v1173 = vadd.f32 %v1167, %v1171
    %v1174 = vtanh.pop %v1173
    %v1175 = vmul.f32 %v1163, %v1174
    %vm1176 = vcmask 1041408
    %v1177 = vsel %vm1176, %v413, %v522
    %vm1178 = vcmask 1043456
    %v1179 = vsel %vm1178, %v1177, %v632
    %v1180 = vsel %vm209, %v1179, %v742
    %v1181 = vsel %vm1176, %v846, %v955
    %v1182 = vsel %vm1178, %v1181, %v1065
    %v1183 = vsel %vm209, %v1182, %v1175
    %v1184 = vld [vmem:[#allocation7] sm:$0xff]
    %v1185 = vld [vmem:[#allocation7 + $0x8] sm:$0xff]
    %v1186 = vld [vmem:[#allocation7 + $0x10] sm:$0xff]
    %v1187 = vld [vmem:[#allocation7 + $0x18] sm:$0xff]
    %v1188 = vld [vmem:[#allocation7 + $0x20] sm:$0xff]
    %v1189 = vld [vmem:[#allocation7 + $0x28] sm:$0xff]
    %v1190 = vld [vmem:[#allocation7 + $0x30] sm:$0xff]
    %v1191 = vld [vmem:[#allocation7 + $0x38] sm:$0xff]
    %v1192 = vld [vmem:[#allocation7 + $0x40] sm:$0xff]
    %v1193 = vld [vmem:[#allocation7 + $0x48] sm:$0xff]
    %v1194 = vld [vmem:[#allocation7 + $0x50] sm:$0xff]
    %v1195 = vld [vmem:[#allocation7 + $0x58] sm:$0xff]
    %v1196 = vld [vmem:[#allocation7 + $0x60] sm:$0xff]
    %v1197 = vld [vmem:[#allocation7 + $0x68] sm:$0xff]
    %v1198 = vld [vmem:[#allocation7 + $0x70] sm:$0xff]
    %v1199 = vld [vmem:[#allocation7 + $0x78] sm:$0xff]
    %v1200 = vld [vmem:[#allocation10] sm:$0x3]
    %v1202 = vlaneseq
    %v1203 = vshrl.u32 %v1202, 7
    %v1204 = vsub.s32 0, %v1203
    %v1205 = vrot.slane %v1200, %v1204
    %v1206 = vlaneseq
    %v1207 = vshrl.u32 %v1206, 7
    %v1208 = vsub.s32 1, %v1207
    %v1209 = vrot.slane %v1200, %v1208
    %1214 = vrot.lane.b32.xlu0 %v1180, 64
    %v1215 = vpop.permute.xlu0 %1214
    %1216 = vrot.lane.b32.xlu0 %v1183, 64
    %v1217 = vpop.permute.xlu0 %1216
    %v1218 = vsel %vm311, %v1215, 0
    %v1220 = vsel %vm311, %v1217, 0
    %1222 = vmatprep.subr.mxu0 %v1185
    %1223 = vmatpush1.msra.mxu0 %v1184
    %1224 = vmatprep.subr.mxu0 %v1187
    %1225 = vmatpush1.msra.mxu0 %v1186
    %1226 = vmatprep.subr.mxu0 %v1189
    %1227 = vmatpush1.msra.mxu0 %v1188
    %1228 = vmatprep.subr.mxu0 %v1191
    %1229 = vmatpush1.msra.mxu0 %v1190
    %1230 = vmatprep.subr.mxu0 %v1193
    %1231 = vmatpush1.msra.mxu0 %v1192
    %1232 = vmatprep.subr.mxu0 %v1195
    %1233 = vmatpush1.msra.mxu0 %v1194
    %1234 = vmatprep.subr.mxu0 %v1197
    %1235 = vmatpush1.msra.mxu0 %v1196
    %1236 = vmatprep.subr.mxu0 %v1199
    %1237 = vmatpush1.msra.mxu0 %v1198
    %1238 = vmatprep.subr.mxu0 0.0
    %1239 = vmatpush1.msra.mxu0 0.0
    %1240 = vmatprep.subr.mxu0 0.0
    %1241 = vmatpush1.msra.mxu0 0.0
    %1242 = vmatprep.subr.mxu0 0.0
    %1243 = vmatpush1.msra.mxu0 0.0
    %1244 = vmatprep.subr.mxu0 0.0
    %1245 = vmatpush1.msra.mxu0 0.0
    %1246 = vmatprep.subr.mxu0 0.0
    %1247 = vmatpush1.msra.mxu0 0.0
    %1248 = vmatprep.subr.mxu0 0.0
    %1249 = vmatpush1.msra.mxu0 0.0
    %1250 = vmatprep.subr.mxu0 0.0
    %1251 = vmatpush1.msra.mxu0 0.0
    %1252 = vmatprep.subr.mxu0 0.0
    %1253 = vmatpush1.msra.mxu0 0.0
    %1254 = vmatprep.subr.mxu0 0.0
    %1255 = vmatpush1.msra.mxu0 0.0
    %1256 = vmatprep.subr.mxu0 0.0
    %1257 = vmatpush1.msra.mxu0 0.0
    %1258 = vmatprep.subr.mxu0 0.0
    %1259 = vmatpush1.msra.mxu0 0.0
    %1260 = vmatprep.subr.mxu0 0.0
    %1261 = vmatpush1.msra.mxu0 0.0
    %1262 = vmatprep.subr.mxu0 0.0
    %1263 = vmatpush1.msra.mxu0 0.0
    %1264 = vmatprep.subr.mxu0 0.0
    %1265 = vmatpush1.msra.mxu0 0.0
    %1266 = vmatprep.subr.mxu0 0.0
    %1267 = vmatpush1.msra.mxu0 0.0
    %1268 = vmatprep.subr.mxu0 0.0
    %1269 = vmatpush1.msra.mxu0 0.0
    %1270 = vmatprep.subr.mxu0 0.0
    %1271 = vmatpush1.msra.mxu0 0.0
    %1272 = vmatprep.subr.mxu0 0.0
    %1273 = vmatpush1.msra.mxu0 0.0
    %1274 = vmatprep.subr.mxu0 0.0
    %1275 = vmatpush1.msra.mxu0 0.0
    %1276 = vmatprep.subr.mxu0 0.0
    %1277 = vmatpush1.msra.mxu0 0.0
    %1278 = vmatprep.subr.mxu0 0.0
    %1279 = vmatpush1.msra.mxu0 0.0
    %1280 = vmatprep.subr.mxu0 0.0
    %1281 = vmatpush1.msra.mxu0 0.0
    %1282 = vmatprep.subr.mxu0 0.0
    %1283 = vmatpush1.msra.mxu0 0.0
    %1284 = vmatprep.subr.mxu0 0.0
    %1285 = vmatpush1.msra.mxu0 0.0
    %1286 = vmatprep.mubr.f32.mxu0 0.0
    %1287 = vmatmul.mubr.f32.gmra.mrb[0].mxu0 %v1218
    %v1288 = vpop.f32.mrb[0].mxu0
    %v1289 = vadd.f32 %v1205, %v1288
    %v1290 = vpop.f32.mrb[0].mxu0
    %v1291 = vadd.f32 %v1209, %v1290
    %1292 = vmatprep.mubr.f32.mxu0 0.0
    %1293 = vmatmul.mubr.f32.gmra.mrb[0].mxu0 %v1220
    %v1294 = vpop.f32.mrb[0].mxu0
    %v1295 = vadd.f32 %v1205, %v1294
    %v1296 = vpop.f32.mrb[0].mxu0
    %v1297 = vadd.f32 %v1209, %v1296
    %1298 = vdwg.mxu0
    %v1299 = vld [vmem:[#allocation9] sm:$0xff]
    %v1300 = vld [vmem:[#allocation9 + $0x8] sm:$0xff]
    %v1301 = vld [vmem:[#allocation9 + $0x10] sm:$0xff]
    %v1302 = vld [vmem:[#allocation9 + $0x18] sm:$0xff]
    %v1303 = vld [vmem:[#allocation9 + $0x20] sm:$0xff]
    %v1304 = vld [vmem:[#allocation9 + $0x28] sm:$0xff]
    %v1305 = vld [vmem:[#allocation9 + $0x30] sm:$0xff]
    %v1306 = vld [vmem:[#allocation9 + $0x38] sm:$0xff]
    %v1307 = vld [vmem:[#allocation9 + $0x40] sm:$0xff]
    %v1308 = vld [vmem:[#allocation9 + $0x48] sm:$0xff]
    %v1309 = vld [vmem:[#allocation9 + $0x50] sm:$0xff]
    %v1310 = vld [vmem:[#allocation9 + $0x58] sm:$0xff]
    %v1311 = vld [vmem:[#allocation9 + $0x60] sm:$0xff]
    %v1312 = vld [vmem:[#allocation9 + $0x68] sm:$0xff]
    %v1313 = vld [vmem:[#allocation9 + $0x70] sm:$0xff]
    %v1314 = vld [vmem:[#allocation9 + $0x78] sm:$0xff]
    %s1315 = scalar_lea.vmem [#allocation2], 2
    %v1316 = vld [vmem:[%s1315] sm:$0x3]
    %s1317 = scalar_lea.vmem [#allocation4], 2
    %v1318 = vld [vmem:[%s1317] sm:$0x3]
    %v1320 = vsel %vm311, %v1316, 0
    %1322 = vmatprep.subr.mxu0 %v1300
    %1323 = vmatpush1.msra.mxu0 %v1299
    %1324 = vmatprep.subr.mxu0 %v1302
    %1325 = vmatpush1.msra.mxu0 %v1301
    %1326 = vmatprep.subr.mxu0 %v1304
    %1327 = vmatpush1.msra.mxu0 %v1303
    %1328 = vmatprep.subr.mxu0 %v1306
    %1329 = vmatpush1.msra.mxu0 %v1305
    %1330 = vmatprep.subr.mxu0 %v1308
    %1331 = vmatpush1.msra.mxu0 %v1307
    %1332 = vmatprep.subr.mxu0 %v1310
    %1333 = vmatpush1.msra.mxu0 %v1309
    %1334 = vmatprep.subr.mxu0 %v1312
    %1335 = vmatpush1.msra.mxu0 %v1311
    %1336 = vmatprep.subr.mxu0 %v1314
    %1337 = vmatpush1.msra.mxu0 %v1313
    %1338 = vmatprep.subr.mxu0 0.0
    %1339 = vmatpush1.msra.mxu0 0.0
    %1340 = vmatprep.subr.mxu0 0.0
    %1341 = vmatpush1.msra.mxu0 0.0
    %1342 = vmatprep.subr.mxu0 0.0
    %1343 = vmatpush1.msra.mxu0 0.0
    %1344 = vmatprep.subr.mxu0 0.0
    %1345 = vmatpush1.msra.mxu0 0.0
    %1346 = vmatprep.subr.mxu0 0.0
    %1347 = vmatpush1.msra.mxu0 0.0
    %1348 = vmatprep.subr.mxu0 0.0
    %1349 = vmatpush1.msra.mxu0 0.0
    %1350 = vmatprep.subr.mxu0 0.0
    %1351 = vmatpush1.msra.mxu0 0.0
    %1352 = vmatprep.subr.mxu0 0.0
    %1353 = vmatpush1.msra.mxu0 0.0
    %1354 = vmatprep.subr.mxu0 0.0
    %1355 = vmatpush1.msra.mxu0 0.0
    %1356 = vmatprep.subr.mxu0 0.0
    %1357 = vmatpush1.msra.mxu0 0.0
    %1358 = vmatprep.subr.mxu0 0.0
    %1359 = vmatpush1.msra.mxu0 0.0
    %1360 = vmatprep.subr.mxu0 0.0
    %1361 = vmatpush1.msra.mxu0 0.0
    %1362 = vmatprep.subr.mxu0 0.0
    %1363 = vmatpush1.msra.mxu0 0.0
    %1364 = vmatprep.subr.mxu0 0.0
    %1365 = vmatpush1.msra.mxu0 0.0
    %1366 = vmatprep.subr.mxu0 0.0
    %1367 = vmatpush1.msra.mxu0 0.0
    %1368 = vmatprep.subr.mxu0 0.0
    %1369 = vmatpush1.msra.mxu0 0.0
    %1370 = vmatprep.subr.mxu0 0.0
    %1371 = vmatpush1.msra.mxu0 0.0
    %1372 = vmatprep.subr.mxu0 0.0
    %1373 = vmatpush1.msra.mxu0 0.0
    %1374 = vmatprep.subr.mxu0 0.0
    %1375 = vmatpush1.msra.mxu0 0.0
    %1376 = vmatprep.subr.mxu0 0.0
    %1377 = vmatpush1.msra.mxu0 0.0
    %1378 = vmatprep.subr.mxu0 0.0
    %1379 = vmatpush1.msra.mxu0 0.0
    %1380 = vmatprep.subr.mxu0 0.0
    %1381 = vmatpush1.msra.mxu0 0.0
    %1382 = vmatprep.subr.mxu0 0.0
    %1383 = vmatpush1.msra.mxu0 0.0
    %1384 = vmatprep.subr.mxu0 0.0
    %1385 = vmatpush1.msra.mxu0 0.0
    %1386 = vmatprep.mubr.f32.mxu0 0.0
    %1387 = vmatmul.mubr.f32.gmra.mrb[0].mxu0 %v1320
    %v1388 = vpop.f32.mrb[0].mxu0
    %v1389 = vadd.f32 0.0, %v1388
    %v1390 = vpop.f32.mrb[0].mxu0
    %v1391 = vadd.f32 0.0, %v1390
    %1392 = vdwg.mxu0
    %v1393 = vadd.f32 %v1289, %v1389
    %v1394 = vadd.f32 %v1291, %v1391
    %v1395 = vxor.u32 %v1393, 2147483648
    %v1396 = vmul.f32 %v1395, 1.442695
    %v1397 = vpow.pop %v1396
    %v1398 = vadd.f32 %v1397, 1.0
    %v1399 = vrcp.pop %v1398
    %v1400 = vmul.f32 1.0, %v1399
    %v1401 = vtanh.pop %v1394
    %v1402 = vxor.u32 %v1394, 2147483648
    %v1403 = vmul.f32 %v1402, 1.442695
    %v1404 = vpow.pop %v1403
    %v1405 = vadd.f32 %v1404, 1.0
    %v1406 = vrcp.pop %v1405
    %v1407 = vmul.f32 1.0, %v1406
    %1409 = vrot.lane.b32.xlu0 %v1318, 64
    %v1410 = vpop.permute.xlu0 %1409
    %v1412 = vmul.f32 %v1400, %v1410
    %v1413 = vmul.f32 %v1400, %v1401
    %1415 = vrot.lane.b32.xlu0 %v1413, 64
    %v1416 = vpop.permute.xlu0 %1415
    %v1418 = vadd.f32 %v1412, %v1416
    %v1419 = vtanh.pop %v1418
    %v1420 = vmul.f32 %v1407, %v1419
    %1422 = vrot.lane.b32.xlu0 %v1420, 64
    %v1423 = vpop.permute.xlu0 %1422
    %v1424 = vsel %vm311, %v1423, 0
    %1426 = vmatprep.subr.mxu0 %v1300
    %1427 = vmatpush1.msra.mxu0 %v1299
    %1428 = vmatprep.subr.mxu0 %v1302
    %1429 = vmatpush1.msra.mxu0 %v1301
    %1430 = vmatprep.subr.mxu0 %v1304
    %1431 = vmatpush1.msra.mxu0 %v1303
    %1432 = vmatprep.subr.mxu0 %v1306
    %1433 = vmatpush1.msra.mxu0 %v1305
    %1434 = vmatprep.subr.mxu0 %v1308
    %1435 = vmatpush1.msra.mxu0 %v1307
    %1436 = vmatprep.subr.mxu0 %v1310
    %1437 = vmatpush1.msra.mxu0 %v1309
    %1438 = vmatprep.subr.mxu0 %v1312
    %1439 = vmatpush1.msra.mxu0 %v1311
    %1440 = vmatprep.subr.mxu0 %v1314
    %1441 = vmatpush1.msra.mxu0 %v1313
    %1442 = vmatprep.subr.mxu0 0.0
    %1443 = vmatpush1.msra.mxu0 0.0
    %1444 = vmatprep.subr.mxu0 0.0
    %1445 = vmatpush1.msra.mxu0 0.0
    %1446 = vmatprep.subr.mxu0 0.0
    %1447 = vmatpush1.msra.mxu0 0.0
    %1448 = vmatprep.subr.mxu0 0.0
    %1449 = vmatpush1.msra.mxu0 0.0
    %1450 = vmatprep.subr.mxu0 0.0
    %1451 = vmatpush1.msra.mxu0 0.0
    %1452 = vmatprep.subr.mxu0 0.0
    %1453 = vmatpush1.msra.mxu0 0.0
    %1454 = vmatprep.subr.mxu0 0.0
    %1455 = vmatpush1.msra.mxu0 0.0
    %1456 = vmatprep.subr.mxu0 0.0
    %1457 = vmatpush1.msra.mxu0 0.0
    %1458 = vmatprep.subr.mxu0 0.0
    %1459 = vmatpush1.msra.mxu0 0.0
    %1460 = vmatprep.subr.mxu0 0.0
    %1461 = vmatpush1.msra.mxu0 0.0
    %1462 = vmatprep.subr.mxu0 0.0
    %1463 = vmatpush1.msra.mxu0 0.0
    %1464 = vmatprep.subr.mxu0 0.0
    %1465 = vmatpush1.msra.mxu0 0.0
    %1466 = vmatprep.subr.mxu0 0.0
    %1467 = vmatpush1.msra.mxu0 0.0
    %1468 = vmatprep.subr.mxu0 0.0
    %1469 = vmatpush1.msra.mxu0 0.0
    %1470 = vmatprep.subr.mxu0 0.0
    %1471 = vmatpush1.msra.mxu0 0.0
    %1472 = vmatprep.subr.mxu0 0.0
    %1473 = vmatpush1.msra.mxu0 0.0
    %1474 = vmatprep.subr.mxu0 0.0
    %1475 = vmatpush1.msra.mxu0 0.0
    %1476 = vmatprep.subr.mxu0 0.0
    %1477 = vmatpush1.msra.mxu0 0.0
    %1478 = vmatprep.subr.mxu0 0.0
    %1479 = vmatpush1.msra.mxu0 0.0
    %1480 = vmatprep.subr.mxu0 0.0
    %1481 = vmatpush1.msra.mxu0 0.0
    %1482 = vmatprep.subr.mxu0 0.0
    %1483 = vmatpush1.msra.mxu0 0.0
    %1484 = vmatprep.subr.mxu0 0.0
    %1485 = vmatpush1.msra.mxu0 0.0
    %1486 = vmatprep.subr.mxu0 0.0
    %1487 = vmatpush1.msra.mxu0 0.0
    %1488 = vmatprep.subr.mxu0 0.0
    %1489 = vmatpush1.msra.mxu0 0.0
    %1490 = vmatprep.mubr.f32.mxu0 0.0
    %1491 = vmatmul.mubr.f32.gmra.mrb[0].mxu0 %v1424
    %v1492 = vpop.f32.mrb[0].mxu0
    %v1493 = vadd.f32 0.0, %v1492
    %v1494 = vpop.f32.mrb[0].mxu0
    %v1495 = vadd.f32 0.0, %v1494
    %1496 = vdwg.mxu0
    %v1499 = vrot.slane %v1493, 6
    %v1500 = vrot.slane %v1495, 6
    %v1503 = vadd.f32 %v1289, %v1499
    %v1504 = vadd.f32 %v1291, %v1500
    %v1505 = vxor.u32 %v1503, 2147483648
    %v1506 = vmul.f32 %v1505, 1.442695
    %v1507 = vpow.pop %v1506
    %v1508 = vadd.f32 %v1507, 1.0
    %v1509 = vrcp.pop %v1508
    %v1510 = vmul.f32 1.0, %v1509
    %v1511 = vtanh.pop %v1504
    %v1512 = vxor.u32 %v1504, 2147483648
    %v1513 = vmul.f32 %v1512, 1.442695
    %v1514 = vpow.pop %v1513
    %v1515 = vadd.f32 %v1514, 1.0
    %v1516 = vrcp.pop %v1515
    %v1517 = vmul.f32 1.0, %v1516
    %v1519 = vrot.slane %v1418, 6
    %v1521 = vmul.f32 %v1510, %v1519
    %v1522 = vmul.f32 %v1510, %v1511
    %1524 = vrot.lane.b32.xlu0 %v1522, 64
    %v1525 = vpop.permute.xlu0 %1524
    %v1527 = vadd.f32 %v1521, %v1525
    %v1528 = vtanh.pop %v1527
    %v1529 = vmul.f32 %v1517, %v1528
    %v1531 = vrot.slane %v1529, 2
    %1532 = vrot.lane.b32.xlu0 %v1531, 64
    %v1533 = vpop.permute.xlu0 %1532
    %v1534 = vsel %vm311, %v1533, 0
    %1536 = vmatprep.subr.mxu0 %v1300
    %1537 = vmatpush1.msra.mxu0 %v1299
    %1538 = vmatprep.subr.mxu0 %v1302
    %1539 = vmatpush1.msra.mxu0 %v1301
    %1540 = vmatprep.subr.mxu0 %v1304
    %1541 = vmatpush1.msra.mxu0 %v1303
    %1542 = vmatprep.subr.mxu0 %v1306
    %1543 = vmatpush1.msra.mxu0 %v1305
    %1544 = vmatprep.subr.mxu0 %v1308
    %1545 = vmatpush1.msra.mxu0 %v1307
    %1546 = vmatprep.subr.mxu0 %v1310
    %1547 = vmatpush1.msra.mxu0 %v1309
    %1548 = vmatprep.subr.mxu0 %v1312
    %1549 = vmatpush1.msra.mxu0 %v1311
    %1550 = vmatprep.subr.mxu0 %v1314
    %1551 = vmatpush1.msra.mxu0 %v1313
    %1552 = vmatprep.subr.mxu0 0.0
    %1553 = vmatpush1.msra.mxu0 0.0
    %1554 = vmatprep.subr.mxu0 0.0
    %1555 = vmatpush1.msra.mxu0 0.0
    %1556 = vmatprep.subr.mxu0 0.0
    %1557 = vmatpush1.msra.mxu0 0.0
    %1558 = vmatprep.subr.mxu0 0.0
    %1559 = vmatpush1.msra.mxu0 0.0
    %1560 = vmatprep.subr.mxu0 0.0
    %1561 = vmatpush1.msra.mxu0 0.0
    %1562 = vmatprep.subr.mxu0 0.0
    %1563 = vmatpush1.msra.mxu0 0.0
    %1564 = vmatprep.subr.mxu0 0.0
    %1565 = vmatpush1.msra.mxu0 0.0
    %1566 = vmatprep.subr.mxu0 0.0
    %1567 = vmatpush1.msra.mxu0 0.0
    %1568 = vmatprep.subr.mxu0 0.0
    %1569 = vmatpush1.msra.mxu0 0.0
    %1570 = vmatprep.subr.mxu0 0.0
    %1571 = vmatpush1.msra.mxu0 0.0
    %1572 = vmatprep.subr.mxu0 0.0
    %1573 = vmatpush1.msra.mxu0 0.0
    %1574 = vmatprep.subr.mxu0 0.0
    %1575 = vmatpush1.msra.mxu0 0.0
    %1576 = vmatprep.subr.mxu0 0.0
    %1577 = vmatpush1.msra.mxu0 0.0
    %1578 = vmatprep.subr.mxu0 0.0
    %1579 = vmatpush1.msra.mxu0 0.0
    %1580 = vmatprep.subr.mxu0 0.0
    %1581 = vmatpush1.msra.mxu0 0.0
    %1582 = vmatprep.subr.mxu0 0.0
    %1583 = vmatpush1.msra.mxu0 0.0
    %1584 = vmatprep.subr.mxu0 0.0
    %1585 = vmatpush1.msra.mxu0 0.0
    %1586 = vmatprep.subr.mxu0 0.0
    %1587 = vmatpush1.msra.mxu0 0.0
    %1588 = vmatprep.subr.mxu0 0.0
    %1589 = vmatpush1.msra.mxu0 0.0
    %1590 = vmatprep.subr.mxu0 0.0
    %1591 = vmatpush1.msra.mxu0 0.0
    %1592 = vmatprep.subr.mxu0 0.0
    %1593 = vmatpush1.msra.mxu0 0.0
    %1594 = vmatprep.subr.mxu0 0.0
    %1595 = vmatpush1.msra.mxu0 0.0
    %1596 = vmatprep.subr.mxu0 0.0
    %1597 = vmatpush1.msra.mxu0 0.0
    %1598 = vmatprep.subr.mxu0 0.0
    %1599 = vmatpush1.msra.mxu0 0.0
    %1600 = vmatprep.mubr.f32.mxu0 0.0
    %1601 = vmatmul.mubr.f32.gmra.mrb[0].mxu0 %v1534
    %v1602 = vpop.f32.mrb[0].mxu0
    %v1603 = vadd.f32 0.0, %v1602
    %v1604 = vpop.f32.mrb[0].mxu0
    %v1605 = vadd.f32 0.0, %v1604
    %1606 = vdwg.mxu0
    %v1609 = vrot.slane %v1603, 4
    %v1610 = vrot.slane %v1605, 4
    %v1613 = vadd.f32 %v1289, %v1609
    %v1614 = vadd.f32 %v1291, %v1610
    %v1615 = vxor.u32 %v1613, 2147483648
    %v1616 = vmul.f32 %v1615, 1.442695
    %v1617 = vpow.pop %v1616
    %v1618 = vadd.f32 %v1617, 1.0
    %v1619 = vrcp.pop %v1618
    %v1620 = vmul.f32 1.0, %v1619
    %v1621 = vtanh.pop %v1614
    %v1622 = vxor.u32 %v1614, 2147483648
    %v1623 = vmul.f32 %v1622, 1.442695
    %v1624 = vpow.pop %v1623
    %v1625 = vadd.f32 %v1624, 1.0
    %v1626 = vrcp.pop %v1625
    %v1627 = vmul.f32 1.0, %v1626
    %v1629 = vrot.slane %v1527, 6
    %v1631 = vmul.f32 %v1620, %v1629
    %v1632 = vmul.f32 %v1620, %v1621
    %1634 = vrot.lane.b32.xlu0 %v1632, 64
    %v1635 = vpop.permute.xlu0 %1634
    %v1637 = vadd.f32 %v1631, %v1635
    %v1638 = vtanh.pop %v1637
    %v1639 = vmul.f32 %v1627, %v1638
    %v1641 = vrot.slane %v1639, 4
    %1642 = vrot.lane.b32.xlu0 %v1641, 64
    %v1643 = vpop.permute.xlu0 %1642
    %v1644 = vsel %vm311, %v1643, 0
    %1646 = vmatprep.subr.mxu0 %v1300
    %1647 = vmatpush1.msra.mxu0 %v1299
    %1648 = vmatprep.subr.mxu0 %v1302
    %1649 = vmatpush1.msra.mxu0 %v1301
    %1650 = vmatprep.subr.mxu0 %v1304
    %1651 = vmatpush1.msra.mxu0 %v1303
    %1652 = vmatprep.subr.mxu0 %v1306
    %1653 = vmatpush1.msra.mxu0 %v1305
    %1654 = vmatprep.subr.mxu0 %v1308
    %1655 = vmatpush1.msra.mxu0 %v1307
    %1656 = vmatprep.subr.mxu0 %v1310
    %1657 = vmatpush1.msra.mxu0 %v1309
    %1658 = vmatprep.subr.mxu0 %v1312
    %1659 = vmatpush1.msra.mxu0 %v1311
    %1660 = vmatprep.subr.mxu0 %v1314
    %1661 = vmatpush1.msra.mxu0 %v1313
    %1662 = vmatprep.subr.mxu0 0.0
    %1663 = vmatpush1.msra.mxu0 0.0
    %1664 = vmatprep.subr.mxu0 0.0
    %1665 = vmatpush1.msra.mxu0 0.0
    %1666 = vmatprep.subr.mxu0 0.0
    %1667 = vmatpush1.msra.mxu0 0.0
    %1668 = vmatprep.subr.mxu0 0.0
    %1669 = vmatpush1.msra.mxu0 0.0
    %1670 = vmatprep.subr.mxu0 0.0
    %1671 = vmatpush1.msra.mxu0 0.0
    %1672 = vmatprep.subr.mxu0 0.0
    %1673 = vmatpush1.msra.mxu0 0.0
    %1674 = vmatprep.subr.mxu0 0.0
    %1675 = vmatpush1.msra.mxu0 0.0
    %1676 = vmatprep.subr.mxu0 0.0
    %1677 = vmatpush1.msra.mxu0 0.0
    %1678 = vmatprep.subr.mxu0 0.0
    %1679 = vmatpush1.msra.mxu0 0.0
    %1680 = vmatprep.subr.mxu0 0.0
    %1681 = vmatpush1.msra.mxu0 0.0
    %1682 = vmatprep.subr.mxu0 0.0
    %1683 = vmatpush1.msra.mxu0 0.0
    %1684 = vmatprep.subr.mxu0 0.0
    %1685 = vmatpush1.msra.mxu0 0.0
    %1686 = vmatprep.subr.mxu0 0.0
    %1687 = vmatpush1.msra.mxu0 0.0
    %1688 = vmatprep.subr.mxu0 0.0
    %1689 = vmatpush1.msra.mxu0 0.0
    %1690 = vmatprep.subr.mxu0 0.0
    %1691 = vmatpush1.msra.mxu0 0.0
    %1692 = vmatprep.subr.mxu0 0.0
    %1693 = vmatpush1.msra.mxu0 0.0
    %1694 = vmatprep.subr.mxu0 0.0
    %1695 = vmatpush1.msra.mxu0 0.0
    %1696 = vmatprep.subr.mxu0 0.0
    %1697 = vmatpush1.msra.mxu0 0.0
    %1698 = vmatprep.subr.mxu0 0.0
    %1699 = vmatpush1.msra.mxu0 0.0
    %1700 = vmatprep.subr.mxu0 0.0
    %1701 = vmatpush1.msra.mxu0 0.0
    %1702 = vmatprep.subr.mxu0 0.0
    %1703 = vmatpush1.msra.mxu0 0.0
    %1704 = vmatprep.subr.mxu0 0.0
    %1705 = vmatpush1.msra.mxu0 0.0
    %1706 = vmatprep.subr.mxu0 0.0
    %1707 = vmatpush1.msra.mxu0 0.0
    %1708 = vmatprep.subr.mxu0 0.0
    %1709 = vmatpush1.msra.mxu0 0.0
    %1710 = vmatprep.mubr.f32.mxu0 0.0
    %1711 = vmatmul.mubr.f32.gmra.mrb[0].mxu0 %v1644
    %v1712 = vpop.f32.mrb[0].mxu0
    %v1713 = vadd.f32 0.0, %v1712
    %v1714 = vpop.f32.mrb[0].mxu0
    %v1715 = vadd.f32 0.0, %v1714
    %1716 = vdwg.mxu0
    %v1719 = vrot.slane %v1713, 2
    %v1720 = vrot.slane %v1715, 2
    %v1723 = vadd.f32 %v1289, %v1719
    %v1724 = vadd.f32 %v1291, %v1720
    %v1725 = vxor.u32 %v1723, 2147483648
    %v1726 = vmul.f32 %v1725, 1.442695
    %v1727 = vpow.pop %v1726
    %v1728 = vadd.f32 %v1727, 1.0
    %v1729 = vrcp.pop %v1728
    %v1730 = vmul.f32 1.0, %v1729
    %v1731 = vtanh.pop %v1724
    %v1732 = vxor.u32 %v1724, 2147483648
    %v1733 = vmul.f32 %v1732, 1.442695
    %v1734 = vpow.pop %v1733
    %v1735 = vadd.f32 %v1734, 1.0
    %v1736 = vrcp.pop %v1735
    %v1737 = vmul.f32 1.0, %v1736
    %v1739 = vrot.slane %v1637, 6
    %v1741 = vmul.f32 %v1730, %v1739
    %v1742 = vmul.f32 %v1730, %v1731
    %1744 = vrot.lane.b32.xlu0 %v1742, 64
    %v1745 = vpop.permute.xlu0 %1744
    %v1747 = vadd.f32 %v1741, %v1745
    %v1748 = vtanh.pop %v1747
    %v1749 = vmul.f32 %v1737, %v1748
    %v1751 = vrot.slane %v1749, 6
    %1752 = vrot.lane.b32.xlu0 %v1751, 64
    %v1753 = vpop.permute.xlu0 %1752
    %v1754 = vsel %vm311, %v1753, 0
    %1756 = vmatprep.subr.mxu0 %v1300
    %1757 = vmatpush1.msra.mxu0 %v1299
    %1758 = vmatprep.subr.mxu0 %v1302
    %1759 = vmatpush1.msra.mxu0 %v1301
    %1760 = vmatprep.subr.mxu0 %v1304
    %1761 = vmatpush1.msra.mxu0 %v1303
    %1762 = vmatprep.subr.mxu0 %v1306
    %1763 = vmatpush1.msra.mxu0 %v1305
    %1764 = vmatprep.subr.mxu0 %v1308
    %1765 = vmatpush1.msra.mxu0 %v1307
    %1766 = vmatprep.subr.mxu0 %v1310
    %1767 = vmatpush1.msra.mxu0 %v1309
    %1768 = vmatprep.subr.mxu0 %v1312
    %1769 = vmatpush1.msra.mxu0 %v1311
    %1770 = vmatprep.subr.mxu0 %v1314
    %1771 = vmatpush1.msra.mxu0 %v1313
    %1772 = vmatprep.subr.mxu0 0.0
    %1773 = vmatpush1.msra.mxu0 0.0
    %1774 = vmatprep.subr.mxu0 0.0
    %1775 = vmatpush1.msra.mxu0 0.0
    %1776 = vmatprep.subr.mxu0 0.0
    %1777 = vmatpush1.msra.mxu0 0.0
    %1778 = vmatprep.subr.mxu0 0.0
    %1779 = vmatpush1.msra.mxu0 0.0
    %1780 = vmatprep.subr.mxu0 0.0
    %1781 = vmatpush1.msra.mxu0 0.0
    %1782 = vmatprep.subr.mxu0 0.0
    %1783 = vmatpush1.msra.mxu0 0.0
    %1784 = vmatprep.subr.mxu0 0.0
    %1785 = vmatpush1.msra.mxu0 0.0
    %1786 = vmatprep.subr.mxu0 0.0
    %1787 = vmatpush1.msra.mxu0 0.0
    %1788 = vmatprep.subr.mxu0 0.0
    %1789 = vmatpush1.msra.mxu0 0.0
    %1790 = vmatprep.subr.mxu0 0.0
    %1791 = vmatpush1.msra.mxu0 0.0
    %1792 = vmatprep.subr.mxu0 0.0
    %1793 = vmatpush1.msra.mxu0 0.0
    %1794 = vmatprep.subr.mxu0 0.0
    %1795 = vmatpush1.msra.mxu0 0.0
    %1796 = vmatprep.subr.mxu0 0.0
    %1797 = vmatpush1.msra.mxu0 0.0
    %1798 = vmatprep.subr.mxu0 0.0
    %1799 = vmatpush1.msra.mxu0 0.0
    %1800 = vmatprep.subr.mxu0 0.0
    %1801 = vmatpush1.msra.mxu0 0.0
    %1802 = vmatprep.subr.mxu0 0.0
    %1803 = vmatpush1.msra.mxu0 0.0
    %1804 = vmatprep.subr.mxu0 0.0
    %1805 = vmatpush1.msra.mxu0 0.0
    %1806 = vmatprep.subr.mxu0 0.0
    %1807 = vmatpush1.msra.mxu0 0.0
    %1808 = vmatprep.subr.mxu0 0.0
    %1809 = vmatpush1.msra.mxu0 0.0
    %1810 = vmatprep.subr.mxu0 0.0
    %1811 = vmatpush1.msra.mxu0 0.0
    %1812 = vmatprep.subr.mxu0 0.0
    %1813 = vmatpush1.msra.mxu0 0.0
    %1814 = vmatprep.subr.mxu0 0.0
    %1815 = vmatpush1.msra.mxu0 0.0
    %1816 = vmatprep.subr.mxu0 0.0
    %1817 = vmatpush1.msra.mxu0 0.0
    %1818 = vmatprep.subr.mxu0 0.0
    %1819 = vmatpush1.msra.mxu0 0.0
    %1820 = vmatprep.mubr.f32.mxu0 0.0
    %1821 = vmatmul.mubr.f32.gmra.mrb[0].mxu0 %v1754
    %v1822 = vpop.f32.mrb[0].mxu0
    %v1823 = vadd.f32 0.0, %v1822
    %v1824 = vpop.f32.mrb[0].mxu0
    %v1825 = vadd.f32 0.0, %v1824
    %1826 = vdwg.mxu0
    %v1827 = vadd.f32 %v1295, %v1823
    %v1828 = vadd.f32 %v1297, %v1825
    %v1829 = vxor.u32 %v1827, 2147483648
    %v1830 = vmul.f32 %v1829, 1.442695
    %v1831 = vpow.pop %v1830
    %v1832 = vadd.f32 %v1831, 1.0
    %v1833 = vrcp.pop %v1832
    %v1834 = vmul.f32 1.0, %v1833
    %v1835 = vtanh.pop %v1828
    %v1836 = vxor.u32 %v1828, 2147483648
    %v1837 = vmul.f32 %v1836, 1.442695
    %v1838 = vpow.pop %v1837
    %v1839 = vadd.f32 %v1838, 1.0
    %v1840 = vrcp.pop %v1839
    %v1841 = vmul.f32 1.0, %v1840
    %v1843 = vrot.slane %v1747, 6
    %v1845 = vmul.f32 %v1834, %v1843
    %v1846 = vmul.f32 %v1834, %v1835
    %1848 = vrot.lane.b32.xlu0 %v1846, 64
    %v1849 = vpop.permute.xlu0 %1848
    %v1851 = vadd.f32 %v1845, %v1849
    %v1852 = vtanh.pop %v1851
    %v1853 = vmul.f32 %v1841, %v1852
    %1855 = vrot.lane.b32.xlu0 %v1853, 64
    %v1856 = vpop.permute.xlu0 %1855
    %v1857 = vsel %vm311, %v1856, 0
    %1859 = vmatprep.subr.mxu0 %v1300
    %1860 = vmatpush1.msra.mxu0 %v1299
    %1861 = vmatprep.subr.mxu0 %v1302
    %1862 = vmatpush1.msra.mxu0 %v1301
    %1863 = vmatprep.subr.mxu0 %v1304
    %1864 = vmatpush1.msra.mxu0 %v1303
    %1865 = vmatprep.subr.mxu0 %v1306
    %1866 = vmatpush1.msra.mxu0 %v1305
    %1867 = vmatprep.subr.mxu0 %v1308
    %1868 = vmatpush1.msra.mxu0 %v1307
    %1869 = vmatprep.subr.mxu0 %v1310
    %1870 = vmatpush1.msra.mxu0 %v1309
    %1871 = vmatprep.subr.mxu0 %v1312
    %1872 = vmatpush1.msra.mxu0 %v1311
    %1873 = vmatprep.subr.mxu0 %v1314
    %1874 = vmatpush1.msra.mxu0 %v1313
    %1875 = vmatprep.subr.mxu0 0.0
    %1876 = vmatpush1.msra.mxu0 0.0
    %1877 = vmatprep.subr.mxu0 0.0
    %1878 = vmatpush1.msra.mxu0 0.0
    %1879 = vmatprep.subr.mxu0 0.0
    %1880 = vmatpush1.msra.mxu0 0.0
    %1881 = vmatprep.subr.mxu0 0.0
    %1882 = vmatpush1.msra.mxu0 0.0
    %1883 = vmatprep.subr.mxu0 0.0
    %1884 = vmatpush1.msra.mxu0 0.0
    %1885 = vmatprep.subr.mxu0 0.0
    %1886 = vmatpush1.msra.mxu0 0.0
    %1887 = vmatprep.subr.mxu0 0.0
    %1888 = vmatpush1.msra.mxu0 0.0
    %1889 = vmatprep.subr.mxu0 0.0
    %1890 = vmatpush1.msra.mxu0 0.0
    %1891 = vmatprep.subr.mxu0 0.0
    %1892 = vmatpush1.msra.mxu0 0.0
    %1893 = vmatprep.subr.mxu0 0.0
    %1894 = vmatpush1.msra.mxu0 0.0
    %1895 = vmatprep.subr.mxu0 0.0
    %1896 = vmatpush1.msra.mxu0 0.0
    %1897 = vmatprep.subr.mxu0 0.0
    %1898 = vmatpush1.msra.mxu0 0.0
    %1899 = vmatprep.subr.mxu0 0.0
    %1900 = vmatpush1.msra.mxu0 0.0
    %1901 = vmatprep.subr.mxu0 0.0
    %1902 = vmatpush1.msra.mxu0 0.0
    %1903 = vmatprep.subr.mxu0 0.0
    %1904 = vmatpush1.msra.mxu0 0.0
    %1905 = vmatprep.subr.mxu0 0.0
    %1906 = vmatpush1.msra.mxu0 0.0
    %1907 = vmatprep.subr.mxu0 0.0
    %1908 = vmatpush1.msra.mxu0 0.0
    %1909 = vmatprep.subr.mxu0 0.0
    %1910 = vmatpush1.msra.mxu0 0.0
    %1911 = vmatprep.subr.mxu0 0.0
    %1912 = vmatpush1.msra.mxu0 0.0
    %1913 = vmatprep.subr.mxu0 0.0
    %1914 = vmatpush1.msra.mxu0 0.0
    %1915 = vmatprep.subr.mxu0 0.0
    %1916 = vmatpush1.msra.mxu0 0.0
    %1917 = vmatprep.subr.mxu0 0.0
    %1918 = vmatpush1.msra.mxu0 0.0
    %1919 = vmatprep.subr.mxu0 0.0
    %1920 = vmatpush1.msra.mxu0 0.0
    %1921 = vmatprep.subr.mxu0 0.0
    %1922 = vmatpush1.msra.mxu0 0.0
    %1923 = vmatprep.mubr.f32.mxu0 0.0
    %1924 = vmatmul.mubr.f32.gmra.mrb[0].mxu0 %v1857
    %v1925 = vpop.f32.mrb[0].mxu0
    %v1926 = vadd.f32 0.0, %v1925
    %v1927 = vpop.f32.mrb[0].mxu0
    %v1928 = vadd.f32 0.0, %v1927
    %1929 = vdwg.mxu0
    %v1932 = vrot.slane %v1926, 6
    %v1933 = vrot.slane %v1928, 6
    %v1936 = vadd.f32 %v1295, %v1932
    %v1937 = vadd.f32 %v1297, %v1933
    %v1938 = vxor.u32 %v1936, 2147483648
    %v1939 = vmul.f32 %v1938, 1.442695
    %v1940 = vpow.pop %v1939
    %v1941 = vadd.f32 %v1940, 1.0
    %v1942 = vrcp.pop %v1941
    %v1943 = vmul.f32 1.0, %v1942
    %v1944 = vtanh.pop %v1937
    %v1945 = vxor.u32 %v1937, 2147483648
    %v1946 = vmul.f32 %v1945, 1.442695
    %v1947 = vpow.pop %v1946
    %v1948 = vadd.f32 %v1947, 1.0
    %v1949 = vrcp.pop %v1948
    %v1950 = vmul.f32 1.0, %v1949
    %v1952 = vrot.slane %v1851, 6
    %v1954 = vmul.f32 %v1943, %v1952
    %v1955 = vmul.f32 %v1943, %v1944
    %1957 = vrot.lane.b32.xlu0 %v1955, 64
    %v1958 = vpop.permute.xlu0 %1957
    %v1960 = vadd.f32 %v1954, %v1958
    %v1961 = vtanh.pop %v1960
    %v1962 = vmul.f32 %v1950, %v1961
    %v1964 = vrot.slane %v1962, 2
    %1965 = vrot.lane.b32.xlu0 %v1964, 64
    %v1966 = vpop.permute.xlu0 %1965
    %v1967 = vsel %vm311, %v1966, 0
    %1969 = vmatprep.subr.mxu0 %v1300
    %1970 = vmatpush1.msra.mxu0 %v1299
    %1971 = vmatprep.subr.mxu0 %v1302
    %1972 = vmatpush1.msra.mxu0 %v1301
    %1973 = vmatprep.subr.mxu0 %v1304
    %1974 = vmatpush1.msra.mxu0 %v1303
    %1975 = vmatprep.subr.mxu0 %v1306
    %1976 = vmatpush1.msra.mxu0 %v1305
    %1977 = vmatprep.subr.mxu0 %v1308
    %1978 = vmatpush1.msra.mxu0 %v1307
    %1979 = vmatprep.subr.mxu0 %v1310
    %1980 = vmatpush1.msra.mxu0 %v1309
    %1981 = vmatprep.subr.mxu0 %v1312
    %1982 = vmatpush1.msra.mxu0 %v1311
    %1983 = vmatprep.subr.mxu0 %v1314
    %1984 = vmatpush1.msra.mxu0 %v1313
    %1985 = vmatprep.subr.mxu0 0.0
    %1986 = vmatpush1.msra.mxu0 0.0
    %1987 = vmatprep.subr.mxu0 0.0
    %1988 = vmatpush1.msra.mxu0 0.0
    %1989 = vmatprep.subr.mxu0 0.0
    %1990 = vmatpush1.msra.mxu0 0.0
    %1991 = vmatprep.subr.mxu0 0.0
    %1992 = vmatpush1.msra.mxu0 0.0
    %1993 = vmatprep.subr.mxu0 0.0
    %1994 = vmatpush1.msra.mxu0 0.0
    %1995 = vmatprep.subr.mxu0 0.0
    %1996 = vmatpush1.msra.mxu0 0.0
    %1997 = vmatprep.subr.mxu0 0.0
    %1998 = vmatpush1.msra.mxu0 0.0
    %1999 = vmatprep.subr.mxu0 0.0
    %2000 = vmatpush1.msra.mxu0 0.0
    %2001 = vmatprep.subr.mxu0 0.0
    %2002 = vmatpush1.msra.mxu0 0.0
    %2003 = vmatprep.subr.mxu0 0.0
    %2004 = vmatpush1.msra.mxu0 0.0
    %2005 = vmatprep.subr.mxu0 0.0
    %2006 = vmatpush1.msra.mxu0 0.0
    %2007 = vmatprep.subr.mxu0 0.0
    %2008 = vmatpush1.msra.mxu0 0.0
    %2009 = vmatprep.subr.mxu0 0.0
    %2010 = vmatpush1.msra.mxu0 0.0
    %2011 = vmatprep.subr.mxu0 0.0
    %2012 = vmatpush1.msra.mxu0 0.0
    %2013 = vmatprep.subr.mxu0 0.0
    %2014 = vmatpush1.msra.mxu0 0.0
    %2015 = vmatprep.subr.mxu0 0.0
    %2016 = vmatpush1.msra.mxu0 0.0
    %2017 = vmatprep.subr.mxu0 0.0
    %2018 = vmatpush1.msra.mxu0 0.0
    %2019 = vmatprep.subr.mxu0 0.0
    %2020 = vmatpush1.msra.mxu0 0.0
    %2021 = vmatprep.subr.mxu0 0.0
    %2022 = vmatpush1.msra.mxu0 0.0
    %2023 = vmatprep.subr.mxu0 0.0
    %2024 = vmatpush1.msra.mxu0 0.0
    %2025 = vmatprep.subr.mxu0 0.0
    %2026 = vmatpush1.msra.mxu0 0.0
    %2027 = vmatprep.subr.mxu0 0.0
    %2028 = vmatpush1.msra.mxu0 0.0
    %2029 = vmatprep.subr.mxu0 0.0
    %2030 = vmatpush1.msra.mxu0 0.0
    %2031 = vmatprep.subr.mxu0 0.0
    %2032 = vmatpush1.msra.mxu0 0.0
    %2033 = vmatprep.mubr.f32.mxu0 0.0
    %2034 = vmatmul.mubr.f32.gmra.mrb[0].mxu0 %v1967
    %v2035 = vpop.f32.mrb[0].mxu0
    %v2036 = vadd.f32 0.0, %v2035
    %v2037 = vpop.f32.mrb[0].mxu0
    %v2038 = vadd.f32 0.0, %v2037
    %2039 = vdwg.mxu0
    %v2042 = vrot.slane %v2036, 4
    %v2043 = vrot.slane %v2038, 4
    %v2046 = vadd.f32 %v1295, %v2042
    %v2047 = vadd.f32 %v1297, %v2043
    %v2048 = vxor.u32 %v2046, 2147483648
    %v2049 = vmul.f32 %v2048, 1.442695
    %v2050 = vpow.pop %v2049
    %v2051 = vadd.f32 %v2050, 1.0
    %v2052 = vrcp.pop %v2051
    %v2053 = vmul.f32 1.0, %v2052
    %v2054 = vtanh.pop %v2047
    %v2055 = vxor.u32 %v2047, 2147483648
    %v2056 = vmul.f32 %v2055, 1.442695
    %v2057 = vpow.pop %v2056
    %v2058 = vadd.f32 %v2057, 1.0
    %v2059 = vrcp.pop %v2058
    %v2060 = vmul.f32 1.0, %v2059
    %v2062 = vrot.slane %v1960, 6
    %v2064 = vmul.f32 %v2053, %v2062
    %v2065 = vmul.f32 %v2053, %v2054
    %2067 = vrot.lane.b32.xlu0 %v2065, 64
    %v2068 = vpop.permute.xlu0 %2067
    %v2070 = vadd.f32 %v2064, %v2068
    %v2071 = vtanh.pop %v2070
    %v2072 = vmul.f32 %v2060, %v2071
    %v2074 = vrot.slane %v2072, 4
    %2075 = vrot.lane.b32.xlu0 %v2074, 64
    %v2076 = vpop.permute.xlu0 %2075
    %v2077 = vsel %vm311, %v2076, 0
    %2079 = vmatprep.subr.mxu0 %v1300
    %2080 = vmatpush1.msra.mxu0 %v1299
    %2081 = vmatprep.subr.mxu0 %v1302
    %2082 = vmatpush1.msra.mxu0 %v1301
    %2083 = vmatprep.subr.mxu0 %v1304
    %2084 = vmatpush1.msra.mxu0 %v1303
    %2085 = vmatprep.subr.mxu0 %v1306
    %2086 = vmatpush1.msra.mxu0 %v1305
    %2087 = vmatprep.subr.mxu0 %v1308
    %2088 = vmatpush1.msra.mxu0 %v1307
    %2089 = vmatprep.subr.mxu0 %v1310
    %2090 = vmatpush1.msra.mxu0 %v1309
    %2091 = vmatprep.subr.mxu0 %v1312
    %2092 = vmatpush1.msra.mxu0 %v1311
    %2093 = vmatprep.subr.mxu0 %v1314
    %2094 = vmatpush1.msra.mxu0 %v1313
    %2095 = vmatprep.subr.mxu0 0.0
    %2096 = vmatpush1.msra.mxu0 0.0
    %2097 = vmatprep.subr.mxu0 0.0
    %2098 = vmatpush1.msra.mxu0 0.0
    %2099 = vmatprep.subr.mxu0 0.0
    %2100 = vmatpush1.msra.mxu0 0.0
    %2101 = vmatprep.subr.mxu0 0.0
    %2102 = vmatpush1.msra.mxu0 0.0
    %2103 = vmatprep.subr.mxu0 0.0
    %2104 = vmatpush1.msra.mxu0 0.0
    %2105 = vmatprep.subr.mxu0 0.0
    %2106 = vmatpush1.msra.mxu0 0.0
    %2107 = vmatprep.subr.mxu0 0.0
    %2108 = vmatpush1.msra.mxu0 0.0
    %2109 = vmatprep.subr.mxu0 0.0
    %2110 = vmatpush1.msra.mxu0 0.0
    %2111 = vmatprep.subr.mxu0 0.0
    %2112 = vmatpush1.msra.mxu0 0.0
    %2113 = vmatprep.subr.mxu0 0.0
    %2114 = vmatpush1.msra.mxu0 0.0
    %2115 = vmatprep.subr.mxu0 0.0
    %2116 = vmatpush1.msra.mxu0 0.0
    %2117 = vmatprep.subr.mxu0 0.0
    %2118 = vmatpush1.msra.mxu0 0.0
    %2119 = vmatprep.subr.mxu0 0.0
    %2120 = vmatpush1.msra.mxu0 0.0
    %2121 = vmatprep.subr.mxu0 0.0
    %2122 = vmatpush1.msra.mxu0 0.0
    %2123 = vmatprep.subr.mxu0 0.0
    %2124 = vmatpush1.msra.mxu0 0.0
    %2125 = vmatprep.subr.mxu0 0.0
    %2126 = vmatpush1.msra.mxu0 0.0
    %2127 = vmatprep.subr.mxu0 0.0
    %2128 = vmatpush1.msra.mxu0 0.0
    %2129 = vmatprep.subr.mxu0 0.0
    %2130 = vmatpush1.msra.mxu0 0.0
    %2131 = vmatprep.subr.mxu0 0.0
    %2132 = vmatpush1.msra.mxu0 0.0
    %2133 = vmatprep.subr.mxu0 0.0
    %2134 = vmatpush1.msra.mxu0 0.0
    %2135 = vmatprep.subr.mxu0 0.0
    %2136 = vmatpush1.msra.mxu0 0.0
    %2137 = vmatprep.subr.mxu0 0.0
    %2138 = vmatpush1.msra.mxu0 0.0
    %2139 = vmatprep.subr.mxu0 0.0
    %2140 = vmatpush1.msra.mxu0 0.0
    %2141 = vmatprep.subr.mxu0 0.0
    %2142 = vmatpush1.msra.mxu0 0.0
    %2143 = vmatprep.mubr.f32.mxu0 0.0
    %2144 = vmatmul.mubr.f32.gmra.mrb[0].mxu0 %v2077
    %v2145 = vpop.f32.mrb[0].mxu0
    %v2146 = vadd.f32 0.0, %v2145
    %v2147 = vpop.f32.mrb[0].mxu0
    %v2148 = vadd.f32 0.0, %v2147
    %2149 = vdwg.mxu0
    %v2152 = vrot.slane %v2146, 2
    %v2153 = vrot.slane %v2148, 2
    %v2156 = vadd.f32 %v1295, %v2152
    %v2157 = vadd.f32 %v1297, %v2153
    %v2158 = vxor.u32 %v2156, 2147483648
    %v2159 = vmul.f32 %v2158, 1.442695
    %v2160 = vpow.pop %v2159
    %v2161 = vadd.f32 %v2160, 1.0
    %v2162 = vrcp.pop %v2161
    %v2163 = vmul.f32 1.0, %v2162
    %v2164 = vtanh.pop %v2157
    %v2165 = vxor.u32 %v2157, 2147483648
    %v2166 = vmul.f32 %v2165, 1.442695
    %v2167 = vpow.pop %v2166
    %v2168 = vadd.f32 %v2167, 1.0
    %v2169 = vrcp.pop %v2168
    %v2170 = vmul.f32 1.0, %v2169
    %v2172 = vrot.slane %v2070, 6
    %v2174 = vmul.f32 %v2163, %v2172
    %v2175 = vmul.f32 %v2163, %v2164
    %2177 = vrot.lane.b32.xlu0 %v2175, 64
    %v2178 = vpop.permute.xlu0 %2177
    %v2180 = vadd.f32 %v2174, %v2178
    %v2181 = vtanh.pop %v2180
    %v2182 = vmul.f32 %v2170, %v2181
    %v2183 = vld [vmem:[%s10] sm:$0xff]
    %v2184 = vld [vmem:[%s10 + $0x8] sm:$0xff]
    %v2185 = vld [vmem:[%s10 + $0x10] sm:$0xff]
    %v2186 = vld [vmem:[%s10 + $0x18] sm:$0xff]
    %v2187 = vld [vmem:[%s10 + $0x20] sm:$0xff]
    %v2188 = vld [vmem:[%s10 + $0x28] sm:$0xff]
    %v2189 = vld [vmem:[%s10 + $0x30] sm:$0xff]
    %v2190 = vld [vmem:[%s10 + $0x38] sm:$0xff]
    %v2191 = vld [vmem:[#allocation12] sm:$0x3]
    %v2192 = vld [vmem:[#allocation13] sm:$0xff]
    %v2193 = vld [vmem:[#allocation13 + $0x8] sm:$0xff]
    %v2194 = vld [vmem:[#allocation13 + $0x10] sm:$0xff]
    %v2195 = vld [vmem:[#allocation13 + $0x18] sm:$0x7]
    %vm2196 = vcmask 220160
    %v2198 = vsel %vm2196, %v2191, 0
    %vm2200 = vcmask 1042432
    %v2202 = vsel %vm2200, %v2195, 0
    %2204 = vmatprep.subr.mxu0 0.0
    %2205 = vmatpush1.msra.mxu0 %v2192
    %2206 = vmatprep.subr.mxu0 0.0
    %2207 = vmatpush1.msra.mxu0 %v2193
    %2208 = vmatprep.subr.mxu0 0.0
    %2209 = vmatpush1.msra.mxu0 %v2194
    %2210 = vmatprep.subr.mxu0 0.0
    %2211 = vmatpush1.msra.mxu0 %v2202
    %2212 = vmatprep.subr.mxu0 0.0
    %2213 = vmatpush1.msra.mxu0 0.0
    %2214 = vmatprep.subr.mxu0 0.0
    %2215 = vmatpush1.msra.mxu0 0.0
    %2216 = vmatprep.subr.mxu0 0.0
    %2217 = vmatpush1.msra.mxu0 0.0
    %2218 = vmatprep.subr.mxu0 0.0
    %2219 = vmatpush1.msra.mxu0 0.0
    %2220 = vmatprep.subr.mxu0 0.0
    %2221 = vmatpush1.msra.mxu0 0.0
    %2222 = vmatprep.subr.mxu0 0.0
    %2223 = vmatpush1.msra.mxu0 0.0
    %2224 = vmatprep.subr.mxu0 0.0
    %2225 = vmatpush1.msra.mxu0 0.0
    %2226 = vmatprep.subr.mxu0 0.0
    %2227 = vmatpush1.msra.mxu0 0.0
    %2228 = vmatprep.subr.mxu0 0.0
    %2229 = vmatpush1.msra.mxu0 0.0
    %2230 = vmatprep.subr.mxu0 0.0
    %2231 = vmatpush1.msra.mxu0 0.0
    %2232 = vmatprep.subr.mxu0 0.0
    %2233 = vmatpush1.msra.mxu0 0.0
    %2234 = vmatprep.subr.mxu0 0.0
    %2235 = vmatpush1.msra.mxu0 0.0
    %2236 = vmatprep.subr.mxu0 0.0
    %2237 = vmatpush1.msra.mxu0 0.0
    %2238 = vmatprep.subr.mxu0 0.0
    %2239 = vmatpush1.msra.mxu0 0.0
    %2240 = vmatprep.subr.mxu0 0.0
    %2241 = vmatpush1.msra.mxu0 0.0
    %2242 = vmatprep.subr.mxu0 0.0
    %2243 = vmatpush1.msra.mxu0 0.0
    %2244 = vmatprep.subr.mxu0 0.0
    %2245 = vmatpush1.msra.mxu0 0.0
    %2246 = vmatprep.subr.mxu0 0.0
    %2247 = vmatpush1.msra.mxu0 0.0
    %2248 = vmatprep.subr.mxu0 0.0
    %2249 = vmatpush1.msra.mxu0 0.0
    %2250 = vmatprep.subr.mxu0 0.0
    %2251 = vmatpush1.msra.mxu0 0.0
    %2252 = vmatprep.subr.mxu0 0.0
    %2253 = vmatpush1.msra.mxu0 0.0
    %2254 = vmatprep.subr.mxu0 0.0
    %2255 = vmatpush1.msra.mxu0 0.0
    %2256 = vmatprep.subr.mxu0 0.0
    %2257 = vmatpush1.msra.mxu0 0.0
    %2258 = vmatprep.subr.mxu0 0.0
    %2259 = vmatpush1.msra.mxu0 0.0
    %2260 = vmatprep.subr.mxu0 0.0
    %2261 = vmatpush1.msra.mxu0 0.0
    %2262 = vmatprep.subr.mxu0 0.0
    %2263 = vmatpush1.msra.mxu0 0.0
    %2264 = vmatprep.subr.mxu0 0.0
    %2265 = vmatpush1.msra.mxu0 0.0
    %2266 = vmatprep.subr.mxu0 0.0
    %2267 = vmatpush1.msra.mxu0 0.0
    %2268 = vmatprep.mubr.f32.mxu0 0.0
    %2269 = vmatmul.mubr.f32.gmra.mrb[0].mxu0 %v2198
    %v2270 = vpop.f32.mrb[0].mxu0
    %v2271 = vadd.f32 0.0, %v2270
    %v2272 = vpop.f32.mrb[0].mxu0
    %2273 = vdwg.mxu0
    %v2275 = vrot.slane %v2182, 6
    %2276 = vrot.lane.b32.xlu0 %v2275, 64
    %v2277 = vpop.permute.xlu0 %2276
    %v2278 = vsel %vm311, %v2277, 0
    %2280 = vmatprep.subr.mxu0 0.0
    %2281 = vmatpush1.msra.mxu0 %v2183
    %2282 = vmatprep.subr.mxu0 0.0
    %2283 = vmatpush1.msra.mxu0 %v2184
    %2284 = vmatprep.subr.mxu0 0.0
    %2285 = vmatpush1.msra.mxu0 %v2185
    %2286 = vmatprep.subr.mxu0 0.0
    %2287 = vmatpush1.msra.mxu0 %v2186
    %2288 = vmatprep.subr.mxu0 0.0
    %2289 = vmatpush1.msra.mxu0 %v2187
    %2290 = vmatprep.subr.mxu0 0.0
    %2291 = vmatpush1.msra.mxu0 %v2188
    %2292 = vmatprep.subr.mxu0 0.0
    %2293 = vmatpush1.msra.mxu0 %v2189
    %2294 = vmatprep.subr.mxu0 0.0
    %2295 = vmatpush1.msra.mxu0 %v2190
    %2296 = vmatprep.subr.mxu0 0.0
    %2297 = vmatpush1.msra.mxu0 0.0
    %2298 = vmatprep.subr.mxu0 0.0
    %2299 = vmatpush1.msra.mxu0 0.0
    %2300 = vmatprep.subr.mxu0 0.0
    %2301 = vmatpush1.msra.mxu0 0.0
    %2302 = vmatprep.subr.mxu0 0.0
    %2303 = vmatpush1.msra.mxu0 0.0
    %2304 = vmatprep.subr.mxu0 0.0
    %2305 = vmatpush1.msra.mxu0 0.0
    %2306 = vmatprep.subr.mxu0 0.0
    %2307 = vmatpush1.msra.mxu0 0.0
    %2308 = vmatprep.subr.mxu0 0.0
    %2309 = vmatpush1.msra.mxu0 0.0
    %2310 = vmatprep.subr.mxu0 0.0
    %2311 = vmatpush1.msra.mxu0 0.0
    %2312 = vmatprep.subr.mxu0 0.0
    %2313 = vmatpush1.msra.mxu0 0.0
    %2314 = vmatprep.subr.mxu0 0.0
    %2315 = vmatpush1.msra.mxu0 0.0
    %2316 = vmatprep.subr.mxu0 0.0
    %2317 = vmatpush1.msra.mxu0 0.0
    %2318 = vmatprep.subr.mxu0 0.0
    %2319 = vmatpush1.msra.mxu0 0.0
    %2320 = vmatprep.subr.mxu0 0.0
    %2321 = vmatpush1.msra.mxu0 0.0
    %2322 = vmatprep.subr.mxu0 0.0
    %2323 = vmatpush1.msra.mxu0 0.0
    %2324 = vmatprep.subr.mxu0 0.0
    %2325 = vmatpush1.msra.mxu0 0.0
    %2326 = vmatprep.subr.mxu0 0.0
    %2327 = vmatpush1.msra.mxu0 0.0
    %2328 = vmatprep.subr.mxu0 0.0
    %2329 = vmatpush1.msra.mxu0 0.0
    %2330 = vmatprep.subr.mxu0 0.0
    %2331 = vmatpush1.msra.mxu0 0.0
    %2332 = vmatprep.subr.mxu0 0.0
    %2333 = vmatpush1.msra.mxu0 0.0
    %2334 = vmatprep.subr.mxu0 0.0
    %2335 = vmatpush1.msra.mxu0 0.0
    %2336 = vmatprep.subr.mxu0 0.0
    %2337 = vmatpush1.msra.mxu0 0.0
    %2338 = vmatprep.subr.mxu0 0.0
    %2339 = vmatpush1.msra.mxu0 0.0
    %2340 = vmatprep.subr.mxu0 0.0
    %2341 = vmatpush1.msra.mxu0 0.0
    %2342 = vmatprep.subr.mxu0 0.0
    %2343 = vmatpush1.msra.mxu0 0.0
    %2344 = vmatprep.mubr.f32.mxu0 0.0
    %2345 = vmatmul.mubr.f32.gmra.mrb[0].mxu0 %v2278
    %v2346 = vpop.f32.mrb[0].mxu0
    %v2347 = vadd.f32 %v2271, %v2346
    %v2348 = vpop.f32.mrb[0].mxu0
    %2349 = vdwg.mxu0
    %v2350 = vld [vmem:[#allocation15] sm:$0x1]
    %v2352 = vlaneseq
    %v2353 = vshrl.u32 %v2352, 7
    %v2354 = vsub.s32 0, %v2353
    %v2355 = vrot.slane %v2350, %v2354
    %v2357 = vadd.f32 %v2347, %v2355
    %v2358 = vld [vmem:[%s13] sm:$0xff]
    %v2359 = vld [vmem:[%s13 + $0x8] sm:$0xff]
    %v2360 = vld [vmem:[%s13 + $0x10] sm:$0xff]
    %v2361 = vld [vmem:[%s13 + $0x18] sm:$0xff]
    %v2362 = vld [vmem:[#allocation16] sm:$0x1]
    %v2364 = vlaneseq
    %v2365 = vshrl.u32 %v2364, 7
    %v2366 = vsub.s32 0, %v2365
    %v2367 = vrot.slane %v2362, %v2366
    %vm2369 = vcmask 261120
    %v2371 = vsel %vm2369, %v2357, 0
    %2373 = vmatprep.subr.mxu0 0.0
    %2374 = vmatpush1.msra.mxu0 %v2358
    %2375 = vmatprep.subr.mxu0 0.0
    %2376 = vmatpush1.msra.mxu0 %v2359
    %2377 = vmatprep.subr.mxu0 0.0
    %2378 = vmatpush1.msra.mxu0 %v2360
    %2379 = vmatprep.subr.mxu0 0.0
    %2380 = vmatpush1.msra.mxu0 %v2361
    %2381 = vmatprep.subr.mxu0 0.0
    %2382 = vmatpush1.msra.mxu0 0.0
    %2383 = vmatprep.subr.mxu0 0.0
    %2384 = vmatpush1.msra.mxu0 0.0
    %2385 = vmatprep.subr.mxu0 0.0
    %2386 = vmatpush1.msra.mxu0 0.0
    %2387 = vmatprep.subr.mxu0 0.0
    %2388 = vmatpush1.msra.mxu0 0.0
    %2389 = vmatprep.subr.mxu0 0.0
    %2390 = vmatpush1.msra.mxu0 0.0
    %2391 = vmatprep.subr.mxu0 0.0
    %2392 = vmatpush1.msra.mxu0 0.0
    %2393 = vmatprep.subr.mxu0 0.0
    %2394 = vmatpush1.msra.mxu0 0.0
    %2395 = vmatprep.subr.mxu0 0.0
    %2396 = vmatpush1.msra.mxu0 0.0
    %2397 = vmatprep.subr.mxu0 0.0
    %2398 = vmatpush1.msra.mxu0 0.0
    %2399 = vmatprep.subr.mxu0 0.0
    %2400 = vmatpush1.msra.mxu0 0.0
    %2401 = vmatprep.subr.mxu0 0.0
    %2402 = vmatpush1.msra.mxu0 0.0
    %2403 = vmatprep.subr.mxu0 0.0
    %2404 = vmatpush1.msra.mxu0 0.0
    %2405 = vmatprep.subr.mxu0 0.0
    %2406 = vmatpush1.msra.mxu0 0.0
    %2407 = vmatprep.subr.mxu0 0.0
    %2408 = vmatpush1.msra.mxu0 0.0
    %2409 = vmatprep.subr.mxu0 0.0
    %2410 = vmatpush1.msra.mxu0 0.0
    %2411 = vmatprep.subr.mxu0 0.0
    %2412 = vmatpush1.msra.mxu0 0.0
    %2413 = vmatprep.subr.mxu0 0.0
    %2414 = vmatpush1.msra.mxu0 0.0
    %2415 = vmatprep.subr.mxu0 0.0
    %2416 = vmatpush1.msra.mxu0 0.0
    %2417 = vmatprep.subr.mxu0 0.0
    %2418 = vmatpush1.msra.mxu0 0.0
    %2419 = vmatprep.subr.mxu0 0.0
    %2420 = vmatpush1.msra.mxu0 0.0
    %2421 = vmatprep.subr.mxu0 0.0
    %2422 = vmatpush1.msra.mxu0 0.0
    %2423 = vmatprep.subr.mxu0 0.0
    %2424 = vmatpush1.msra.mxu0 0.0
    %2425 = vmatprep.subr.mxu0 0.0
    %2426 = vmatpush1.msra.mxu0 0.0
    %2427 = vmatprep.subr.mxu0 0.0
    %2428 = vmatpush1.msra.mxu0 0.0
    %2429 = vmatprep.subr.mxu0 0.0
    %2430 = vmatpush1.msra.mxu0 0.0
    %2431 = vmatprep.subr.mxu0 0.0
    %2432 = vmatpush1.msra.mxu0 0.0
    %2433 = vmatprep.subr.mxu0 0.0
    %2434 = vmatpush1.msra.mxu0 0.0
    %2435 = vmatprep.subr.mxu0 0.0
    %2436 = vmatpush1.msra.mxu0 0.0
    %2437 = vmatprep.mubr.f32.mxu0 0.0
    %2438 = vmatmul.mubr.f32.gmra.mrb[0].mxu0 %v2371
    %v2439 = vpop.f32.mrb[0].mxu0
    %v2440 = vadd.f32 %v2367, %v2439
    %v2441 = vpop.f32.mrb[0].mxu0
    %2442 = vdwg.mxu0
    %v2443 = vld [vmem:[%s15] sm:$0xff]
    %v2444 = vld [vmem:[%s15 + $0x8] sm:$0xff]
    %v2445 = vld [vmem:[%s16] sm:$0x1]
    %v2447 = vlaneseq
    %v2448 = vshrl.u32 %v2447, 7
    %v2449 = vsub.s32 0, %v2448
    %v2450 = vrot.slane %v2445, %v2449
    %vm2452 = vcmask 130048
    %v2454 = vsel %vm2452, %v2440, 0
    %2456 = vmatprep.subr.mxu0 0.0
    %2457 = vmatpush1.msra.mxu0 %v2443
    %2458 = vmatprep.subr.mxu0 0.0
    %2459 = vmatpush1.msra.mxu0 %v2444
    %2460 = vmatprep.subr.mxu0 0.0
    %2461 = vmatpush1.msra.mxu0 0.0
    %2462 = vmatprep.subr.mxu0 0.0
    %2463 = vmatpush1.msra.mxu0 0.0
    %2464 = vmatprep.subr.mxu0 0.0
    %2465 = vmatpush1.msra.mxu0 0.0
    %2466 = vmatprep.subr.mxu0 0.0
    %2467 = vmatpush1.msra.mxu0 0.0
    %2468 = vmatprep.subr.mxu0 0.0
    %2469 = vmatpush1.msra.mxu0 0.0
    %2470 = vmatprep.subr.mxu0 0.0
    %2471 = vmatpush1.msra.mxu0 0.0
    %2472 = vmatprep.subr.mxu0 0.0
    %2473 = vmatpush1.msra.mxu0 0.0
    %2474 = vmatprep.subr.mxu0 0.0
    %2475 = vmatpush1.msra.mxu0 0.0
    %2476 = vmatprep.subr.mxu0 0.0
    %2477 = vmatpush1.msra.mxu0 0.0
    %2478 = vmatprep.subr.mxu0 0.0
    %2479 = vmatpush1.msra.mxu0 0.0
    %2480 = vmatprep.subr.mxu0 0.0
    %2481 = vmatpush1.msra.mxu0 0.0
    %2482 = vmatprep.subr.mxu0 0.0
    %2483 = vmatpush1.msra.mxu0 0.0
    %2484 = vmatprep.subr.mxu0 0.0
    %2485 = vmatpush1.msra.mxu0 0.0
    %2486 = vmatprep.subr.mxu0 0.0
    %2487 = vmatpush1.msra.mxu0 0.0
    %2488 = vmatprep.subr.mxu0 0.0
    %2489 = vmatpush1.msra.mxu0 0.0
    %2490 = vmatprep.subr.mxu0 0.0
    %2491 = vmatpush1.msra.mxu0 0.0
    %2492 = vmatprep.subr.mxu0 0.0
    %2493 = vmatpush1.msra.mxu0 0.0
    %2494 = vmatprep.subr.mxu0 0.0
    %2495 = vmatpush1.msra.mxu0 0.0
    %2496 = vmatprep.subr.mxu0 0.0
    %2497 = vmatpush1.msra.mxu0 0.0
    %2498 = vmatprep.subr.mxu0 0.0
    %2499 = vmatpush1.msra.mxu0 0.0
    %2500 = vmatprep.subr.mxu0 0.0
    %2501 = vmatpush1.msra.mxu0 0.0
    %2502 = vmatprep.subr.mxu0 0.0
    %2503 = vmatpush1.msra.mxu0 0.0
    %2504 = vmatprep.subr.mxu0 0.0
    %2505 = vmatpush1.msra.mxu0 0.0
    %2506 = vmatprep.subr.mxu0 0.0
    %2507 = vmatpush1.msra.mxu0 0.0
    %2508 = vmatprep.subr.mxu0 0.0
    %2509 = vmatpush1.msra.mxu0 0.0
    %2510 = vmatprep.subr.mxu0 0.0
    %2511 = vmatpush1.msra.mxu0 0.0
    %2512 = vmatprep.subr.mxu0 0.0
    %2513 = vmatpush1.msra.mxu0 0.0
    %2514 = vmatprep.subr.mxu0 0.0
    %2515 = vmatpush1.msra.mxu0 0.0
    %2516 = vmatprep.subr.mxu0 0.0
    %2517 = vmatpush1.msra.mxu0 0.0
    %2518 = vmatprep.subr.mxu0 0.0
    %2519 = vmatpush1.msra.mxu0 0.0
    %2520 = vmatprep.mubr.f32.mxu0 0.0
    %2521 = vmatmul.mubr.f32.gmra.mrb[0].mxu0 %v2454
    %v2522 = vpop.f32.mrb[0].mxu0
    %v2523 = vadd.f32 %v2450, %v2522
    %v2524 = vpop.f32.mrb[0].mxu0
    %2525 = vdwg.mxu0
    %v2526 = vlaneseq
    %v2527 = vand.u32 %v2526, 127
    %vm2528 = vcmp.lt.s32.totalorder %v2527, 7
    %vm2529 = vcmp.ge.s32.totalorder %v2527, 7
    %vm2530 = vcmp.lt.s32.totalorder %v2527, 9
    %vm2531 = vmand %vm2529, %vm2530
    %v2532 = vsel %vm2528, %v2523, 0.0
    %v2533 = vsel %vm1176, %v2532, 0.0
    %2534 = vadd.xlane.f32.xlu0 %v2533
    %v2535 = vpop.xlane.xlu0 %2534
    %v2536 = vrot.slane %v2535, 4
    %v2537 = vadd.f32 %v2535, %v2536
    %v2538 = vrot.slane %v2537, 2
    %v2539 = vadd.f32 %v2537, %v2538
    %v2540 = vrot.slane %v2539, 1
    %v2541 = vadd.f32 %v2539, %v2540
    %s2542 = vtos %v2541
    %v2543 = vrcp.pop 14.0
    %s2544 = vtos %v2543
    %s2545 = smul.f32 %s2542, %s2544
    %v2546 = vsel %vm2531, %v2523, 0.0
    %v2547 = vsel %vm1176, %v2546, 0.0
    %2548 = vadd.xlane.f32.xlu0 %v2547
    %v2549 = vpop.xlane.xlu0 %2548
    %v2550 = vrot.slane %v2549, 4
    %v2551 = vadd.f32 %v2549, %v2550
    %v2552 = vrot.slane %v2551, 2
    %v2553 = vadd.f32 %v2551, %v2552
    %v2554 = vrot.slane %v2553, 1
    %v2555 = vadd.f32 %v2553, %v2554
    %s2556 = vtos %v2555
    %v2557 = vrcp.pop 4.0
    %s2558 = vtos %v2557
    %s2559 = smul.f32 %s2556, %s2558
    %v2560 = vstv %s2545
    %v2561 = vstv %s2559
    %v2562 = vsel %vm2528, %v2560, %v2561
    %v2563 = vsub.f32 %v2523, %v2562
    %v2564 = vmul.f32 %v2563, %v2563
    %v2565 = vsel %vm2528, %v2564, 0.0
    %v2566 = vsel %vm1176, %v2565, 0.0
    %2567 = vadd.xlane.f32.xlu0 %v2566
    %v2568 = vpop.xlane.xlu0 %2567
    %v2569 = vrot.slane %v2568, 4
    %v2570 = vadd.f32 %v2568, %v2569
    %v2571 = vrot.slane %v2570, 2
    %v2572 = vadd.f32 %v2570, %v2571
    %v2573 = vrot.slane %v2572, 1
    %v2574 = vadd.f32 %v2572, %v2573
    %s2575 = vtos %v2574
    %v2576 = vrcp.pop 14.0
    %s2577 = vtos %v2576
    %s2578 = smul.f32 %s2575, %s2577
    %v2579 = vsel %vm2531, %v2564, 0.0
    %v2580 = vsel %vm1176, %v2579, 0.0
    %2581 = vadd.xlane.f32.xlu0 %v2580
    %v2582 = vpop.xlane.xlu0 %2581
    %v2583 = vrot.slane %v2582, 4
    %v2584 = vadd.f32 %v2582, %v2583
    %v2585 = vrot.slane %v2584, 2
    %v2586 = vadd.f32 %v2584, %v2585
    %v2587 = vrot.slane %v2586, 1
    %v2588 = vadd.f32 %v2586, %v2587
    %s2589 = vtos %v2588
    %v2590 = vrcp.pop 4.0
    %s2591 = vtos %v2590
    %s2592 = smul.f32 %s2589, %s2591
    %s2593 = sadd.f32 %s2578, 1e-05
    %v2594 = vstv %s2593
    %v2595 = vrsqrt.pop %v2594
    %s2596 = vtos %v2595
    %s2597 = sadd.f32 %s2592, 1e-05
    %v2598 = vstv %s2597
    %v2599 = vrsqrt.pop %v2598
    %s2600 = vtos %v2599
    %v2601 = vstv %s2596
    %v2602 = vstv %s2600
    %v2603 = vsel %vm2528, %v2601, %v2602
    %v2604 = vmul.f32 %v2563, %v2603
    %2605 = vst [vmem:[%s17] sm:$0x3] %v2604
    // Predicated region
    $region110: #{lstm_forward.1} parent=1 // pred_check
      _
    $region111: #{lstm_forward.1} parent=1 // pred_check_branch
      %2607 = sbr.rel (0) target = $region113
    $region112: #{lstm_forward.1} parent=1 // pred_region
      _
    $region113: #{lstm_forward.1} parent=1 // pred_fallthru
      _
    // Predicated region
    $region114: #{lstm_forward.1} parent=1 // pred_check
      _
    $region115: #{lstm_forward.1} parent=1 // pred_check_branch
      %2609 = sbr.rel (0) target = $region117
    $region116: #{lstm_forward.1} parent=1 // pred_region
      _
    $region117: #{lstm_forward.1} parent=1 // pred_fallthru
      _
    %2610 = vsyncpa [#allocation3], 1
    %2611 = vsyncpa [#allocation5], 1
    %2612 = vsyncpa [#allocation8], 1
    %2613 = vsyncpa [#allocation11], 1
    %2614 = vsyncpa [#allocation14], 1
    %2615 = vsyncpa [#allocation17], 1

</llo_original>
